<compile_context>
chip_gen: v7x
topology: tpu7x:2x2x1
jax: 0.10.0
libtpu: 0.0.40
codegen_flags: <defaults>
</compile_context>

<pallas_src>
import numpy as np
import jax
import jax.numpy as jnp
from jax import lax
from jax.experimental import pallas as pl
from jax.experimental.pallas import tpu as pltpu


# ----------------------------------------------------------------------------
# Host-side construction of the constant convolution matrices.
# ----------------------------------------------------------------------------
def _gaussian_kernel1d(ksize=13, sigma=4.0):
    # Matches torchvision.transforms.GaussianBlur's 1D kernel construction.
    half = (ksize - 1) * 0.5
    x = np.linspace(-half, half, ksize)
    pdf = np.exp(-0.5 * (x / sigma) ** 2)
    return (pdf / pdf.sum()).astype(np.float32)


def _reflect(j, n):
    # torch F.pad(mode="reflect"): no edge repeat.
    if j < 0:
        return -j
    if j >= n:
        return 2 * (n - 1) - j
    return j


def _blur_axis_matrix(n, ksize=13, sigma=4.0):
    """(n, n) matrix M with (M @ x) == 1D reflect-padded Gaussian blur along
    the leading axis of x."""
    k1d = _gaussian_kernel1d(ksize, sigma)
    half = ksize // 2
    m = np.zeros((n, n), np.float32)
    for i in range(n):
        for k in range(ksize):
            m[i, _reflect(i - half + k, n)] += k1d[k]
    return m


def _laplace_axis_matrix(n):
    """(n, n) symmetric matrix L with (L @ x) == [ -1, 2, -1 ] zero-padded
    1D conv along the leading axis of x."""
    m = 2.0 * np.eye(n, dtype=np.float32)
    idx = np.arange(n - 1)
    m[idx, idx + 1] = -1.0
    m[idx + 1, idx] = -1.0
    return m


# ----------------------------------------------------------------------------
# Pallas GFL loss.
# ----------------------------------------------------------------------------
def gfl_loss(pred, target, target_weight=None, beta=2, block_maps=8):
    """Pallas implementation of GFL.forward.

    target_weight is accepted but ignored, matching the reference forward
    (the PyTorch module never uses it)."""
    B, J, H, W = pred.shape
    assert H >= 7 and W >= 7, "reflect padding of width 6 requires H, W >= 7"
    BJ = B * J

    TB = max(1, min(block_maps, BJ))
    # Keep the two (TB*H, TB*H) block-diagonal fp32 matrices well inside VMEM.
    while TB > 1 and 2 * (TB * H) ** 2 * 4 > (8 << 20):
        TB //= 2
    BJ_pad = ((BJ + TB - 1) // TB) * TB
    G = BJ_pad // TB
    assert G == 1 or (TB * H) % 8 == 0, "block sublane extent must be 8-aligned"

    pred_f = pred.reshape(BJ, H, W).astype(jnp.float32)
    gt_f = target.reshape(BJ, H, W).astype(jnp.float32)
    if BJ_pad != BJ:
        # Zero-padded maps contribute exactly 0 to the loss sum.
        pad = BJ_pad - BJ
        pred_f = jnp.pad(pred_f, ((0, pad), (0, 0), (0, 0)))
        gt_f = jnp.pad(gt_f, ((0, pad), (0, 0), (0, 0)))
    pred_2d = pred_f.reshape(BJ_pad * H, W)
    gt_2d = gt_f.reshape(BJ_pad * H, W)

    # Row (H-axis) operators, lifted to block-diagonal so the whole (TB*H, W)
    # block is one matmul.  Column (W-axis) operators stay (W, W).
    eye_tb = np.eye(TB, dtype=np.float32)
    row_blur = jnp.asarray(np.kron(eye_tb, _blur_axis_matrix(H)))
    col_blur = jnp.asarray(_blur_axis_matrix(W).T)
    row_lap = jnp.asarray(np.kron(eye_tb, _laplace_axis_matrix(H)))
    col_lap = jnp.asarray(_laplace_axis_matrix(W))  # symmetric

    hp = lax.Precision.HIGHEST
    TBH = TB * H

    def kernel(pred_ref, gt_ref, rb_ref, cb_ref, rl_ref, cl_ref, out_ref):
        p = pred_ref[...]                       # (TB*H, W)
        g = gt_ref[...]                         # (TB*H, W)

        # 13x13 reflect-padded Gaussian blur == rowBD_blur @ g @ col_blur (MXU).
        smooth = jnp.dot(
            jnp.dot(rb_ref[...], g,
                    preferred_element_type=jnp.float32, precision=hp),
            cb_ref[...], preferred_element_type=jnp.float32, precision=hp)

        # 3x3 Laplacian (zero padding) == rowBD_lap @ g + g @ col_lap (MXU).
        sharp = (jnp.dot(rl_ref[...], g,
                         preferred_element_type=jnp.float32, precision=hp)
                 + jnp.dot(g, cl_ref[...],
                           preferred_element_type=jnp.float32, precision=hp))

        # Elementwise loss (VPU) + block reduction.
        wl = jnp.abs(sharp - g)
        wr = jnp.abs(g - smooth)
        err = (p - g) ** beta
        dl = p - sharp
        dr = p - smooth
        loss = (dl * dl * wl + dr * dr * wr) * err

        # Lane-dense partial-sum output (single unmasked store).
        out_ref[...] = jnp.full((1, 1, 128), jnp.sum(loss), dtype=jnp.float32)

    per_block = pl.pallas_call(
        kernel,
        out_shape=jax.ShapeDtypeStruct((G, 1, 128), jnp.float32),
        grid=(G,),
        in_specs=[
            pl.BlockSpec((TBH, W), lambda i: (i, 0)),
            pl.BlockSpec((TBH, W), lambda i: (i, 0)),
            pl.BlockSpec((TBH, TBH), lambda i: (0, 0)),
            pl.BlockSpec((W, W), lambda i: (0, 0)),
            pl.BlockSpec((TBH, TBH), lambda i: (0, 0)),
            pl.BlockSpec((W, W), lambda i: (0, 0)),
        ],
        out_specs=pl.BlockSpec((1, 1, 128), lambda i: (i, 0, 0)),
        compiler_params=pltpu.CompilerParams(
            dimension_semantics=("parallel",)),
    )(pred_2d, gt_2d, row_blur, col_blur, row_lap, col_lap)

    # Final mean over the *actual* (B, J, H, W) elements — tiny JAX glue.
    return jnp.sum(per_block[:, 0, 0]) / (BJ * H * W)


# ----------------------------------------------------------------------------
# Pure-JAX reference mirroring the PyTorch GFL.forward, for validation.
# ----------------------------------------------------------------------------
def gfl_loss_ref(pred, target, beta=2):
    B, J, H, W = pred.shape
    k1d = jnp.asarray(_gaussian_kernel1d(13, 4.0))
    g2d = jnp.outer(k1d, k1d)[None, None]                       # (1,1,13,13)
    lap = jnp.asarray([[0, -1, 0], [-1, 4, -1], [0, -1, 0]],
                      dtype=jnp.float32)[None, None]            # (1,1,3,3)

    x = target.reshape(B * J, 1, H, W).astype(jnp.float32)
    p = pred.reshape(B * J, 1, H, W).astype(jnp.float32)

    xr = jnp.pad(x, ((0, 0), (0, 0), (6, 6), (6, 6)), mode="reflect")
    smooth = lax.conv_general_dilated(
        xr, g2d, (1, 1), "VALID",
        dimension_numbers=("NCHW", "OIHW", "NCHW"),
        precision=lax.Precision.HIGHEST)
    sharp = lax.conv_general_dilated(
        x, lap, (1, 1), ((1, 1), (1, 1)),
        dimension_numbers=("NCHW", "OIHW", "NCHW"),
        precision=lax.Precision.HIGHEST)

    wl = jnp.abs(sharp - x)
    wr = jnp.abs(x - smooth)
    err = (p - x) ** beta
    loss = ((p - sharp) ** 2 * wl + (p - smooth) ** 2 * wr) * err
    return loss.mean()


if __name__ == "__main__":
    B, J, H, W = 2, 4, 16, 16
    key = jax.random.PRNGKey(0)
    k1, k2 = jax.random.split(key)
    pred = jax.random.uniform(k1, (B, J, H, W), dtype=jnp.float32)
    target = jax.random.uniform(k2, (B, J, H, W), dtype=jnp.float32)
    target_weight = jnp.ones((B, J, 1), jnp.float32)  # unused, as in reference

    loss = jax.block_until_ready(gfl_loss(pred, target, target_weight))
    ref = jax.block_until_ready(gfl_loss_ref(pred, target))
    assert jnp.allclose(loss, ref, rtol=1e-3, atol=1e-6), (loss, ref)
    print("KERNEL_OK")
</pallas_src>

<mosaic_0001>
module attributes {stable_mosaic.version = 11 : i64} {
  func.func @kernel(%arg0: i32, %arg1: memref<128x16xf32, #tpu.memory_space<vmem>>, %arg2: memref<128x16xf32, #tpu.memory_space<vmem>>, %arg3: memref<128x128xf32, #tpu.memory_space<vmem>>, %arg4: memref<16x16xf32, #tpu.memory_space<vmem>>, %arg5: memref<128x128xf32, #tpu.memory_space<vmem>>, %arg6: memref<16x16xf32, #tpu.memory_space<vmem>>, %arg7: memref<1x1x128xf32, #tpu.memory_space<vmem>>) attributes {dimension_semantics = [#tpu.dimension_semantics<parallel>], iteration_bounds = array<i64: 1>, scalar_prefetch = 0 : i64, scratch_operands = 0 : i64, tpu.core_type = #tpu.core_type<tc>, window_params = [{transform_indices = @transform_0, window_bounds = array<i64: 128, 16>}, {transform_indices = @transform_1, window_bounds = array<i64: 128, 16>}, {pipeline_mode = #tpu.pipeline_mode<synchronous>, transform_indices = @transform_2, window_bounds = array<i64: 128, 128>}, {pipeline_mode = #tpu.pipeline_mode<synchronous>, transform_indices = @transform_3, window_bounds = array<i64: 16, 16>}, {pipeline_mode = #tpu.pipeline_mode<synchronous>, transform_indices = @transform_4, window_bounds = array<i64: 128, 128>}, {pipeline_mode = #tpu.pipeline_mode<synchronous>, transform_indices = @transform_5, window_bounds = array<i64: 16, 16>}, {transform_indices = @transform_6, window_bounds = array<i64: 1, 1, 128>}]} {
    %c0 = arith.constant 0 : index
    %c0_0 = arith.constant 0 : index
    %0 = vector.load %arg1[%c0, %c0_0] : memref<128x16xf32, #tpu.memory_space<vmem>>, vector<128x16xf32>
    %c0_1 = arith.constant 0 : index
    %c0_2 = arith.constant 0 : index
    %1 = vector.load %arg2[%c0_1, %c0_2] : memref<128x16xf32, #tpu.memory_space<vmem>>, vector<128x16xf32>
    %c0_3 = arith.constant 0 : index
    %c0_4 = arith.constant 0 : index
    %2 = vector.load %arg3[%c0_3, %c0_4] : memref<128x128xf32, #tpu.memory_space<vmem>>, vector<128x128xf32>
    %cst = arith.constant dense<0.000000e+00> : vector<128x16xf32>
    %3 = tpu.matmul %2, %1, %cst {dimension_numbers = #tpu.dot_dimension_numbers<[1], [0], [0], [1], [0, 0, 1, 1], [], []>, precision = #tpu.contract_precision<fp32>} : vector<128x128xf32>, vector<128x16xf32>, vector<128x16xf32> -> vector<128x16xf32>
    %c0_5 = arith.constant 0 : index
    %c0_6 = arith.constant 0 : index
    %4 = vector.load %arg4[%c0_5, %c0_6] : memref<16x16xf32, #tpu.memory_space<vmem>>, vector<16x16xf32>
    %cst_7 = arith.constant dense<0.000000e+00> : vector<128x16xf32>
    %5 = tpu.matmul %3, %4, %cst_7 {dimension_numbers = #tpu.dot_dimension_numbers<[1], [0], [0], [1], [0, 0, 1, 1], [], []>, precision = #tpu.contract_precision<fp32>} : vector<128x16xf32>, vector<16x16xf32>, vector<128x16xf32> -> vector<128x16xf32>
    %c0_8 = arith.constant 0 : index
    %c0_9 = arith.constant 0 : index
    %6 = vector.load %arg5[%c0_8, %c0_9] : memref<128x128xf32, #tpu.memory_space<vmem>>, vector<128x128xf32>
    %cst_10 = arith.constant dense<0.000000e+00> : vector<128x16xf32>
    %7 = tpu.matmul %6, %1, %cst_10 {dimension_numbers = #tpu.dot_dimension_numbers<[1], [0], [0], [1], [0, 0, 1, 1], [], []>, precision = #tpu.contract_precision<fp32>} : vector<128x128xf32>, vector<128x16xf32>, vector<128x16xf32> -> vector<128x16xf32>
    %c0_11 = arith.constant 0 : index
    %c0_12 = arith.constant 0 : index
    %8 = vector.load %arg6[%c0_11, %c0_12] : memref<16x16xf32, #tpu.memory_space<vmem>>, vector<16x16xf32>
    %cst_13 = arith.constant dense<0.000000e+00> : vector<128x16xf32>
    %9 = tpu.matmul %1, %8, %cst_13 {dimension_numbers = #tpu.dot_dimension_numbers<[1], [0], [0], [1], [0, 0, 1, 1], [], []>, precision = #tpu.contract_precision<fp32>} : vector<128x16xf32>, vector<16x16xf32>, vector<128x16xf32> -> vector<128x16xf32>
    %10 = arith.addf %7, %9 : vector<128x16xf32>
    %11 = arith.subf %10, %1 : vector<128x16xf32>
    %12 = math.absf %11 : vector<128x16xf32>
    %13 = arith.subf %1, %5 : vector<128x16xf32>
    %14 = math.absf %13 : vector<128x16xf32>
    %15 = arith.subf %0, %1 : vector<128x16xf32>
    %16 = arith.mulf %15, %15 : vector<128x16xf32>
    %17 = arith.subf %0, %10 : vector<128x16xf32>
    %18 = arith.subf %0, %5 : vector<128x16xf32>
    %19 = arith.mulf %17, %17 : vector<128x16xf32>
    %20 = arith.mulf %19, %12 : vector<128x16xf32>
    %21 = arith.mulf %18, %18 : vector<128x16xf32>
    %22 = arith.mulf %21, %14 : vector<128x16xf32>
    %23 = arith.addf %20, %22 : vector<128x16xf32>
    %24 = arith.mulf %23, %16 : vector<128x16xf32>
    %25 = vector.shape_cast %24 : vector<128x16xf32> to vector<1x128x16xf32>
    %cst_14 = arith.constant dense<0.000000e+00> : vector<1xf32>
    %26 = vector.multi_reduction <add>, %25, %cst_14 [1, 2] : vector<1x128x16xf32> to vector<1xf32>
    %27 = vector.shape_cast %26 : vector<1xf32> to vector<1x1x1xf32>
    %28 = vector.extract %27[0, 0, 0] : f32 from vector<1x1x1xf32>
    %29 = vector.broadcast %28 : f32 to vector<1x1x128xf32>
    %c0_15 = arith.constant 0 : index
    %c0_16 = arith.constant 0 : index
    %c0_17 = arith.constant 0 : index
    %30 = vector.load %arg7[%c0_15, %c0_16, %c0_17] : memref<1x1x128xf32, #tpu.memory_space<vmem>>, vector<1x1x128xf32>
    tpu.vector_store %arg7[%c0_15, %c0_16, %c0_17], %29 {strides = array<i32>} : memref<1x1x128xf32, #tpu.memory_space<vmem>>, vector<1x1x128xf32>,
    return
  }
  func.func @transform_0(%arg0: i32) -> (i32, i32) {
    %c0_i32 = arith.constant 0 : i32
    %c0_i32_0 = arith.constant 0 : i32
    return %arg0, %c0_i32 : i32, i32
  }
  func.func @transform_1(%arg0: i32) -> (i32, i32) {
    %c0_i32 = arith.constant 0 : i32
    %c0_i32_0 = arith.constant 0 : i32
    return %arg0, %c0_i32 : i32, i32
  }
  func.func @transform_2(%arg0: i32) -> (i32, i32) {
    %c0_i32 = arith.constant 0 : i32
    %c0_i32_0 = arith.constant 0 : i32
    %c0_i32_1 = arith.constant 0 : i32
    return %c0_i32, %c0_i32_0 : i32, i32
  }
  func.func @transform_3(%arg0: i32) -> (i32, i32) {
    %c0_i32 = arith.constant 0 : i32
    %c0_i32_0 = arith.constant 0 : i32
    %c0_i32_1 = arith.constant 0 : i32
    return %c0_i32, %c0_i32_0 : i32, i32
  }
  func.func @transform_4(%arg0: i32) -> (i32, i32) {
    %c0_i32 = arith.constant 0 : i32
    %c0_i32_0 = arith.constant 0 : i32
    %c0_i32_1 = arith.constant 0 : i32
    return %c0_i32, %c0_i32_0 : i32, i32
  }
  func.func @transform_5(%arg0: i32) -> (i32, i32) {
    %c0_i32 = arith.constant 0 : i32
    %c0_i32_0 = arith.constant 0 : i32
    %c0_i32_1 = arith.constant 0 : i32
    return %c0_i32, %c0_i32_0 : i32, i32
  }
  func.func @transform_6(%arg0: i32) -> (i32, i32, i32) {
    %c0_i32 = arith.constant 0 : i32
    %c0_i32_0 = arith.constant 0 : i32
    %c0_i32_1 = arith.constant 0 : i32
    return %arg0, %c0_i32, %c0_i32_0 : i32, i32, i32
  }
}

</mosaic_0001>

<llo_original>
// kernel: tpu_custom_call.1
$region0: #{tpu_custom_call.1}
  #allocation0 [shape = 'u32[]', space=smem, size = 0x4, offset = 0x4, fixed_abs, tag = 'smem constant byte address 0x4 - core index']
  #allocation1 [shape = 'u32[144,128]{1,0:T(1,128)}', space=vmem, size = 0x12000, scoped, tag = 'internal scratch']
  %s0 = inlined_call_operand.vmem [shape: f32[128,16], index: 0, kind: input, shape index: {}]
  %s1 = inlined_call_operand.vmem [shape: f32[128,16], index: 1, kind: input, shape index: {}]
  %s2 = inlined_call_operand.vmem [shape: f32[128,128], index: 2, kind: input, shape index: {}]
  %s3 = inlined_call_operand.vmem [shape: f32[16,16], index: 3, kind: input, shape index: {}]
  %s4 = inlined_call_operand.vmem [shape: f32[128,128], index: 4, kind: input, shape index: {}]
  %s5 = inlined_call_operand.vmem [shape: f32[16,16], index: 5, kind: input, shape index: {}]
  %s6 = inlined_call_operand.hbm [shape: f32[1,1,128], index: 6, kind: output, shape index: {}]
  %s7 = sld [smem:[#allocation0]]
  $region34: #{tpu_custom_call.1} parent=0
    _
  %s9 = ssub.s32 1, %s7
  %s10 = scalar_select 0, %s9, %s7
  $region1: #{tpu_custom_call.1} parent=0
    #allocation2 [shape = 'u8[512]{0}', space=vmem, size = 0x400, scoped, tag = 'output window, operand 0, single buffered']
    #allocation3 [shape = 's32[1]{0}', space=sflag, size = 0x4, scoped, tag = 'scoped memory for tpu_custom_call.1']
    %11 = vsyncpa [#allocation3], 0
    // Predicated region
    $region2: #{tpu_custom_call.1} parent=1 // pred_check
      _
    $region3: #{tpu_custom_call.1} parent=1 // pred_check_branch
      %13 = sbr.rel (0) target = $region5
    $region4: #{tpu_custom_call.1} parent=1 // pred_region
      _
    $region5: #{tpu_custom_call.1} parent=1 // pred_fallthru
      _
    // Predicated region
    $region6: #{tpu_custom_call.1} parent=1 // pred_check
      _
    $region7: #{tpu_custom_call.1} parent=1 // pred_check_branch
      %15 = sbr.rel (0) target = $region9
    $region8: #{tpu_custom_call.1} parent=1 // pred_region
      _
    $region9: #{tpu_custom_call.1} parent=1 // pred_fallthru
      _
    // Predicated region
    $region10: #{tpu_custom_call.1} parent=1 // pred_check
      _
    $region11: #{tpu_custom_call.1} parent=1 // pred_check_branch
      %17 = sbr.rel (0) target = $region13
    $region12: #{tpu_custom_call.1} parent=1 // pred_region
      _
    $region13: #{tpu_custom_call.1} parent=1 // pred_fallthru
      _
    // Predicated region
    $region14: #{tpu_custom_call.1} parent=1 // pred_check
      _
    $region15: #{tpu_custom_call.1} parent=1 // pred_check_branch
      %19 = sbr.rel (0) target = $region17
    $region16: #{tpu_custom_call.1} parent=1 // pred_region
      _
    $region17: #{tpu_custom_call.1} parent=1 // pred_fallthru
      _
    // Predicated region
    $region18: #{tpu_custom_call.1} parent=1 // pred_check
      _
    $region19: #{tpu_custom_call.1} parent=1 // pred_check_branch
      %21 = sbr.rel (0) target = $region21
    $region20: #{tpu_custom_call.1} parent=1 // pred_region
      _
    $region21: #{tpu_custom_call.1} parent=1 // pred_fallthru
      _
    // Predicated region
    $region22: #{tpu_custom_call.1} parent=1 // pred_check
      _
    $region23: #{tpu_custom_call.1} parent=1 // pred_check_branch
      %23 = sbr.rel (0) target = $region25
    $region24: #{tpu_custom_call.1} parent=1 // pred_region
      _
    $region25: #{tpu_custom_call.1} parent=1 // pred_fallthru
      _
    %v24 = vld [vmem:[%s0] sm:$0xff]
    %v25 = vld [vmem:[%s0 + $0x8] sm:$0xff]
    %v26 = vld [vmem:[%s0 + $0x10] sm:$0xff]
    %v27 = vld [vmem:[%s0 + $0x18] sm:$0xff]
    %v28 = vld [vmem:[%s0 + $0x20] sm:$0xff]
    %v29 = vld [vmem:[%s0 + $0x28] sm:$0xff]
    %v30 = vld [vmem:[%s0 + $0x30] sm:$0xff]
    %v31 = vld [vmem:[%s0 + $0x38] sm:$0xff]
    %v32 = vld [vmem:[%s0 + $0x40] sm:$0xff]
    %v33 = vld [vmem:[%s0 + $0x48] sm:$0xff]
    %v34 = vld [vmem:[%s0 + $0x50] sm:$0xff]
    %v35 = vld [vmem:[%s0 + $0x58] sm:$0xff]
    %v36 = vld [vmem:[%s0 + $0x60] sm:$0xff]
    %v37 = vld [vmem:[%s0 + $0x68] sm:$0xff]
    %v38 = vld [vmem:[%s0 + $0x70] sm:$0xff]
    %v39 = vld [vmem:[%s0 + $0x78] sm:$0xff]
    %v40 = vld [vmem:[%s1] sm:$0xff]
    %v41 = vld [vmem:[%s1 + $0x8] sm:$0xff]
    %v42 = vld [vmem:[%s1 + $0x10] sm:$0xff]
    %v43 = vld [vmem:[%s1 + $0x18] sm:$0xff]
    %v44 = vld [vmem:[%s1 + $0x20] sm:$0xff]
    %v45 = vld [vmem:[%s1 + $0x28] sm:$0xff]
    %v46 = vld [vmem:[%s1 + $0x30] sm:$0xff]
    %v47 = vld [vmem:[%s1 + $0x38] sm:$0xff]
    %v48 = vld [vmem:[%s1 + $0x40] sm:$0xff]
    %v49 = vld [vmem:[%s1 + $0x48] sm:$0xff]
    %v50 = vld [vmem:[%s1 + $0x50] sm:$0xff]
    %v51 = vld [vmem:[%s1 + $0x58] sm:$0xff]
    %v52 = vld [vmem:[%s1 + $0x60] sm:$0xff]
    %v53 = vld [vmem:[%s1 + $0x68] sm:$0xff]
    %v54 = vld [vmem:[%s1 + $0x70] sm:$0xff]
    %v55 = vld [vmem:[%s1 + $0x78] sm:$0xff]
    %v56 = vld [vmem:[%s2] sm:$0xff]
    %v57 = vld [vmem:[%s2 + $0x8] sm:$0xff]
    %v58 = vld [vmem:[%s2 + $0x10] sm:$0xff]
    %v59 = vld [vmem:[%s2 + $0x18] sm:$0xff]
    %v60 = vld [vmem:[%s2 + $0x20] sm:$0xff]
    %v61 = vld [vmem:[%s2 + $0x28] sm:$0xff]
    %v62 = vld [vmem:[%s2 + $0x30] sm:$0xff]
    %v63 = vld [vmem:[%s2 + $0x38] sm:$0xff]
    %v64 = vld [vmem:[%s2 + $0x40] sm:$0xff]
    %v65 = vld [vmem:[%s2 + $0x48] sm:$0xff]
    %v66 = vld [vmem:[%s2 + $0x50] sm:$0xff]
    %v67 = vld [vmem:[%s2 + $0x58] sm:$0xff]
    %v68 = vld [vmem:[%s2 + $0x60] sm:$0xff]
    %v69 = vld [vmem:[%s2 + $0x68] sm:$0xff]
    %v70 = vld [vmem:[%s2 + $0x70] sm:$0xff]
    %v71 = vld [vmem:[%s2 + $0x78] sm:$0xff]
    %72 = vmatprep.subr.mxu0 0.0
    %v73 = vand.u32 %v40, 4294901760
    %74 = vmatpush1.msra.mxu0 %v73
    %75 = vmatprep.subr.mxu0 0.0
    %v76 = vand.u32 %v41, 4294901760
    %77 = vmatpush1.msra.mxu0 %v76
    %78 = vmatprep.subr.mxu0 0.0
    %v79 = vand.u32 %v42, 4294901760
    %80 = vmatpush1.msra.mxu0 %v79
    %81 = vmatprep.subr.mxu0 0.0
    %v82 = vand.u32 %v43, 4294901760
    %83 = vmatpush1.msra.mxu0 %v82
    %84 = vmatprep.subr.mxu0 0.0
    %v85 = vand.u32 %v44, 4294901760
    %86 = vmatpush1.msra.mxu0 %v85
    %87 = vmatprep.subr.mxu0 0.0
    %v88 = vand.u32 %v45, 4294901760
    %89 = vmatpush1.msra.mxu0 %v88
    %90 = vmatprep.subr.mxu0 0.0
    %v91 = vand.u32 %v46, 4294901760
    %92 = vmatpush1.msra.mxu0 %v91
    %93 = vmatprep.subr.mxu0 0.0
    %v94 = vand.u32 %v47, 4294901760
    %95 = vmatpush1.msra.mxu0 %v94
    %96 = vmatprep.subr.mxu0 0.0
    %v97 = vand.u32 %v48, 4294901760
    %98 = vmatpush1.msra.mxu0 %v97
    %99 = vmatprep.subr.mxu0 0.0
    %v100 = vand.u32 %v49, 4294901760
    %101 = vmatpush1.msra.mxu0 %v100
    %102 = vmatprep.subr.mxu0 0.0
    %v103 = vand.u32 %v50, 4294901760
    %104 = vmatpush1.msra.mxu0 %v103
    %105 = vmatprep.subr.mxu0 0.0
    %v106 = vand.u32 %v51, 4294901760
    %107 = vmatpush1.msra.mxu0 %v106
    %108 = vmatprep.subr.mxu0 0.0
    %v109 = vand.u32 %v52, 4294901760
    %110 = vmatpush1.msra.mxu0 %v109
    %111 = vmatprep.subr.mxu0 0.0
    %v112 = vand.u32 %v53, 4294901760
    %113 = vmatpush1.msra.mxu0 %v112
    %114 = vmatprep.subr.mxu0 0.0
    %v115 = vand.u32 %v54, 4294901760
    %116 = vmatpush1.msra.mxu0 %v115
    %117 = vmatprep.subr.mxu0 0.0
    %v118 = vand.u32 %v55, 4294901760
    %119 = vmatpush1.msra.mxu0 %v118
    %120 = vmatprep.subr.mxu0 0.0
    %121 = vmatpush1.msra.mxu0 0.0
    %122 = vmatprep.subr.mxu0 0.0
    %123 = vmatpush1.msra.mxu0 0.0
    %124 = vmatprep.subr.mxu0 0.0
    %125 = vmatpush1.msra.mxu0 0.0
    %126 = vmatprep.subr.mxu0 0.0
    %127 = vmatpush1.msra.mxu0 0.0
    %128 = vmatprep.subr.mxu0 0.0
    %129 = vmatpush1.msra.mxu0 0.0
    %130 = vmatprep.subr.mxu0 0.0
    %131 = vmatpush1.msra.mxu0 0.0
    %132 = vmatprep.subr.mxu0 0.0
    %133 = vmatpush1.msra.mxu0 0.0
    %134 = vmatprep.subr.mxu0 0.0
    %135 = vmatpush1.msra.mxu0 0.0
    %136 = vmatprep.subr.mxu0 0.0
    %137 = vmatpush1.msra.mxu0 0.0
    %138 = vmatprep.subr.mxu0 0.0
    %139 = vmatpush1.msra.mxu0 0.0
    %140 = vmatprep.subr.mxu0 0.0
    %141 = vmatpush1.msra.mxu0 0.0
    %142 = vmatprep.subr.mxu0 0.0
    %143 = vmatpush1.msra.mxu0 0.0
    %144 = vmatprep.subr.mxu0 0.0
    %145 = vmatpush1.msra.mxu0 0.0
    %146 = vmatprep.subr.mxu0 0.0
    %147 = vmatpush1.msra.mxu0 0.0
    %148 = vmatprep.subr.mxu0 0.0
    %149 = vmatpush1.msra.mxu0 0.0
    %150 = vmatprep.subr.mxu0 0.0
    %151 = vmatpush1.msra.mxu0 0.0
    %152 = vmatprep.mubr.f32.mxu0 0.0
    %v153 = vand.u32 %v56, 4294901760
    %v154 = vsub.f32 %v56, %v153
    %v155 = vand.u32 %v154, 4294901760
    %v156 = vsub.f32 %v154, %v155
    %v157 = vand.u32 %v156, 4294901760
    %158 = vmatmul.mubr.f32.gmra.mrb[0].mxu0 %v157
    %v159 = vpop.f32.mrb[0].mxu0
    %v160 = vadd.f32 0.0, %v159
    %v161 = vpop.f32.mrb[0].mxu0
    %162 = vmatprep.mubr.f32.mxu0 0.0
    %v163 = vand.u32 %v57, 4294901760
    %v164 = vsub.f32 %v57, %v163
    %v165 = vand.u32 %v164, 4294901760
    %v166 = vsub.f32 %v164, %v165
    %v167 = vand.u32 %v166, 4294901760
    %168 = vmatmul.mubr.f32.gmra.mrb[0].mxu0 %v167
    %v169 = vpop.f32.mrb[0].mxu0
    %v170 = vadd.f32 0.0, %v169
    %v171 = vpop.f32.mrb[0].mxu0
    %172 = vmatprep.mubr.f32.mxu0 0.0
    %v173 = vand.u32 %v58, 4294901760
    %v174 = vsub.f32 %v58, %v173
    %v175 = vand.u32 %v174, 4294901760
    %v176 = vsub.f32 %v174, %v175
    %v177 = vand.u32 %v176, 4294901760
    %178 = vmatmul.mubr.f32.gmra.mrb[0].mxu0 %v177
    %v179 = vpop.f32.mrb[0].mxu0
    %v180 = vadd.f32 0.0, %v179
    %v181 = vpop.f32.mrb[0].mxu0
    %182 = vmatprep.mubr.f32.mxu0 0.0
    %v183 = vand.u32 %v59, 4294901760
    %v184 = vsub.f32 %v59, %v183
    %v185 = vand.u32 %v184, 4294901760
    %v186 = vsub.f32 %v184, %v185
    %v187 = vand.u32 %v186, 4294901760
    %188 = vmatmul.mubr.f32.gmra.mrb[0].mxu0 %v187
    %v189 = vpop.f32.mrb[0].mxu0
    %v190 = vadd.f32 0.0, %v189
    %v191 = vpop.f32.mrb[0].mxu0
    %192 = vmatprep.mubr.f32.mxu0 0.0
    %v193 = vand.u32 %v60, 4294901760
    %v194 = vsub.f32 %v60, %v193
    %v195 = vand.u32 %v194, 4294901760
    %v196 = vsub.f32 %v194, %v195
    %v197 = vand.u32 %v196, 4294901760
    %198 = vmatmul.mubr.f32.gmra.mrb[0].mxu0 %v197
    %v199 = vpop.f32.mrb[0].mxu0
    %v200 = vadd.f32 0.0, %v199
    %v201 = vpop.f32.mrb[0].mxu0
    %202 = vmatprep.mubr.f32.mxu0 0.0
    %v203 = vand.u32 %v61, 4294901760
    %v204 = vsub.f32 %v61, %v203
    %v205 = vand.u32 %v204, 4294901760
    %v206 = vsub.f32 %v204, %v205
    %v207 = vand.u32 %v206, 4294901760
    %208 = vmatmul.mubr.f32.gmra.mrb[0].mxu0 %v207
    %v209 = vpop.f32.mrb[0].mxu0
    %v210 = vadd.f32 0.0, %v209
    %v211 = vpop.f32.mrb[0].mxu0
    %212 = vmatprep.mubr.f32.mxu0 0.0
    %v213 = vand.u32 %v62, 4294901760
    %v214 = vsub.f32 %v62, %v213
    %v215 = vand.u32 %v214, 4294901760
    %v216 = vsub.f32 %v214, %v215
    %v217 = vand.u32 %v216, 4294901760
    %218 = vmatmul.mubr.f32.gmra.mrb[0].mxu0 %v217
    %v219 = vpop.f32.mrb[0].mxu0
    %v220 = vadd.f32 0.0, %v219
    %v221 = vpop.f32.mrb[0].mxu0
    %222 = vmatprep.mubr.f32.mxu0 0.0
    %v223 = vand.u32 %v63, 4294901760
    %v224 = vsub.f32 %v63, %v223
    %v225 = vand.u32 %v224, 4294901760
    %v226 = vsub.f32 %v224, %v225
    %v227 = vand.u32 %v226, 4294901760
    %228 = vmatmul.mubr.f32.gmra.mrb[0].mxu0 %v227
    %v229 = vpop.f32.mrb[0].mxu0
    %v230 = vadd.f32 0.0, %v229
    %v231 = vpop.f32.mrb[0].mxu0
    %232 = vmatprep.mubr.f32.mxu0 0.0
    %v233 = vand.u32 %v64, 4294901760
    %v234 = vsub.f32 %v64, %v233
    %v235 = vand.u32 %v234, 4294901760
    %v236 = vsub.f32 %v234, %v235
    %v237 = vand.u32 %v236, 4294901760
    %238 = vmatmul.mubr.f32.gmra.mrb[0].mxu0 %v237
    %v239 = vpop.f32.mrb[0].mxu0
    %v240 = vadd.f32 0.0, %v239
    %v241 = vpop.f32.mrb[0].mxu0
    %242 = vmatprep.mubr.f32.mxu0 0.0
    %v243 = vand.u32 %v65, 4294901760
    %v244 = vsub.f32 %v65, %v243
    %v245 = vand.u32 %v244, 4294901760
    %v246 = vsub.f32 %v244, %v245
    %v247 = vand.u32 %v246, 4294901760
    %248 = vmatmul.mubr.f32.gmra.mrb[0].mxu0 %v247
    %v249 = vpop.f32.mrb[0].mxu0
    %v250 = vadd.f32 0.0, %v249
    %v251 = vpop.f32.mrb[0].mxu0
    %252 = vmatprep.mubr.f32.mxu0 0.0
    %v253 = vand.u32 %v66, 4294901760
    %v254 = vsub.f32 %v66, %v253
    %v255 = vand.u32 %v254, 4294901760
    %v256 = vsub.f32 %v254, %v255
    %v257 = vand.u32 %v256, 4294901760
    %258 = vmatmul.mubr.f32.gmra.mrb[0].mxu0 %v257
    %v259 = vpop.f32.mrb[0].mxu0
    %v260 = vadd.f32 0.0, %v259
    %v261 = vpop.f32.mrb[0].mxu0
    %262 = vmatprep.mubr.f32.mxu0 0.0
    %v263 = vand.u32 %v67, 4294901760
    %v264 = vsub.f32 %v67, %v263
    %v265 = vand.u32 %v264, 4294901760
    %v266 = vsub.f32 %v264, %v265
    %v267 = vand.u32 %v266, 4294901760
    %268 = vmatmul.mubr.f32.gmra.mrb[0].mxu0 %v267
    %v269 = vpop.f32.mrb[0].mxu0
    %v270 = vadd.f32 0.0, %v269
    %v271 = vpop.f32.mrb[0].mxu0
    %272 = vmatprep.mubr.f32.mxu0 0.0
    %v273 = vand.u32 %v68, 4294901760
    %v274 = vsub.f32 %v68, %v273
    %v275 = vand.u32 %v274, 4294901760
    %v276 = vsub.f32 %v274, %v275
    %v277 = vand.u32 %v276, 4294901760
    %278 = vmatmul.mubr.f32.gmra.mrb[0].mxu0 %v277
    %v279 = vpop.f32.mrb[0].mxu0
    %v280 = vadd.f32 0.0, %v279
    %v281 = vpop.f32.mrb[0].mxu0
    %282 = vmatprep.mubr.f32.mxu0 0.0
    %v283 = vand.u32 %v69, 4294901760
    %v284 = vsub.f32 %v69, %v283
    %v285 = vand.u32 %v284, 4294901760
    %v286 = vsub.f32 %v284, %v285
    %v287 = vand.u32 %v286, 4294901760
    %288 = vmatmul.mubr.f32.gmra.mrb[0].mxu0 %v287
    %v289 = vpop.f32.mrb[0].mxu0
    %v290 = vadd.f32 0.0, %v289
    %v291 = vpop.f32.mrb[0].mxu0
    %292 = vmatprep.mubr.f32.mxu0 0.0
    %v293 = vand.u32 %v70, 4294901760
    %v294 = vsub.f32 %v70, %v293
    %v295 = vand.u32 %v294, 4294901760
    %v296 = vsub.f32 %v294, %v295
    %v297 = vand.u32 %v296, 4294901760
    %298 = vmatmul.mubr.f32.gmra.mrb[0].mxu0 %v297
    %v299 = vpop.f32.mrb[0].mxu0
    %v300 = vadd.f32 0.0, %v299
    %v301 = vpop.f32.mrb[0].mxu0
    %302 = vmatprep.mubr.f32.mxu0 0.0
    %v303 = vand.u32 %v71, 4294901760
    %v304 = vsub.f32 %v71, %v303
    %v305 = vand.u32 %v304, 4294901760
    %v306 = vsub.f32 %v304, %v305
    %v307 = vand.u32 %v306, 4294901760
    %308 = vmatmul.mubr.f32.gmra.mrb[0].mxu0 %v307
    %v309 = vpop.f32.mrb[0].mxu0
    %v310 = vadd.f32 0.0, %v309
    %v311 = vpop.f32.mrb[0].mxu0
    %312 = vdwg.mxu0
    %313 = vmatprep.subr.mxu0 0.0
    %v314 = vand.u32 %v40, 4294901760
    %v315 = vsub.f32 %v40, %v314
    %v316 = vand.u32 %v315, 4294901760
    %v317 = vsub.f32 %v315, %v316
    %v318 = vand.u32 %v317, 4294901760
    %319 = vmatpush1.msra.mxu0 %v318
    %320 = vmatprep.subr.mxu0 0.0
    %v321 = vand.u32 %v41, 4294901760
    %v322 = vsub.f32 %v41, %v321
    %v323 = vand.u32 %v322, 4294901760
    %v324 = vsub.f32 %v322, %v323
    %v325 = vand.u32 %v324, 4294901760
    %326 = vmatpush1.msra.mxu0 %v325
    %327 = vmatprep.subr.mxu0 0.0
    %v328 = vand.u32 %v42, 4294901760
    %v329 = vsub.f32 %v42, %v328
    %v330 = vand.u32 %v329, 4294901760
    %v331 = vsub.f32 %v329, %v330
    %v332 = vand.u32 %v331, 4294901760
    %333 = vmatpush1.msra.mxu0 %v332
    %334 = vmatprep.subr.mxu0 0.0
    %v335 = vand.u32 %v43, 4294901760
    %v336 = vsub.f32 %v43, %v335
    %v337 = vand.u32 %v336, 4294901760
    %v338 = vsub.f32 %v336, %v337
    %v339 = vand.u32 %v338, 4294901760
    %340 = vmatpush1.msra.mxu0 %v339
    %341 = vmatprep.subr.mxu0 0.0
    %v342 = vand.u32 %v44, 4294901760
    %v343 = vsub.f32 %v44, %v342
    %v344 = vand.u32 %v343, 4294901760
    %v345 = vsub.f32 %v343, %v344
    %v346 = vand.u32 %v345, 4294901760
    %347 = vmatpush1.msra.mxu0 %v346
    %348 = vmatprep.subr.mxu0 0.0
    %v349 = vand.u32 %v45, 4294901760
    %v350 = vsub.f32 %v45, %v349
    %v351 = vand.u32 %v350, 4294901760
    %v352 = vsub.f32 %v350, %v351
    %v353 = vand.u32 %v352, 4294901760
    %354 = vmatpush1.msra.mxu0 %v353
    %355 = vmatprep.subr.mxu0 0.0
    %v356 = vand.u32 %v46, 4294901760
    %v357 = vsub.f32 %v46, %v356
    %v358 = vand.u32 %v357, 4294901760
    %v359 = vsub.f32 %v357, %v358
    %v360 = vand.u32 %v359, 4294901760
    %361 = vmatpush1.msra.mxu0 %v360
    %362 = vmatprep.subr.mxu0 0.0
    %v363 = vand.u32 %v47, 4294901760
    %v364 = vsub.f32 %v47, %v363
    %v365 = vand.u32 %v364, 4294901760
    %v366 = vsub.f32 %v364, %v365
    %v367 = vand.u32 %v366, 4294901760
    %368 = vmatpush1.msra.mxu0 %v367
    %369 = vmatprep.subr.mxu0 0.0
    %v370 = vand.u32 %v48, 4294901760
    %v371 = vsub.f32 %v48, %v370
    %v372 = vand.u32 %v371, 4294901760
    %v373 = vsub.f32 %v371, %v372
    %v374 = vand.u32 %v373, 4294901760
    %375 = vmatpush1.msra.mxu0 %v374
    %376 = vmatprep.subr.mxu0 0.0
    %v377 = vand.u32 %v49, 4294901760
    %v378 = vsub.f32 %v49, %v377
    %v379 = vand.u32 %v378, 4294901760
    %v380 = vsub.f32 %v378, %v379
    %v381 = vand.u32 %v380, 4294901760
    %382 = vmatpush1.msra.mxu0 %v381
    %383 = vmatprep.subr.mxu0 0.0
    %v384 = vand.u32 %v50, 4294901760
    %v385 = vsub.f32 %v50, %v384
    %v386 = vand.u32 %v385, 4294901760
    %v387 = vsub.f32 %v385, %v386
    %v388 = vand.u32 %v387, 4294901760
    %389 = vmatpush1.msra.mxu0 %v388
    %390 = vmatprep.subr.mxu0 0.0
    %v391 = vand.u32 %v51, 4294901760
    %v392 = vsub.f32 %v51, %v391
    %v393 = vand.u32 %v392, 4294901760
    %v394 = vsub.f32 %v392, %v393
    %v395 = vand.u32 %v394, 4294901760
    %396 = vmatpush1.msra.mxu0 %v395
    %397 = vmatprep.subr.mxu0 0.0
    %v398 = vand.u32 %v52, 4294901760
    %v399 = vsub.f32 %v52, %v398
    %v400 = vand.u32 %v399, 4294901760
    %v401 = vsub.f32 %v399, %v400
    %v402 = vand.u32 %v401, 4294901760
    %403 = vmatpush1.msra.mxu0 %v402
    %404 = vmatprep.subr.mxu0 0.0
    %v405 = vand.u32 %v53, 4294901760
    %v406 = vsub.f32 %v53, %v405
    %v407 = vand.u32 %v406, 4294901760
    %v408 = vsub.f32 %v406, %v407
    %v409 = vand.u32 %v408, 4294901760
    %410 = vmatpush1.msra.mxu0 %v409
    %411 = vmatprep.subr.mxu0 0.0
    %v412 = vand.u32 %v54, 4294901760
    %v413 = vsub.f32 %v54, %v412
    %v414 = vand.u32 %v413, 4294901760
    %v415 = vsub.f32 %v413, %v414
    %v416 = vand.u32 %v415, 4294901760
    %417 = vmatpush1.msra.mxu0 %v416
    %418 = vmatprep.subr.mxu0 0.0
    %v419 = vand.u32 %v55, 4294901760
    %v420 = vsub.f32 %v55, %v419
    %v421 = vand.u32 %v420, 4294901760
    %v422 = vsub.f32 %v420, %v421
    %v423 = vand.u32 %v422, 4294901760
    %424 = vmatpush1.msra.mxu0 %v423
    %425 = vmatprep.subr.mxu0 0.0
    %426 = vmatpush1.msra.mxu0 0.0
    %427 = vmatprep.subr.mxu0 0.0
    %428 = vmatpush1.msra.mxu0 0.0
    %429 = vmatprep.subr.mxu0 0.0
    %430 = vmatpush1.msra.mxu0 0.0
    %431 = vmatprep.subr.mxu0 0.0
    %432 = vmatpush1.msra.mxu0 0.0
    %433 = vmatprep.subr.mxu0 0.0
    %434 = vmatpush1.msra.mxu0 0.0
    %435 = vmatprep.subr.mxu0 0.0
    %436 = vmatpush1.msra.mxu0 0.0
    %437 = vmatprep.subr.mxu0 0.0
    %438 = vmatpush1.msra.mxu0 0.0
    %439 = vmatprep.subr.mxu0 0.0
    %440 = vmatpush1.msra.mxu0 0.0
    %441 = vmatprep.subr.mxu0 0.0
    %442 = vmatpush1.msra.mxu0 0.0
    %443 = vmatprep.subr.mxu0 0.0
    %444 = vmatpush1.msra.mxu0 0.0
    %445 = vmatprep.subr.mxu0 0.0
    %446 = vmatpush1.msra.mxu0 0.0
    %447 = vmatprep.subr.mxu0 0.0
    %448 = vmatpush1.msra.mxu0 0.0
    %449 = vmatprep.subr.mxu0 0.0
    %450 = vmatpush1.msra.mxu0 0.0
    %451 = vmatprep.subr.mxu0 0.0
    %452 = vmatpush1.msra.mxu0 0.0
    %453 = vmatprep.subr.mxu0 0.0
    %454 = vmatpush1.msra.mxu0 0.0
    %455 = vmatprep.subr.mxu0 0.0
    %456 = vmatpush1.msra.mxu0 0.0
    %457 = vmatprep.mubr.f32.mxu0 0.0
    %v458 = vand.u32 %v56, 4294901760
    %459 = vmatmul.mubr.f32.gmra.mrb[0].mxu0 %v458
    %v460 = vpop.f32.mrb[0].mxu0
    %v461 = vadd.f32 %v160, %v460
    %v462 = vpop.f32.mrb[0].mxu0
    %463 = vmatprep.mubr.f32.mxu0 0.0
    %v464 = vand.u32 %v57, 4294901760
    %465 = vmatmul.mubr.f32.gmra.mrb[0].mxu0 %v464
    %v466 = vpop.f32.mrb[0].mxu0
    %v467 = vadd.f32 %v170, %v466
    %v468 = vpop.f32.mrb[0].mxu0
    %469 = vmatprep.mubr.f32.mxu0 0.0
    %v470 = vand.u32 %v58, 4294901760
    %471 = vmatmul.mubr.f32.gmra.mrb[0].mxu0 %v470
    %v472 = vpop.f32.mrb[0].mxu0
    %v473 = vadd.f32 %v180, %v472
    %v474 = vpop.f32.mrb[0].mxu0
    %475 = vmatprep.mubr.f32.mxu0 0.0
    %v476 = vand.u32 %v59, 4294901760
    %477 = vmatmul.mubr.f32.gmra.mrb[0].mxu0 %v476
    %v478 = vpop.f32.mrb[0].mxu0
    %v479 = vadd.f32 %v190, %v478
    %v480 = vpop.f32.mrb[0].mxu0
    %481 = vmatprep.mubr.f32.mxu0 0.0
    %v482 = vand.u32 %v60, 4294901760
    %483 = vmatmul.mubr.f32.gmra.mrb[0].mxu0 %v482
    %v484 = vpop.f32.mrb[0].mxu0
    %v485 = vadd.f32 %v200, %v484
    %v486 = vpop.f32.mrb[0].mxu0
    %487 = vmatprep.mubr.f32.mxu0 0.0
    %v488 = vand.u32 %v61, 4294901760
    %489 = vmatmul.mubr.f32.gmra.mrb[0].mxu0 %v488
    %v490 = vpop.f32.mrb[0].mxu0
    %v491 = vadd.f32 %v210, %v490
    %v492 = vpop.f32.mrb[0].mxu0
    %493 = vmatprep.mubr.f32.mxu0 0.0
    %v494 = vand.u32 %v62, 4294901760
    %495 = vmatmul.mubr.f32.gmra.mrb[0].mxu0 %v494
    %v496 = vpop.f32.mrb[0].mxu0
    %v497 = vadd.f32 %v220, %v496
    %v498 = vpop.f32.mrb[0].mxu0
    %499 = vmatprep.mubr.f32.mxu0 0.0
    %v500 = vand.u32 %v63, 4294901760
    %501 = vmatmul.mubr.f32.gmra.mrb[0].mxu0 %v500
    %v502 = vpop.f32.mrb[0].mxu0
    %v503 = vadd.f32 %v230, %v502
    %v504 = vpop.f32.mrb[0].mxu0
    %505 = vmatprep.mubr.f32.mxu0 0.0
    %v506 = vand.u32 %v64, 4294901760
    %507 = vmatmul.mubr.f32.gmra.mrb[0].mxu0 %v506
    %v508 = vpop.f32.mrb[0].mxu0
    %v509 = vadd.f32 %v240, %v508
    %v510 = vpop.f32.mrb[0].mxu0
    %511 = vmatprep.mubr.f32.mxu0 0.0
    %v512 = vand.u32 %v65, 4294901760
    %513 = vmatmul.mubr.f32.gmra.mrb[0].mxu0 %v512
    %v514 = vpop.f32.mrb[0].mxu0
    %v515 = vadd.f32 %v250, %v514
    %v516 = vpop.f32.mrb[0].mxu0
    %517 = vmatprep.mubr.f32.mxu0 0.0
    %v518 = vand.u32 %v66, 4294901760
    %519 = vmatmul.mubr.f32.gmra.mrb[0].mxu0 %v518
    %v520 = vpop.f32.mrb[0].mxu0
    %v521 = vadd.f32 %v260, %v520
    %v522 = vpop.f32.mrb[0].mxu0
    %523 = vmatprep.mubr.f32.mxu0 0.0
    %v524 = vand.u32 %v67, 4294901760
    %525 = vmatmul.mubr.f32.gmra.mrb[0].mxu0 %v524
    %v526 = vpop.f32.mrb[0].mxu0
    %v527 = vadd.f32 %v270, %v526
    %v528 = vpop.f32.mrb[0].mxu0
    %529 = vmatprep.mubr.f32.mxu0 0.0
    %v530 = vand.u32 %v68, 4294901760
    %531 = vmatmul.mubr.f32.gmra.mrb[0].mxu0 %v530
    %v532 = vpop.f32.mrb[0].mxu0
    %v533 = vadd.f32 %v280, %v532
    %v534 = vpop.f32.mrb[0].mxu0
    %535 = vmatprep.mubr.f32.mxu0 0.0
    %v536 = vand.u32 %v69, 4294901760
    %537 = vmatmul.mubr.f32.gmra.mrb[0].mxu0 %v536
    %v538 = vpop.f32.mrb[0].mxu0
    %v539 = vadd.f32 %v290, %v538
    %v540 = vpop.f32.mrb[0].mxu0
    %541 = vmatprep.mubr.f32.mxu0 0.0
    %v542 = vand.u32 %v70, 4294901760
    %543 = vmatmul.mubr.f32.gmra.mrb[0].mxu0 %v542
    %v544 = vpop.f32.mrb[0].mxu0
    %v545 = vadd.f32 %v300, %v544
    %v546 = vpop.f32.mrb[0].mxu0
    %547 = vmatprep.mubr.f32.mxu0 0.0
    %v548 = vand.u32 %v71, 4294901760
    %549 = vmatmul.mubr.f32.gmra.mrb[0].mxu0 %v548
    %v550 = vpop.f32.mrb[0].mxu0
    %v551 = vadd.f32 %v310, %v550
    %v552 = vpop.f32.mrb[0].mxu0
    %553 = vdwg.mxu0
    %554 = vmatprep.subr.mxu0 0.0
    %v555 = vand.u32 %v40, 4294901760
    %v556 = vsub.f32 %v40, %v555
    %557 = vmatpush1.msra.mxu0 %v556
    %558 = vmatprep.subr.mxu0 0.0
    %v559 = vand.u32 %v41, 4294901760
    %v560 = vsub.f32 %v41, %v559
    %561 = vmatpush1.msra.mxu0 %v560
    %562 = vmatprep.subr.mxu0 0.0
    %v563 = vand.u32 %v42, 4294901760
    %v564 = vsub.f32 %v42, %v563
    %565 = vmatpush1.msra.mxu0 %v564
    %566 = vmatprep.subr.mxu0 0.0
    %v567 = vand.u32 %v43, 4294901760
    %v568 = vsub.f32 %v43, %v567
    %569 = vmatpush1.msra.mxu0 %v568
    %570 = vmatprep.subr.mxu0 0.0
    %v571 = vand.u32 %v44, 4294901760
    %v572 = vsub.f32 %v44, %v571
    %573 = vmatpush1.msra.mxu0 %v572
    %574 = vmatprep.subr.mxu0 0.0
    %v575 = vand.u32 %v45, 4294901760
    %v576 = vsub.f32 %v45, %v575
    %577 = vmatpush1.msra.mxu0 %v576
    %578 = vmatprep.subr.mxu0 0.0
    %v579 = vand.u32 %v46, 4294901760
    %v580 = vsub.f32 %v46, %v579
    %581 = vmatpush1.msra.mxu0 %v580
    %582 = vmatprep.subr.mxu0 0.0
    %v583 = vand.u32 %v47, 4294901760
    %v584 = vsub.f32 %v47, %v583
    %585 = vmatpush1.msra.mxu0 %v584
    %586 = vmatprep.subr.mxu0 0.0
    %v587 = vand.u32 %v48, 4294901760
    %v588 = vsub.f32 %v48, %v587
    %589 = vmatpush1.msra.mxu0 %v588
    %590 = vmatprep.subr.mxu0 0.0
    %v591 = vand.u32 %v49, 4294901760
    %v592 = vsub.f32 %v49, %v591
    %593 = vmatpush1.msra.mxu0 %v592
    %594 = vmatprep.subr.mxu0 0.0
    %v595 = vand.u32 %v50, 4294901760
    %v596 = vsub.f32 %v50, %v595
    %597 = vmatpush1.msra.mxu0 %v596
    %598 = vmatprep.subr.mxu0 0.0
    %v599 = vand.u32 %v51, 4294901760
    %v600 = vsub.f32 %v51, %v599
    %601 = vmatpush1.msra.mxu0 %v600
    %602 = vmatprep.subr.mxu0 0.0
    %v603 = vand.u32 %v52, 4294901760
    %v604 = vsub.f32 %v52, %v603
    %605 = vmatpush1.msra.mxu0 %v604
    %606 = vmatprep.subr.mxu0 0.0
    %v607 = vand.u32 %v53, 4294901760
    %v608 = vsub.f32 %v53, %v607
    %609 = vmatpush1.msra.mxu0 %v608
    %610 = vmatprep.subr.mxu0 0.0
    %v611 = vand.u32 %v54, 4294901760
    %v612 = vsub.f32 %v54, %v611
    %613 = vmatpush1.msra.mxu0 %v612
    %614 = vmatprep.subr.mxu0 0.0
    %v615 = vand.u32 %v55, 4294901760
    %v616 = vsub.f32 %v55, %v615
    %617 = vmatpush1.msra.mxu0 %v616
    %618 = vmatprep.subr.mxu0 0.0
    %619 = vmatpush1.msra.mxu0 0.0
    %620 = vmatprep.subr.mxu0 0.0
    %621 = vmatpush1.msra.mxu0 0.0
    %622 = vmatprep.subr.mxu0 0.0
    %623 = vmatpush1.msra.mxu0 0.0
    %624 = vmatprep.subr.mxu0 0.0
    %625 = vmatpush1.msra.mxu0 0.0
    %626 = vmatprep.subr.mxu0 0.0
    %627 = vmatpush1.msra.mxu0 0.0
    %628 = vmatprep.subr.mxu0 0.0
    %629 = vmatpush1.msra.mxu0 0.0
    %630 = vmatprep.subr.mxu0 0.0
    %631 = vmatpush1.msra.mxu0 0.0
    %632 = vmatprep.subr.mxu0 0.0
    %633 = vmatpush1.msra.mxu0 0.0
    %634 = vmatprep.subr.mxu0 0.0
    %635 = vmatpush1.msra.mxu0 0.0
    %636 = vmatprep.subr.mxu0 0.0
    %637 = vmatpush1.msra.mxu0 0.0
    %638 = vmatprep.subr.mxu0 0.0
    %639 = vmatpush1.msra.mxu0 0.0
    %640 = vmatprep.subr.mxu0 0.0
    %641 = vmatpush1.msra.mxu0 0.0
    %642 = vmatprep.subr.mxu0 0.0
    %643 = vmatpush1.msra.mxu0 0.0
    %644 = vmatprep.subr.mxu0 0.0
    %645 = vmatpush1.msra.mxu0 0.0
    %646 = vmatprep.subr.mxu0 0.0
    %647 = vmatpush1.msra.mxu0 0.0
    %648 = vmatprep.subr.mxu0 0.0
    %649 = vmatpush1.msra.mxu0 0.0
    %650 = vmatprep.mubr.f32.mxu0 0.0
    %v651 = vand.u32 %v56, 4294901760
    %v652 = vsub.f32 %v56, %v651
    %653 = vmatmul.mubr.f32.gmra.mrb[0].mxu0 %v652
    %v654 = vpop.f32.mrb[0].mxu0
    %v655 = vadd.f32 %v461, %v654
    %v656 = vpop.f32.mrb[0].mxu0
    %657 = vmatprep.mubr.f32.mxu0 0.0
    %v658 = vand.u32 %v57, 4294901760
    %v659 = vsub.f32 %v57, %v658
    %660 = vmatmul.mubr.f32.gmra.mrb[0].mxu0 %v659
    %v661 = vpop.f32.mrb[0].mxu0
    %v662 = vadd.f32 %v467, %v661
    %v663 = vpop.f32.mrb[0].mxu0
    %664 = vmatprep.mubr.f32.mxu0 0.0
    %v665 = vand.u32 %v58, 4294901760
    %v666 = vsub.f32 %v58, %v665
    %667 = vmatmul.mubr.f32.gmra.mrb[0].mxu0 %v666
    %v668 = vpop.f32.mrb[0].mxu0
    %v669 = vadd.f32 %v473, %v668
    %v670 = vpop.f32.mrb[0].mxu0
    %671 = vmatprep.mubr.f32.mxu0 0.0
    %v672 = vand.u32 %v59, 4294901760
    %v673 = vsub.f32 %v59, %v672
    %674 = vmatmul.mubr.f32.gmra.mrb[0].mxu0 %v673
    %v675 = vpop.f32.mrb[0].mxu0
    %v676 = vadd.f32 %v479, %v675
    %v677 = vpop.f32.mrb[0].mxu0
    %678 = vmatprep.mubr.f32.mxu0 0.0
    %v679 = vand.u32 %v60, 4294901760
    %v680 = vsub.f32 %v60, %v679
    %681 = vmatmul.mubr.f32.gmra.mrb[0].mxu0 %v680
    %v682 = vpop.f32.mrb[0].mxu0
    %v683 = vadd.f32 %v485, %v682
    %v684 = vpop.f32.mrb[0].mxu0
    %685 = vmatprep.mubr.f32.mxu0 0.0
    %v686 = vand.u32 %v61, 4294901760
    %v687 = vsub.f32 %v61, %v686
    %688 = vmatmul.mubr.f32.gmra.mrb[0].mxu0 %v687
    %v689 = vpop.f32.mrb[0].mxu0
    %v690 = vadd.f32 %v491, %v689
    %v691 = vpop.f32.mrb[0].mxu0
    %692 = vmatprep.mubr.f32.mxu0 0.0
    %v693 = vand.u32 %v62, 4294901760
    %v694 = vsub.f32 %v62, %v693
    %695 = vmatmul.mubr.f32.gmra.mrb[0].mxu0 %v694
    %v696 = vpop.f32.mrb[0].mxu0
    %v697 = vadd.f32 %v497, %v696
    %v698 = vpop.f32.mrb[0].mxu0
    %699 = vmatprep.mubr.f32.mxu0 0.0
    %v700 = vand.u32 %v63, 4294901760
    %v701 = vsub.f32 %v63, %v700
    %702 = vmatmul.mubr.f32.gmra.mrb[0].mxu0 %v701
    %v703 = vpop.f32.mrb[0].mxu0
    %v704 = vadd.f32 %v503, %v703
    %v705 = vpop.f32.mrb[0].mxu0
    %706 = vmatprep.mubr.f32.mxu0 0.0
    %v707 = vand.u32 %v64, 4294901760
    %v708 = vsub.f32 %v64, %v707
    %709 = vmatmul.mubr.f32.gmra.mrb[0].mxu0 %v708
    %v710 = vpop.f32.mrb[0].mxu0
    %v711 = vadd.f32 %v509, %v710
    %v712 = vpop.f32.mrb[0].mxu0
    %713 = vmatprep.mubr.f32.mxu0 0.0
    %v714 = vand.u32 %v65, 4294901760
    %v715 = vsub.f32 %v65, %v714
    %716 = vmatmul.mubr.f32.gmra.mrb[0].mxu0 %v715
    %v717 = vpop.f32.mrb[0].mxu0
    %v718 = vadd.f32 %v515, %v717
    %v719 = vpop.f32.mrb[0].mxu0
    %720 = vmatprep.mubr.f32.mxu0 0.0
    %v721 = vand.u32 %v66, 4294901760
    %v722 = vsub.f32 %v66, %v721
    %723 = vmatmul.mubr.f32.gmra.mrb[0].mxu0 %v722
    %v724 = vpop.f32.mrb[0].mxu0
    %v725 = vadd.f32 %v521, %v724
    %v726 = vpop.f32.mrb[0].mxu0
    %727 = vmatprep.mubr.f32.mxu0 0.0
    %v728 = vand.u32 %v67, 4294901760
    %v729 = vsub.f32 %v67, %v728
    %730 = vmatmul.mubr.f32.gmra.mrb[0].mxu0 %v729
    %v731 = vpop.f32.mrb[0].mxu0
    %v732 = vadd.f32 %v527, %v731
    %v733 = vpop.f32.mrb[0].mxu0
    %734 = vmatprep.mubr.f32.mxu0 0.0
    %v735 = vand.u32 %v68, 4294901760
    %v736 = vsub.f32 %v68, %v735
    %737 = vmatmul.mubr.f32.gmra.mrb[0].mxu0 %v736
    %v738 = vpop.f32.mrb[0].mxu0
    %v739 = vadd.f32 %v533, %v738
    %v740 = vpop.f32.mrb[0].mxu0
    %741 = vmatprep.mubr.f32.mxu0 0.0
    %v742 = vand.u32 %v69, 4294901760
    %v743 = vsub.f32 %v69, %v742
    %744 = vmatmul.mubr.f32.gmra.mrb[0].mxu0 %v743
    %v745 = vpop.f32.mrb[0].mxu0
    %v746 = vadd.f32 %v539, %v745
    %v747 = vpop.f32.mrb[0].mxu0
    %748 = vmatprep.mubr.f32.mxu0 0.0
    %v749 = vand.u32 %v70, 4294901760
    %v750 = vsub.f32 %v70, %v749
    %751 = vmatmul.mubr.f32.gmra.mrb[0].mxu0 %v750
    %v752 = vpop.f32.mrb[0].mxu0
    %v753 = vadd.f32 %v545, %v752
    %v754 = vpop.f32.mrb[0].mxu0
    %755 = vmatprep.mubr.f32.mxu0 0.0
    %v756 = vand.u32 %v71, 4294901760
    %v757 = vsub.f32 %v71, %v756
    %758 = vmatmul.mubr.f32.gmra.mrb[0].mxu0 %v757
    %v759 = vpop.f32.mrb[0].mxu0
    %v760 = vadd.f32 %v551, %v759
    %v761 = vpop.f32.mrb[0].mxu0
    %762 = vdwg.mxu0
    %763 = vmatprep.subr.mxu0 0.0
    %v764 = vand.u32 %v40, 4294901760
    %765 = vmatpush1.msra.mxu0 %v764
    %766 = vmatprep.subr.mxu0 0.0
    %v767 = vand.u32 %v41, 4294901760
    %768 = vmatpush1.msra.mxu0 %v767
    %769 = vmatprep.subr.mxu0 0.0
    %v770 = vand.u32 %v42, 4294901760
    %771 = vmatpush1.msra.mxu0 %v770
    %772 = vmatprep.subr.mxu0 0.0
    %v773 = vand.u32 %v43, 4294901760
    %774 = vmatpush1.msra.mxu0 %v773
    %775 = vmatprep.subr.mxu0 0.0
    %v776 = vand.u32 %v44, 4294901760
    %777 = vmatpush1.msra.mxu0 %v776
    %778 = vmatprep.subr.mxu0 0.0
    %v779 = vand.u32 %v45, 4294901760
    %780 = vmatpush1.msra.mxu0 %v779
    %781 = vmatprep.subr.mxu0 0.0
    %v782 = vand.u32 %v46, 4294901760
    %783 = vmatpush1.msra.mxu0 %v782
    %784 = vmatprep.subr.mxu0 0.0
    %v785 = vand.u32 %v47, 4294901760
    %786 = vmatpush1.msra.mxu0 %v785
    %787 = vmatprep.subr.mxu0 0.0
    %v788 = vand.u32 %v48, 4294901760
    %789 = vmatpush1.msra.mxu0 %v788
    %790 = vmatprep.subr.mxu0 0.0
    %v791 = vand.u32 %v49, 4294901760
    %792 = vmatpush1.msra.mxu0 %v791
    %793 = vmatprep.subr.mxu0 0.0
    %v794 = vand.u32 %v50, 4294901760
    %795 = vmatpush1.msra.mxu0 %v794
    %796 = vmatprep.subr.mxu0 0.0
    %v797 = vand.u32 %v51, 4294901760
    %798 = vmatpush1.msra.mxu0 %v797
    %799 = vmatprep.subr.mxu0 0.0
    %v800 = vand.u32 %v52, 4294901760
    %801 = vmatpush1.msra.mxu0 %v800
    %802 = vmatprep.subr.mxu0 0.0
    %v803 = vand.u32 %v53, 4294901760
    %804 = vmatpush1.msra.mxu0 %v803
    %805 = vmatprep.subr.mxu0 0.0
    %v806 = vand.u32 %v54, 4294901760
    %807 = vmatpush1.msra.mxu0 %v806
    %808 = vmatprep.subr.mxu0 0.0
    %v809 = vand.u32 %v55, 4294901760
    %810 = vmatpush1.msra.mxu0 %v809
    %811 = vmatprep.subr.mxu0 0.0
    %812 = vmatpush1.msra.mxu0 0.0
    %813 = vmatprep.subr.mxu0 0.0
    %814 = vmatpush1.msra.mxu0 0.0
    %815 = vmatprep.subr.mxu0 0.0
    %816 = vmatpush1.msra.mxu0 0.0
    %817 = vmatprep.subr.mxu0 0.0
    %818 = vmatpush1.msra.mxu0 0.0
    %819 = vmatprep.subr.mxu0 0.0
    %820 = vmatpush1.msra.mxu0 0.0
    %821 = vmatprep.subr.mxu0 0.0
    %822 = vmatpush1.msra.mxu0 0.0
    %823 = vmatprep.subr.mxu0 0.0
    %824 = vmatpush1.msra.mxu0 0.0
    %825 = vmatprep.subr.mxu0 0.0
    %826 = vmatpush1.msra.mxu0 0.0
    %827 = vmatprep.subr.mxu0 0.0
    %828 = vmatpush1.msra.mxu0 0.0
    %829 = vmatprep.subr.mxu0 0.0
    %830 = vmatpush1.msra.mxu0 0.0
    %831 = vmatprep.subr.mxu0 0.0
    %832 = vmatpush1.msra.mxu0 0.0
    %833 = vmatprep.subr.mxu0 0.0
    %834 = vmatpush1.msra.mxu0 0.0
    %835 = vmatprep.subr.mxu0 0.0
    %836 = vmatpush1.msra.mxu0 0.0
    %837 = vmatprep.subr.mxu0 0.0
    %838 = vmatpush1.msra.mxu0 0.0
    %839 = vmatprep.subr.mxu0 0.0
    %840 = vmatpush1.msra.mxu0 0.0
    %841 = vmatprep.subr.mxu0 0.0
    %842 = vmatpush1.msra.mxu0 0.0
    %843 = vmatprep.mubr.f32.mxu0 0.0
    %v844 = vand.u32 %v56, 4294901760
    %v845 = vsub.f32 %v56, %v844
    %v846 = vand.u32 %v845, 4294901760
    %847 = vmatmul.mubr.f32.gmra.mrb[0].mxu0 %v846
    %v848 = vpop.f32.mrb[0].mxu0
    %v849 = vadd.f32 %v655, %v848
    %v850 = vpop.f32.mrb[0].mxu0
    %851 = vmatprep.mubr.f32.mxu0 0.0
    %v852 = vand.u32 %v57, 4294901760
    %v853 = vsub.f32 %v57, %v852
    %v854 = vand.u32 %v853, 4294901760
    %855 = vmatmul.mubr.f32.gmra.mrb[0].mxu0 %v854
    %v856 = vpop.f32.mrb[0].mxu0
    %v857 = vadd.f32 %v662, %v856
    %v858 = vpop.f32.mrb[0].mxu0
    %859 = vmatprep.mubr.f32.mxu0 0.0
    %v860 = vand.u32 %v58, 4294901760
    %v861 = vsub.f32 %v58, %v860
    %v862 = vand.u32 %v861, 4294901760
    %863 = vmatmul.mubr.f32.gmra.mrb[0].mxu0 %v862
    %v864 = vpop.f32.mrb[0].mxu0
    %v865 = vadd.f32 %v669, %v864
    %v866 = vpop.f32.mrb[0].mxu0
    %867 = vmatprep.mubr.f32.mxu0 0.0
    %v868 = vand.u32 %v59, 4294901760
    %v869 = vsub.f32 %v59, %v868
    %v870 = vand.u32 %v869, 4294901760
    %871 = vmatmul.mubr.f32.gmra.mrb[0].mxu0 %v870
    %v872 = vpop.f32.mrb[0].mxu0
    %v873 = vadd.f32 %v676, %v872
    %v874 = vpop.f32.mrb[0].mxu0
    %875 = vmatprep.mubr.f32.mxu0 0.0
    %v876 = vand.u32 %v60, 4294901760
    %v877 = vsub.f32 %v60, %v876
    %v878 = vand.u32 %v877, 4294901760
    %879 = vmatmul.mubr.f32.gmra.mrb[0].mxu0 %v878
    %v880 = vpop.f32.mrb[0].mxu0
    %v881 = vadd.f32 %v683, %v880
    %v882 = vpop.f32.mrb[0].mxu0
    %883 = vmatprep.mubr.f32.mxu0 0.0
    %v884 = vand.u32 %v61, 4294901760
    %v885 = vsub.f32 %v61, %v884
    %v886 = vand.u32 %v885, 4294901760
    %887 = vmatmul.mubr.f32.gmra.mrb[0].mxu0 %v886
    %v888 = vpop.f32.mrb[0].mxu0
    %v889 = vadd.f32 %v690, %v888
    %v890 = vpop.f32.mrb[0].mxu0
    %891 = vmatprep.mubr.f32.mxu0 0.0
    %v892 = vand.u32 %v62, 4294901760
    %v893 = vsub.f32 %v62, %v892
    %v894 = vand.u32 %v893, 4294901760
    %895 = vmatmul.mubr.f32.gmra.mrb[0].mxu0 %v894
    %v896 = vpop.f32.mrb[0].mxu0
    %v897 = vadd.f32 %v697, %v896
    %v898 = vpop.f32.mrb[0].mxu0
    %899 = vmatprep.mubr.f32.mxu0 0.0
    %v900 = vand.u32 %v63, 4294901760
    %v901 = vsub.f32 %v63, %v900
    %v902 = vand.u32 %v901, 4294901760
    %903 = vmatmul.mubr.f32.gmra.mrb[0].mxu0 %v902
    %v904 = vpop.f32.mrb[0].mxu0
    %v905 = vadd.f32 %v704, %v904
    %v906 = vpop.f32.mrb[0].mxu0
    %907 = vmatprep.mubr.f32.mxu0 0.0
    %v908 = vand.u32 %v64, 4294901760
    %v909 = vsub.f32 %v64, %v908
    %v910 = vand.u32 %v909, 4294901760
    %911 = vmatmul.mubr.f32.gmra.mrb[0].mxu0 %v910
    %v912 = vpop.f32.mrb[0].mxu0
    %v913 = vadd.f32 %v711, %v912
    %v914 = vpop.f32.mrb[0].mxu0
    %915 = vmatprep.mubr.f32.mxu0 0.0
    %v916 = vand.u32 %v65, 4294901760
    %v917 = vsub.f32 %v65, %v916
    %v918 = vand.u32 %v917, 4294901760
    %919 = vmatmul.mubr.f32.gmra.mrb[0].mxu0 %v918
    %v920 = vpop.f32.mrb[0].mxu0
    %v921 = vadd.f32 %v718, %v920
    %v922 = vpop.f32.mrb[0].mxu0
    %923 = vmatprep.mubr.f32.mxu0 0.0
    %v924 = vand.u32 %v66, 4294901760
    %v925 = vsub.f32 %v66, %v924
    %v926 = vand.u32 %v925, 4294901760
    %927 = vmatmul.mubr.f32.gmra.mrb[0].mxu0 %v926
    %v928 = vpop.f32.mrb[0].mxu0
    %v929 = vadd.f32 %v725, %v928
    %v930 = vpop.f32.mrb[0].mxu0
    %931 = vmatprep.mubr.f32.mxu0 0.0
    %v932 = vand.u32 %v67, 4294901760
    %v933 = vsub.f32 %v67, %v932
    %v934 = vand.u32 %v933, 4294901760
    %935 = vmatmul.mubr.f32.gmra.mrb[0].mxu0 %v934
    %v936 = vpop.f32.mrb[0].mxu0
    %v937 = vadd.f32 %v732, %v936
    %v938 = vpop.f32.mrb[0].mxu0
    %939 = vmatprep.mubr.f32.mxu0 0.0
    %v940 = vand.u32 %v68, 4294901760
    %v941 = vsub.f32 %v68, %v940
    %v942 = vand.u32 %v941, 4294901760
    %943 = vmatmul.mubr.f32.gmra.mrb[0].mxu0 %v942
    %v944 = vpop.f32.mrb[0].mxu0
    %v945 = vadd.f32 %v739, %v944
    %v946 = vpop.f32.mrb[0].mxu0
    %947 = vmatprep.mubr.f32.mxu0 0.0
    %v948 = vand.u32 %v69, 4294901760
    %v949 = vsub.f32 %v69, %v948
    %v950 = vand.u32 %v949, 4294901760
    %951 = vmatmul.mubr.f32.gmra.mrb[0].mxu0 %v950
    %v952 = vpop.f32.mrb[0].mxu0
    %v953 = vadd.f32 %v746, %v952
    %v954 = vpop.f32.mrb[0].mxu0
    %955 = vmatprep.mubr.f32.mxu0 0.0
    %v956 = vand.u32 %v70, 4294901760
    %v957 = vsub.f32 %v70, %v956
    %v958 = vand.u32 %v957, 4294901760
    %959 = vmatmul.mubr.f32.gmra.mrb[0].mxu0 %v958
    %v960 = vpop.f32.mrb[0].mxu0
    %v961 = vadd.f32 %v753, %v960
    %v962 = vpop.f32.mrb[0].mxu0
    %963 = vmatprep.mubr.f32.mxu0 0.0
    %v964 = vand.u32 %v71, 4294901760
    %v965 = vsub.f32 %v71, %v964
    %v966 = vand.u32 %v965, 4294901760
    %967 = vmatmul.mubr.f32.gmra.mrb[0].mxu0 %v966
    %v968 = vpop.f32.mrb[0].mxu0
    %v969 = vadd.f32 %v760, %v968
    %v970 = vpop.f32.mrb[0].mxu0
    %971 = vdwg.mxu0
    %972 = vmatprep.subr.mxu0 0.0
    %v973 = vand.u32 %v40, 4294901760
    %v974 = vsub.f32 %v40, %v973
    %v975 = vand.u32 %v974, 4294901760
    %976 = vmatpush1.msra.mxu0 %v975
    %977 = vmatprep.subr.mxu0 0.0
    %v978 = vand.u32 %v41, 4294901760
    %v979 = vsub.f32 %v41, %v978
    %v980 = vand.u32 %v979, 4294901760
    %981 = vmatpush1.msra.mxu0 %v980
    %982 = vmatprep.subr.mxu0 0.0
    %v983 = vand.u32 %v42, 4294901760
    %v984 = vsub.f32 %v42, %v983
    %v985 = vand.u32 %v984, 4294901760
    %986 = vmatpush1.msra.mxu0 %v985
    %987 = vmatprep.subr.mxu0 0.0
    %v988 = vand.u32 %v43, 4294901760
    %v989 = vsub.f32 %v43, %v988
    %v990 = vand.u32 %v989, 4294901760
    %991 = vmatpush1.msra.mxu0 %v990
    %992 = vmatprep.subr.mxu0 0.0
    %v993 = vand.u32 %v44, 4294901760
    %v994 = vsub.f32 %v44, %v993
    %v995 = vand.u32 %v994, 4294901760
    %996 = vmatpush1.msra.mxu0 %v995
    %997 = vmatprep.subr.mxu0 0.0
    %v998 = vand.u32 %v45, 4294901760
    %v999 = vsub.f32 %v45, %v998
    %v1000 = vand.u32 %v999, 4294901760
    %1001 = vmatpush1.msra.mxu0 %v1000
    %1002 = vmatprep.subr.mxu0 0.0
    %v1003 = vand.u32 %v46, 4294901760
    %v1004 = vsub.f32 %v46, %v1003
    %v1005 = vand.u32 %v1004, 4294901760
    %1006 = vmatpush1.msra.mxu0 %v1005
    %1007 = vmatprep.subr.mxu0 0.0
    %v1008 = vand.u32 %v47, 4294901760
    %v1009 = vsub.f32 %v47, %v1008
    %v1010 = vand.u32 %v1009, 4294901760
    %1011 = vmatpush1.msra.mxu0 %v1010
    %1012 = vmatprep.subr.mxu0 0.0
    %v1013 = vand.u32 %v48, 4294901760
    %v1014 = vsub.f32 %v48, %v1013
    %v1015 = vand.u32 %v1014, 4294901760
    %1016 = vmatpush1.msra.mxu0 %v1015
    %1017 = vmatprep.subr.mxu0 0.0
    %v1018 = vand.u32 %v49, 4294901760
    %v1019 = vsub.f32 %v49, %v1018
    %v1020 = vand.u32 %v1019, 4294901760
    %1021 = vmatpush1.msra.mxu0 %v1020
    %1022 = vmatprep.subr.mxu0 0.0
    %v1023 = vand.u32 %v50, 4294901760
    %v1024 = vsub.f32 %v50, %v1023
    %v1025 = vand.u32 %v1024, 4294901760
    %1026 = vmatpush1.msra.mxu0 %v1025
    %1027 = vmatprep.subr.mxu0 0.0
    %v1028 = vand.u32 %v51, 4294901760
    %v1029 = vsub.f32 %v51, %v1028
    %v1030 = vand.u32 %v1029, 4294901760
    %1031 = vmatpush1.msra.mxu0 %v1030
    %1032 = vmatprep.subr.mxu0 0.0
    %v1033 = vand.u32 %v52, 4294901760
    %v1034 = vsub.f32 %v52, %v1033
    %v1035 = vand.u32 %v1034, 4294901760
    %1036 = vmatpush1.msra.mxu0 %v1035
    %1037 = vmatprep.subr.mxu0 0.0
    %v1038 = vand.u32 %v53, 4294901760
    %v1039 = vsub.f32 %v53, %v1038
    %v1040 = vand.u32 %v1039, 4294901760
    %1041 = vmatpush1.msra.mxu0 %v1040
    %1042 = vmatprep.subr.mxu0 0.0
    %v1043 = vand.u32 %v54, 4294901760
    %v1044 = vsub.f32 %v54, %v1043
    %v1045 = vand.u32 %v1044, 4294901760
    %1046 = vmatpush1.msra.mxu0 %v1045
    %1047 = vmatprep.subr.mxu0 0.0
    %v1048 = vand.u32 %v55, 4294901760
    %v1049 = vsub.f32 %v55, %v1048
    %v1050 = vand.u32 %v1049, 4294901760
    %1051 = vmatpush1.msra.mxu0 %v1050
    %1052 = vmatprep.subr.mxu0 0.0
    %1053 = vmatpush1.msra.mxu0 0.0
    %1054 = vmatprep.subr.mxu0 0.0
    %1055 = vmatpush1.msra.mxu0 0.0
    %1056 = vmatprep.subr.mxu0 0.0
    %1057 = vmatpush1.msra.mxu0 0.0
    %1058 = vmatprep.subr.mxu0 0.0
    %1059 = vmatpush1.msra.mxu0 0.0
    %1060 = vmatprep.subr.mxu0 0.0
    %1061 = vmatpush1.msra.mxu0 0.0
    %1062 = vmatprep.subr.mxu0 0.0
    %1063 = vmatpush1.msra.mxu0 0.0
    %1064 = vmatprep.subr.mxu0 0.0
    %1065 = vmatpush1.msra.mxu0 0.0
    %1066 = vmatprep.subr.mxu0 0.0
    %1067 = vmatpush1.msra.mxu0 0.0
    %1068 = vmatprep.subr.mxu0 0.0
    %1069 = vmatpush1.msra.mxu0 0.0
    %1070 = vmatprep.subr.mxu0 0.0
    %1071 = vmatpush1.msra.mxu0 0.0
    %1072 = vmatprep.subr.mxu0 0.0
    %1073 = vmatpush1.msra.mxu0 0.0
    %1074 = vmatprep.subr.mxu0 0.0
    %1075 = vmatpush1.msra.mxu0 0.0
    %1076 = vmatprep.subr.mxu0 0.0
    %1077 = vmatpush1.msra.mxu0 0.0
    %1078 = vmatprep.subr.mxu0 0.0
    %1079 = vmatpush1.msra.mxu0 0.0
    %1080 = vmatprep.subr.mxu0 0.0
    %1081 = vmatpush1.msra.mxu0 0.0
    %1082 = vmatprep.subr.mxu0 0.0
    %1083 = vmatpush1.msra.mxu0 0.0
    %1084 = vmatprep.mubr.f32.mxu0 0.0
    %v1085 = vand.u32 %v56, 4294901760
    %1086 = vmatmul.mubr.f32.gmra.mrb[0].mxu0 %v1085
    %v1087 = vpop.f32.mrb[0].mxu0
    %v1088 = vadd.f32 %v849, %v1087
    %v1089 = vpop.f32.mrb[0].mxu0
    %1090 = vmatprep.mubr.f32.mxu0 0.0
    %v1091 = vand.u32 %v57, 4294901760
    %1092 = vmatmul.mubr.f32.gmra.mrb[0].mxu0 %v1091
    %v1093 = vpop.f32.mrb[0].mxu0
    %v1094 = vadd.f32 %v857, %v1093
    %v1095 = vpop.f32.mrb[0].mxu0
    %1096 = vmatprep.mubr.f32.mxu0 0.0
    %v1097 = vand.u32 %v58, 4294901760
    %1098 = vmatmul.mubr.f32.gmra.mrb[0].mxu0 %v1097
    %v1099 = vpop.f32.mrb[0].mxu0
    %v1100 = vadd.f32 %v865, %v1099
    %v1101 = vpop.f32.mrb[0].mxu0
    %1102 = vmatprep.mubr.f32.mxu0 0.0
    %v1103 = vand.u32 %v59, 4294901760
    %1104 = vmatmul.mubr.f32.gmra.mrb[0].mxu0 %v1103
    %v1105 = vpop.f32.mrb[0].mxu0
    %v1106 = vadd.f32 %v873, %v1105
    %v1107 = vpop.f32.mrb[0].mxu0
    %1108 = vmatprep.mubr.f32.mxu0 0.0
    %v1109 = vand.u32 %v60, 4294901760
    %1110 = vmatmul.mubr.f32.gmra.mrb[0].mxu0 %v1109
    %v1111 = vpop.f32.mrb[0].mxu0
    %v1112 = vadd.f32 %v881, %v1111
    %v1113 = vpop.f32.mrb[0].mxu0
    %1114 = vmatprep.mubr.f32.mxu0 0.0
    %v1115 = vand.u32 %v61, 4294901760
    %1116 = vmatmul.mubr.f32.gmra.mrb[0].mxu0 %v1115
    %v1117 = vpop.f32.mrb[0].mxu0
    %v1118 = vadd.f32 %v889, %v1117
    %v1119 = vpop.f32.mrb[0].mxu0
    %1120 = vmatprep.mubr.f32.mxu0 0.0
    %v1121 = vand.u32 %v62, 4294901760
    %1122 = vmatmul.mubr.f32.gmra.mrb[0].mxu0 %v1121
    %v1123 = vpop.f32.mrb[0].mxu0
    %v1124 = vadd.f32 %v897, %v1123
    %v1125 = vpop.f32.mrb[0].mxu0
    %1126 = vmatprep.mubr.f32.mxu0 0.0
    %v1127 = vand.u32 %v63, 4294901760
    %1128 = vmatmul.mubr.f32.gmra.mrb[0].mxu0 %v1127
    %v1129 = vpop.f32.mrb[0].mxu0
    %v1130 = vadd.f32 %v905, %v1129
    %v1131 = vpop.f32.mrb[0].mxu0
    %1132 = vmatprep.mubr.f32.mxu0 0.0
    %v1133 = vand.u32 %v64, 4294901760
    %1134 = vmatmul.mubr.f32.gmra.mrb[0].mxu0 %v1133
    %v1135 = vpop.f32.mrb[0].mxu0
    %v1136 = vadd.f32 %v913, %v1135
    %v1137 = vpop.f32.mrb[0].mxu0
    %1138 = vmatprep.mubr.f32.mxu0 0.0
    %v1139 = vand.u32 %v65, 4294901760
    %1140 = vmatmul.mubr.f32.gmra.mrb[0].mxu0 %v1139
    %v1141 = vpop.f32.mrb[0].mxu0
    %v1142 = vadd.f32 %v921, %v1141
    %v1143 = vpop.f32.mrb[0].mxu0
    %1144 = vmatprep.mubr.f32.mxu0 0.0
    %v1145 = vand.u32 %v66, 4294901760
    %1146 = vmatmul.mubr.f32.gmra.mrb[0].mxu0 %v1145
    %v1147 = vpop.f32.mrb[0].mxu0
    %v1148 = vadd.f32 %v929, %v1147
    %v1149 = vpop.f32.mrb[0].mxu0
    %1150 = vmatprep.mubr.f32.mxu0 0.0
    %v1151 = vand.u32 %v67, 4294901760
    %1152 = vmatmul.mubr.f32.gmra.mrb[0].mxu0 %v1151
    %v1153 = vpop.f32.mrb[0].mxu0
    %v1154 = vadd.f32 %v937, %v1153
    %v1155 = vpop.f32.mrb[0].mxu0
    %1156 = vmatprep.mubr.f32.mxu0 0.0
    %v1157 = vand.u32 %v68, 4294901760
    %1158 = vmatmul.mubr.f32.gmra.mrb[0].mxu0 %v1157
    %v1159 = vpop.f32.mrb[0].mxu0
    %v1160 = vadd.f32 %v945, %v1159
    %v1161 = vpop.f32.mrb[0].mxu0
    %1162 = vmatprep.mubr.f32.mxu0 0.0
    %v1163 = vand.u32 %v69, 4294901760
    %1164 = vmatmul.mubr.f32.gmra.mrb[0].mxu0 %v1163
    %v1165 = vpop.f32.mrb[0].mxu0
    %v1166 = vadd.f32 %v953, %v1165
    %v1167 = vpop.f32.mrb[0].mxu0
    %1168 = vmatprep.mubr.f32.mxu0 0.0
    %v1169 = vand.u32 %v70, 4294901760
    %1170 = vmatmul.mubr.f32.gmra.mrb[0].mxu0 %v1169
    %v1171 = vpop.f32.mrb[0].mxu0
    %v1172 = vadd.f32 %v961, %v1171
    %v1173 = vpop.f32.mrb[0].mxu0
    %1174 = vmatprep.mubr.f32.mxu0 0.0
    %v1175 = vand.u32 %v71, 4294901760
    %1176 = vmatmul.mubr.f32.gmra.mrb[0].mxu0 %v1175
    %v1177 = vpop.f32.mrb[0].mxu0
    %v1178 = vadd.f32 %v969, %v1177
    %v1179 = vpop.f32.mrb[0].mxu0
    %1180 = vdwg.mxu0
    %1181 = vmatprep.subr.mxu0 0.0
    %v1182 = vand.u32 %v40, 4294901760
    %1183 = vmatpush1.msra.mxu0 %v1182
    %1184 = vmatprep.subr.mxu0 0.0
    %v1185 = vand.u32 %v41, 4294901760
    %1186 = vmatpush1.msra.mxu0 %v1185
    %1187 = vmatprep.subr.mxu0 0.0
    %v1188 = vand.u32 %v42, 4294901760
    %1189 = vmatpush1.msra.mxu0 %v1188
    %1190 = vmatprep.subr.mxu0 0.0
    %v1191 = vand.u32 %v43, 4294901760
    %1192 = vmatpush1.msra.mxu0 %v1191
    %1193 = vmatprep.subr.mxu0 0.0
    %v1194 = vand.u32 %v44, 4294901760
    %1195 = vmatpush1.msra.mxu0 %v1194
    %1196 = vmatprep.subr.mxu0 0.0
    %v1197 = vand.u32 %v45, 4294901760
    %1198 = vmatpush1.msra.mxu0 %v1197
    %1199 = vmatprep.subr.mxu0 0.0
    %v1200 = vand.u32 %v46, 4294901760
    %1201 = vmatpush1.msra.mxu0 %v1200
    %1202 = vmatprep.subr.mxu0 0.0
    %v1203 = vand.u32 %v47, 4294901760
    %1204 = vmatpush1.msra.mxu0 %v1203
    %1205 = vmatprep.subr.mxu0 0.0
    %v1206 = vand.u32 %v48, 4294901760
    %1207 = vmatpush1.msra.mxu0 %v1206
    %1208 = vmatprep.subr.mxu0 0.0
    %v1209 = vand.u32 %v49, 4294901760
    %1210 = vmatpush1.msra.mxu0 %v1209
    %1211 = vmatprep.subr.mxu0 0.0
    %v1212 = vand.u32 %v50, 4294901760
    %1213 = vmatpush1.msra.mxu0 %v1212
    %1214 = vmatprep.subr.mxu0 0.0
    %v1215 = vand.u32 %v51, 4294901760
    %1216 = vmatpush1.msra.mxu0 %v1215
    %1217 = vmatprep.subr.mxu0 0.0
    %v1218 = vand.u32 %v52, 4294901760
    %1219 = vmatpush1.msra.mxu0 %v1218
    %1220 = vmatprep.subr.mxu0 0.0
    %v1221 = vand.u32 %v53, 4294901760
    %1222 = vmatpush1.msra.mxu0 %v1221
    %1223 = vmatprep.subr.mxu0 0.0
    %v1224 = vand.u32 %v54, 4294901760
    %1225 = vmatpush1.msra.mxu0 %v1224
    %1226 = vmatprep.subr.mxu0 0.0
    %v1227 = vand.u32 %v55, 4294901760
    %1228 = vmatpush1.msra.mxu0 %v1227
    %1229 = vmatprep.subr.mxu0 0.0
    %1230 = vmatpush1.msra.mxu0 0.0
    %1231 = vmatprep.subr.mxu0 0.0
    %1232 = vmatpush1.msra.mxu0 0.0
    %1233 = vmatprep.subr.mxu0 0.0
    %1234 = vmatpush1.msra.mxu0 0.0
    %1235 = vmatprep.subr.mxu0 0.0
    %1236 = vmatpush1.msra.mxu0 0.0
    %1237 = vmatprep.subr.mxu0 0.0
    %1238 = vmatpush1.msra.mxu0 0.0
    %1239 = vmatprep.subr.mxu0 0.0
    %1240 = vmatpush1.msra.mxu0 0.0
    %1241 = vmatprep.subr.mxu0 0.0
    %1242 = vmatpush1.msra.mxu0 0.0
    %1243 = vmatprep.subr.mxu0 0.0
    %1244 = vmatpush1.msra.mxu0 0.0
    %1245 = vmatprep.subr.mxu0 0.0
    %1246 = vmatpush1.msra.mxu0 0.0
    %1247 = vmatprep.subr.mxu0 0.0
    %1248 = vmatpush1.msra.mxu0 0.0
    %1249 = vmatprep.subr.mxu0 0.0
    %1250 = vmatpush1.msra.mxu0 0.0
    %1251 = vmatprep.subr.mxu0 0.0
    %1252 = vmatpush1.msra.mxu0 0.0
    %1253 = vmatprep.subr.mxu0 0.0
    %1254 = vmatpush1.msra.mxu0 0.0
    %1255 = vmatprep.subr.mxu0 0.0
    %1256 = vmatpush1.msra.mxu0 0.0
    %1257 = vmatprep.subr.mxu0 0.0
    %1258 = vmatpush1.msra.mxu0 0.0
    %1259 = vmatprep.subr.mxu0 0.0
    %1260 = vmatpush1.msra.mxu0 0.0
    %1261 = vmatprep.mubr.f32.mxu0 0.0
    %v1262 = vand.u32 %v56, 4294901760
    %1263 = vmatmul.mubr.f32.gmra.mrb[0].mxu0 %v1262
    %v1264 = vpop.f32.mrb[0].mxu0
    %v1265 = vadd.f32 %v1088, %v1264
    %v1266 = vpop.f32.mrb[0].mxu0
    %1267 = vmatprep.mubr.f32.mxu0 0.0
    %v1268 = vand.u32 %v57, 4294901760
    %1269 = vmatmul.mubr.f32.gmra.mrb[0].mxu0 %v1268
    %v1270 = vpop.f32.mrb[0].mxu0
    %v1271 = vadd.f32 %v1094, %v1270
    %v1272 = vpop.f32.mrb[0].mxu0
    %1273 = vmatprep.mubr.f32.mxu0 0.0
    %v1274 = vand.u32 %v58, 4294901760
    %1275 = vmatmul.mubr.f32.gmra.mrb[0].mxu0 %v1274
    %v1276 = vpop.f32.mrb[0].mxu0
    %v1277 = vadd.f32 %v1100, %v1276
    %v1278 = vpop.f32.mrb[0].mxu0
    %1279 = vmatprep.mubr.f32.mxu0 0.0
    %v1280 = vand.u32 %v59, 4294901760
    %1281 = vmatmul.mubr.f32.gmra.mrb[0].mxu0 %v1280
    %v1282 = vpop.f32.mrb[0].mxu0
    %v1283 = vadd.f32 %v1106, %v1282
    %v1284 = vpop.f32.mrb[0].mxu0
    %1285 = vmatprep.mubr.f32.mxu0 0.0
    %v1286 = vand.u32 %v60, 4294901760
    %1287 = vmatmul.mubr.f32.gmra.mrb[0].mxu0 %v1286
    %v1288 = vpop.f32.mrb[0].mxu0
    %v1289 = vadd.f32 %v1112, %v1288
    %v1290 = vpop.f32.mrb[0].mxu0
    %1291 = vmatprep.mubr.f32.mxu0 0.0
    %v1292 = vand.u32 %v61, 4294901760
    %1293 = vmatmul.mubr.f32.gmra.mrb[0].mxu0 %v1292
    %v1294 = vpop.f32.mrb[0].mxu0
    %v1295 = vadd.f32 %v1118, %v1294
    %v1296 = vpop.f32.mrb[0].mxu0
    %1297 = vmatprep.mubr.f32.mxu0 0.0
    %v1298 = vand.u32 %v62, 4294901760
    %1299 = vmatmul.mubr.f32.gmra.mrb[0].mxu0 %v1298
    %v1300 = vpop.f32.mrb[0].mxu0
    %v1301 = vadd.f32 %v1124, %v1300
    %v1302 = vpop.f32.mrb[0].mxu0
    %1303 = vmatprep.mubr.f32.mxu0 0.0
    %v1304 = vand.u32 %v63, 4294901760
    %1305 = vmatmul.mubr.f32.gmra.mrb[0].mxu0 %v1304
    %v1306 = vpop.f32.mrb[0].mxu0
    %v1307 = vadd.f32 %v1130, %v1306
    %v1308 = vpop.f32.mrb[0].mxu0
    %1309 = vmatprep.mubr.f32.mxu0 0.0
    %v1310 = vand.u32 %v64, 4294901760
    %1311 = vmatmul.mubr.f32.gmra.mrb[0].mxu0 %v1310
    %v1312 = vpop.f32.mrb[0].mxu0
    %v1313 = vadd.f32 %v1136, %v1312
    %v1314 = vpop.f32.mrb[0].mxu0
    %1315 = vmatprep.mubr.f32.mxu0 0.0
    %v1316 = vand.u32 %v65, 4294901760
    %1317 = vmatmul.mubr.f32.gmra.mrb[0].mxu0 %v1316
    %v1318 = vpop.f32.mrb[0].mxu0
    %v1319 = vadd.f32 %v1142, %v1318
    %v1320 = vpop.f32.mrb[0].mxu0
    %1321 = vmatprep.mubr.f32.mxu0 0.0
    %v1322 = vand.u32 %v66, 4294901760
    %1323 = vmatmul.mubr.f32.gmra.mrb[0].mxu0 %v1322
    %v1324 = vpop.f32.mrb[0].mxu0
    %v1325 = vadd.f32 %v1148, %v1324
    %v1326 = vpop.f32.mrb[0].mxu0
    %1327 = vmatprep.mubr.f32.mxu0 0.0
    %v1328 = vand.u32 %v67, 4294901760
    %1329 = vmatmul.mubr.f32.gmra.mrb[0].mxu0 %v1328
    %v1330 = vpop.f32.mrb[0].mxu0
    %v1331 = vadd.f32 %v1154, %v1330
    %v1332 = vpop.f32.mrb[0].mxu0
    %1333 = vmatprep.mubr.f32.mxu0 0.0
    %v1334 = vand.u32 %v68, 4294901760
    %1335 = vmatmul.mubr.f32.gmra.mrb[0].mxu0 %v1334
    %v1336 = vpop.f32.mrb[0].mxu0
    %v1337 = vadd.f32 %v1160, %v1336
    %v1338 = vpop.f32.mrb[0].mxu0
    %1339 = vmatprep.mubr.f32.mxu0 0.0
    %v1340 = vand.u32 %v69, 4294901760
    %1341 = vmatmul.mubr.f32.gmra.mrb[0].mxu0 %v1340
    %v1342 = vpop.f32.mrb[0].mxu0
    %v1343 = vadd.f32 %v1166, %v1342
    %v1344 = vpop.f32.mrb[0].mxu0
    %1345 = vmatprep.mubr.f32.mxu0 0.0
    %v1346 = vand.u32 %v70, 4294901760
    %1347 = vmatmul.mubr.f32.gmra.mrb[0].mxu0 %v1346
    %v1348 = vpop.f32.mrb[0].mxu0
    %v1349 = vadd.f32 %v1172, %v1348
    %v1350 = vpop.f32.mrb[0].mxu0
    %1351 = vmatprep.mubr.f32.mxu0 0.0
    %v1352 = vand.u32 %v71, 4294901760
    %1353 = vmatmul.mubr.f32.gmra.mrb[0].mxu0 %v1352
    %v1354 = vpop.f32.mrb[0].mxu0
    %v1355 = vadd.f32 %v1178, %v1354
    %v1356 = vpop.f32.mrb[0].mxu0
    %1357 = vdwg.mxu0
    %v1358 = vld [vmem:[%s3] sm:$0xff]
    %v1359 = vld [vmem:[%s3 + $0x8] sm:$0xff]
    %vm1360 = vcmask 130048
    %v1362 = vsel %vm1360, %v1265, 0
    %v1365 = vsel %vm1360, %v1271, 0
    %v1368 = vsel %vm1360, %v1277, 0
    %v1371 = vsel %vm1360, %v1283, 0
    %v1374 = vsel %vm1360, %v1289, 0
    %v1377 = vsel %vm1360, %v1295, 0
    %v1380 = vsel %vm1360, %v1301, 0
    %v1383 = vsel %vm1360, %v1307, 0
    %v1386 = vsel %vm1360, %v1313, 0
    %v1389 = vsel %vm1360, %v1319, 0
    %v1392 = vsel %vm1360, %v1325, 0
    %v1395 = vsel %vm1360, %v1331, 0
    %v1398 = vsel %vm1360, %v1337, 0
    %v1401 = vsel %vm1360, %v1343, 0
    %v1404 = vsel %vm1360, %v1349, 0
    %v1407 = vsel %vm1360, %v1355, 0
    %1409 = vmatprep.subr.mxu0 0.0
    %v1410 = vand.u32 %v1358, 4294901760
    %1411 = vmatpush1.msra.mxu0 %v1410
    %1412 = vmatprep.subr.mxu0 0.0
    %v1413 = vand.u32 %v1359, 4294901760
    %1414 = vmatpush1.msra.mxu0 %v1413
    %1415 = vmatprep.subr.mxu0 0.0
    %1416 = vmatpush1.msra.mxu0 0.0
    %1417 = vmatprep.subr.mxu0 0.0
    %1418 = vmatpush1.msra.mxu0 0.0
    %1419 = vmatprep.subr.mxu0 0.0
    %1420 = vmatpush1.msra.mxu0 0.0
    %1421 = vmatprep.subr.mxu0 0.0
    %1422 = vmatpush1.msra.mxu0 0.0
    %1423 = vmatprep.subr.mxu0 0.0
    %1424 = vmatpush1.msra.mxu0 0.0
    %1425 = vmatprep.subr.mxu0 0.0
    %1426 = vmatpush1.msra.mxu0 0.0
    %1427 = vmatprep.subr.mxu0 0.0
    %1428 = vmatpush1.msra.mxu0 0.0
    %1429 = vmatprep.subr.mxu0 0.0
    %1430 = vmatpush1.msra.mxu0 0.0
    %1431 = vmatprep.subr.mxu0 0.0
    %1432 = vmatpush1.msra.mxu0 0.0
    %1433 = vmatprep.subr.mxu0 0.0
    %1434 = vmatpush1.msra.mxu0 0.0
    %1435 = vmatprep.subr.mxu0 0.0
    %1436 = vmatpush1.msra.mxu0 0.0
    %1437 = vmatprep.subr.mxu0 0.0
    %1438 = vmatpush1.msra.mxu0 0.0
    %1439 = vmatprep.subr.mxu0 0.0
    %1440 = vmatpush1.msra.mxu0 0.0
    %1441 = vmatprep.subr.mxu0 0.0
    %1442 = vmatpush1.msra.mxu0 0.0
    %1443 = vmatprep.subr.mxu0 0.0
    %1444 = vmatpush1.msra.mxu0 0.0
    %1445 = vmatprep.subr.mxu0 0.0
    %1446 = vmatpush1.msra.mxu0 0.0
    %1447 = vmatprep.subr.mxu0 0.0
    %1448 = vmatpush1.msra.mxu0 0.0
    %1449 = vmatprep.subr.mxu0 0.0
    %1450 = vmatpush1.msra.mxu0 0.0
    %1451 = vmatprep.subr.mxu0 0.0
    %1452 = vmatpush1.msra.mxu0 0.0
    %1453 = vmatprep.subr.mxu0 0.0
    %1454 = vmatpush1.msra.mxu0 0.0
    %1455 = vmatprep.subr.mxu0 0.0
    %1456 = vmatpush1.msra.mxu0 0.0
    %1457 = vmatprep.subr.mxu0 0.0
    %1458 = vmatpush1.msra.mxu0 0.0
    %1459 = vmatprep.subr.mxu0 0.0
    %1460 = vmatpush1.msra.mxu0 0.0
    %1461 = vmatprep.subr.mxu0 0.0
    %1462 = vmatpush1.msra.mxu0 0.0
    %1463 = vmatprep.subr.mxu0 0.0
    %1464 = vmatpush1.msra.mxu0 0.0
    %1465 = vmatprep.subr.mxu0 0.0
    %1466 = vmatpush1.msra.mxu0 0.0
    %1467 = vmatprep.subr.mxu0 0.0
    %1468 = vmatpush1.msra.mxu0 0.0
    %1469 = vmatprep.subr.mxu0 0.0
    %1470 = vmatpush1.msra.mxu0 0.0
    %1471 = vmatprep.subr.mxu0 0.0
    %1472 = vmatpush1.msra.mxu0 0.0
    %1473 = vmatprep.subr.mxu0 0.0
    %1474 = vmatpush1.msra.mxu0 0.0
    %1475 = vmatprep.mubr.f32.mxu0 0.0
    %v1476 = vand.u32 %v1362, 4294901760
    %v1477 = vsub.f32 %v1362, %v1476
    %v1478 = vand.u32 %v1477, 4294901760
    %v1479 = vsub.f32 %v1477, %v1478
    %v1480 = vand.u32 %v1479, 4294901760
    %1481 = vmatmul.mubr.f32.gmra.mrb[0].mxu0 %v1480
    %v1482 = vpop.f32.mrb[0].mxu0
    %v1483 = vadd.f32 0.0, %v1482
    %v1484 = vpop.f32.mrb[0].mxu0
    %1485 = vmatprep.mubr.f32.mxu0 0.0
    %v1486 = vand.u32 %v1365, 4294901760
    %v1487 = vsub.f32 %v1365, %v1486
    %v1488 = vand.u32 %v1487, 4294901760
    %v1489 = vsub.f32 %v1487, %v1488
    %v1490 = vand.u32 %v1489, 4294901760
    %1491 = vmatmul.mubr.f32.gmra.mrb[0].mxu0 %v1490
    %v1492 = vpop.f32.mrb[0].mxu0
    %v1493 = vadd.f32 0.0, %v1492
    %v1494 = vpop.f32.mrb[0].mxu0
    %1495 = vmatprep.mubr.f32.mxu0 0.0
    %v1496 = vand.u32 %v1368, 4294901760
    %v1497 = vsub.f32 %v1368, %v1496
    %v1498 = vand.u32 %v1497, 4294901760
    %v1499 = vsub.f32 %v1497, %v1498
    %v1500 = vand.u32 %v1499, 4294901760
    %1501 = vmatmul.mubr.f32.gmra.mrb[0].mxu0 %v1500
    %v1502 = vpop.f32.mrb[0].mxu0
    %v1503 = vadd.f32 0.0, %v1502
    %v1504 = vpop.f32.mrb[0].mxu0
    %1505 = vmatprep.mubr.f32.mxu0 0.0
    %v1506 = vand.u32 %v1371, 4294901760
    %v1507 = vsub.f32 %v1371, %v1506
    %v1508 = vand.u32 %v1507, 4294901760
    %v1509 = vsub.f32 %v1507, %v1508
    %v1510 = vand.u32 %v1509, 4294901760
    %1511 = vmatmul.mubr.f32.gmra.mrb[0].mxu0 %v1510
    %v1512 = vpop.f32.mrb[0].mxu0
    %v1513 = vadd.f32 0.0, %v1512
    %v1514 = vpop.f32.mrb[0].mxu0
    %1515 = vmatprep.mubr.f32.mxu0 0.0
    %v1516 = vand.u32 %v1374, 4294901760
    %v1517 = vsub.f32 %v1374, %v1516
    %v1518 = vand.u32 %v1517, 4294901760
    %v1519 = vsub.f32 %v1517, %v1518
    %v1520 = vand.u32 %v1519, 4294901760
    %1521 = vmatmul.mubr.f32.gmra.mrb[0].mxu0 %v1520
    %v1522 = vpop.f32.mrb[0].mxu0
    %v1523 = vadd.f32 0.0, %v1522
    %v1524 = vpop.f32.mrb[0].mxu0
    %1525 = vmatprep.mubr.f32.mxu0 0.0
    %v1526 = vand.u32 %v1377, 4294901760
    %v1527 = vsub.f32 %v1377, %v1526
    %v1528 = vand.u32 %v1527, 4294901760
    %v1529 = vsub.f32 %v1527, %v1528
    %v1530 = vand.u32 %v1529, 4294901760
    %1531 = vmatmul.mubr.f32.gmra.mrb[0].mxu0 %v1530
    %v1532 = vpop.f32.mrb[0].mxu0
    %v1533 = vadd.f32 0.0, %v1532
    %v1534 = vpop.f32.mrb[0].mxu0
    %1535 = vmatprep.mubr.f32.mxu0 0.0
    %v1536 = vand.u32 %v1380, 4294901760
    %v1537 = vsub.f32 %v1380, %v1536
    %v1538 = vand.u32 %v1537, 4294901760
    %v1539 = vsub.f32 %v1537, %v1538
    %v1540 = vand.u32 %v1539, 4294901760
    %1541 = vmatmul.mubr.f32.gmra.mrb[0].mxu0 %v1540
    %v1542 = vpop.f32.mrb[0].mxu0
    %v1543 = vadd.f32 0.0, %v1542
    %v1544 = vpop.f32.mrb[0].mxu0
    %1545 = vmatprep.mubr.f32.mxu0 0.0
    %v1546 = vand.u32 %v1383, 4294901760
    %v1547 = vsub.f32 %v1383, %v1546
    %v1548 = vand.u32 %v1547, 4294901760
    %v1549 = vsub.f32 %v1547, %v1548
    %v1550 = vand.u32 %v1549, 4294901760
    %1551 = vmatmul.mubr.f32.gmra.mrb[0].mxu0 %v1550
    %v1552 = vpop.f32.mrb[0].mxu0
    %v1553 = vadd.f32 0.0, %v1552
    %v1554 = vpop.f32.mrb[0].mxu0
    %1555 = vmatprep.mubr.f32.mxu0 0.0
    %v1556 = vand.u32 %v1386, 4294901760
    %v1557 = vsub.f32 %v1386, %v1556
    %v1558 = vand.u32 %v1557, 4294901760
    %v1559 = vsub.f32 %v1557, %v1558
    %v1560 = vand.u32 %v1559, 4294901760
    %1561 = vmatmul.mubr.f32.gmra.mrb[0].mxu0 %v1560
    %v1562 = vpop.f32.mrb[0].mxu0
    %v1563 = vadd.f32 0.0, %v1562
    %v1564 = vpop.f32.mrb[0].mxu0
    %1565 = vmatprep.mubr.f32.mxu0 0.0
    %v1566 = vand.u32 %v1389, 4294901760
    %v1567 = vsub.f32 %v1389, %v1566
    %v1568 = vand.u32 %v1567, 4294901760
    %v1569 = vsub.f32 %v1567, %v1568
    %v1570 = vand.u32 %v1569, 4294901760
    %1571 = vmatmul.mubr.f32.gmra.mrb[0].mxu0 %v1570
    %v1572 = vpop.f32.mrb[0].mxu0
    %v1573 = vadd.f32 0.0, %v1572
    %v1574 = vpop.f32.mrb[0].mxu0
    %1575 = vmatprep.mubr.f32.mxu0 0.0
    %v1576 = vand.u32 %v1392, 4294901760
    %v1577 = vsub.f32 %v1392, %v1576
    %v1578 = vand.u32 %v1577, 4294901760
    %v1579 = vsub.f32 %v1577, %v1578
    %v1580 = vand.u32 %v1579, 4294901760
    %1581 = vmatmul.mubr.f32.gmra.mrb[0].mxu0 %v1580
    %v1582 = vpop.f32.mrb[0].mxu0
    %v1583 = vadd.f32 0.0, %v1582
    %v1584 = vpop.f32.mrb[0].mxu0
    %1585 = vmatprep.mubr.f32.mxu0 0.0
    %v1586 = vand.u32 %v1395, 4294901760
    %v1587 = vsub.f32 %v1395, %v1586
    %v1588 = vand.u32 %v1587, 4294901760
    %v1589 = vsub.f32 %v1587, %v1588
    %v1590 = vand.u32 %v1589, 4294901760
    %1591 = vmatmul.mubr.f32.gmra.mrb[0].mxu0 %v1590
    %v1592 = vpop.f32.mrb[0].mxu0
    %v1593 = vadd.f32 0.0, %v1592
    %v1594 = vpop.f32.mrb[0].mxu0
    %1595 = vmatprep.mubr.f32.mxu0 0.0
    %v1596 = vand.u32 %v1398, 4294901760
    %v1597 = vsub.f32 %v1398, %v1596
    %v1598 = vand.u32 %v1597, 4294901760
    %v1599 = vsub.f32 %v1597, %v1598
    %v1600 = vand.u32 %v1599, 4294901760
    %1601 = vmatmul.mubr.f32.gmra.mrb[0].mxu0 %v1600
    %v1602 = vpop.f32.mrb[0].mxu0
    %v1603 = vadd.f32 0.0, %v1602
    %v1604 = vpop.f32.mrb[0].mxu0
    %1605 = vmatprep.mubr.f32.mxu0 0.0
    %v1606 = vand.u32 %v1401, 4294901760
    %v1607 = vsub.f32 %v1401, %v1606
    %v1608 = vand.u32 %v1607, 4294901760
    %v1609 = vsub.f32 %v1607, %v1608
    %v1610 = vand.u32 %v1609, 4294901760
    %1611 = vmatmul.mubr.f32.gmra.mrb[0].mxu0 %v1610
    %v1612 = vpop.f32.mrb[0].mxu0
    %v1613 = vadd.f32 0.0, %v1612
    %v1614 = vpop.f32.mrb[0].mxu0
    %1615 = vmatprep.mubr.f32.mxu0 0.0
    %v1616 = vand.u32 %v1404, 4294901760
    %v1617 = vsub.f32 %v1404, %v1616
    %v1618 = vand.u32 %v1617, 4294901760
    %v1619 = vsub.f32 %v1617, %v1618
    %v1620 = vand.u32 %v1619, 4294901760
    %1621 = vmatmul.mubr.f32.gmra.mrb[0].mxu0 %v1620
    %v1622 = vpop.f32.mrb[0].mxu0
    %v1623 = vadd.f32 0.0, %v1622
    %v1624 = vpop.f32.mrb[0].mxu0
    %1625 = vmatprep.mubr.f32.mxu0 0.0
    %v1626 = vand.u32 %v1407, 4294901760
    %v1627 = vsub.f32 %v1407, %v1626
    %v1628 = vand.u32 %v1627, 4294901760
    %v1629 = vsub.f32 %v1627, %v1628
    %v1630 = vand.u32 %v1629, 4294901760
    %1631 = vmatmul.mubr.f32.gmra.mrb[0].mxu0 %v1630
    %v1632 = vpop.f32.mrb[0].mxu0
    %v1633 = vadd.f32 0.0, %v1632
    %v1634 = vpop.f32.mrb[0].mxu0
    %1635 = vdwg.mxu0
    %1636 = vmatprep.subr.mxu0 0.0
    %v1637 = vand.u32 %v1358, 4294901760
    %v1638 = vsub.f32 %v1358, %v1637
    %v1639 = vand.u32 %v1638, 4294901760
    %v1640 = vsub.f32 %v1638, %v1639
    %v1641 = vand.u32 %v1640, 4294901760
    %1642 = vmatpush1.msra.mxu0 %v1641
    %1643 = vmatprep.subr.mxu0 0.0
    %v1644 = vand.u32 %v1359, 4294901760
    %v1645 = vsub.f32 %v1359, %v1644
    %v1646 = vand.u32 %v1645, 4294901760
    %v1647 = vsub.f32 %v1645, %v1646
    %v1648 = vand.u32 %v1647, 4294901760
    %1649 = vmatpush1.msra.mxu0 %v1648
    %1650 = vmatprep.subr.mxu0 0.0
    %1651 = vmatpush1.msra.mxu0 0.0
    %1652 = vmatprep.subr.mxu0 0.0
    %1653 = vmatpush1.msra.mxu0 0.0
    %1654 = vmatprep.subr.mxu0 0.0
    %1655 = vmatpush1.msra.mxu0 0.0
    %1656 = vmatprep.subr.mxu0 0.0
    %1657 = vmatpush1.msra.mxu0 0.0
    %1658 = vmatprep.subr.mxu0 0.0
    %1659 = vmatpush1.msra.mxu0 0.0
    %1660 = vmatprep.subr.mxu0 0.0
    %1661 = vmatpush1.msra.mxu0 0.0
    %1662 = vmatprep.subr.mxu0 0.0
    %1663 = vmatpush1.msra.mxu0 0.0
    %1664 = vmatprep.subr.mxu0 0.0
    %1665 = vmatpush1.msra.mxu0 0.0
    %1666 = vmatprep.subr.mxu0 0.0
    %1667 = vmatpush1.msra.mxu0 0.0
    %1668 = vmatprep.subr.mxu0 0.0
    %1669 = vmatpush1.msra.mxu0 0.0
    %1670 = vmatprep.subr.mxu0 0.0
    %1671 = vmatpush1.msra.mxu0 0.0
    %1672 = vmatprep.subr.mxu0 0.0
    %1673 = vmatpush1.msra.mxu0 0.0
    %1674 = vmatprep.subr.mxu0 0.0
    %1675 = vmatpush1.msra.mxu0 0.0
    %1676 = vmatprep.subr.mxu0 0.0
    %1677 = vmatpush1.msra.mxu0 0.0
    %1678 = vmatprep.subr.mxu0 0.0
    %1679 = vmatpush1.msra.mxu0 0.0
    %1680 = vmatprep.subr.mxu0 0.0
    %1681 = vmatpush1.msra.mxu0 0.0
    %1682 = vmatprep.subr.mxu0 0.0
    %1683 = vmatpush1.msra.mxu0 0.0
    %1684 = vmatprep.subr.mxu0 0.0
    %1685 = vmatpush1.msra.mxu0 0.0
    %1686 = vmatprep.subr.mxu0 0.0
    %1687 = vmatpush1.msra.mxu0 0.0
    %1688 = vmatprep.subr.mxu0 0.0
    %1689 = vmatpush1.msra.mxu0 0.0
    %1690 = vmatprep.subr.mxu0 0.0
    %1691 = vmatpush1.msra.mxu0 0.0
    %1692 = vmatprep.subr.mxu0 0.0
    %1693 = vmatpush1.msra.mxu0 0.0
    %1694 = vmatprep.subr.mxu0 0.0
    %1695 = vmatpush1.msra.mxu0 0.0
    %1696 = vmatprep.subr.mxu0 0.0
    %1697 = vmatpush1.msra.mxu0 0.0
    %1698 = vmatprep.subr.mxu0 0.0
    %1699 = vmatpush1.msra.mxu0 0.0
    %1700 = vmatprep.subr.mxu0 0.0
    %1701 = vmatpush1.msra.mxu0 0.0
    %1702 = vmatprep.subr.mxu0 0.0
    %1703 = vmatpush1.msra.mxu0 0.0
    %1704 = vmatprep.subr.mxu0 0.0
    %1705 = vmatpush1.msra.mxu0 0.0
    %1706 = vmatprep.subr.mxu0 0.0
    %1707 = vmatpush1.msra.mxu0 0.0
    %1708 = vmatprep.subr.mxu0 0.0
    %1709 = vmatpush1.msra.mxu0 0.0
    %1710 = vmatprep.mubr.f32.mxu0 0.0
    %v1711 = vand.u32 %v1362, 4294901760
    %1712 = vmatmul.mubr.f32.gmra.mrb[0].mxu0 %v1711
    %v1713 = vpop.f32.mrb[0].mxu0
    %v1714 = vadd.f32 %v1483, %v1713
    %v1715 = vpop.f32.mrb[0].mxu0
    %1716 = vmatprep.mubr.f32.mxu0 0.0
    %v1717 = vand.u32 %v1365, 4294901760
    %1718 = vmatmul.mubr.f32.gmra.mrb[0].mxu0 %v1717
    %v1719 = vpop.f32.mrb[0].mxu0
    %v1720 = vadd.f32 %v1493, %v1719
    %v1721 = vpop.f32.mrb[0].mxu0
    %1722 = vmatprep.mubr.f32.mxu0 0.0
    %v1723 = vand.u32 %v1368, 4294901760
    %1724 = vmatmul.mubr.f32.gmra.mrb[0].mxu0 %v1723
    %v1725 = vpop.f32.mrb[0].mxu0
    %v1726 = vadd.f32 %v1503, %v1725
    %v1727 = vpop.f32.mrb[0].mxu0
    %1728 = vmatprep.mubr.f32.mxu0 0.0
    %v1729 = vand.u32 %v1371, 4294901760
    %1730 = vmatmul.mubr.f32.gmra.mrb[0].mxu0 %v1729
    %v1731 = vpop.f32.mrb[0].mxu0
    %v1732 = vadd.f32 %v1513, %v1731
    %v1733 = vpop.f32.mrb[0].mxu0
    %1734 = vmatprep.mubr.f32.mxu0 0.0
    %v1735 = vand.u32 %v1374, 4294901760
    %1736 = vmatmul.mubr.f32.gmra.mrb[0].mxu0 %v1735
    %v1737 = vpop.f32.mrb[0].mxu0
    %v1738 = vadd.f32 %v1523, %v1737
    %v1739 = vpop.f32.mrb[0].mxu0
    %1740 = vmatprep.mubr.f32.mxu0 0.0
    %v1741 = vand.u32 %v1377, 4294901760
    %1742 = vmatmul.mubr.f32.gmra.mrb[0].mxu0 %v1741
    %v1743 = vpop.f32.mrb[0].mxu0
    %v1744 = vadd.f32 %v1533, %v1743
    %v1745 = vpop.f32.mrb[0].mxu0
    %1746 = vmatprep.mubr.f32.mxu0 0.0
    %v1747 = vand.u32 %v1380, 4294901760
    %1748 = vmatmul.mubr.f32.gmra.mrb[0].mxu0 %v1747
    %v1749 = vpop.f32.mrb[0].mxu0
    %v1750 = vadd.f32 %v1543, %v1749
    %v1751 = vpop.f32.mrb[0].mxu0
    %1752 = vmatprep.mubr.f32.mxu0 0.0
    %v1753 = vand.u32 %v1383, 4294901760
    %1754 = vmatmul.mubr.f32.gmra.mrb[0].mxu0 %v1753
    %v1755 = vpop.f32.mrb[0].mxu0
    %v1756 = vadd.f32 %v1553, %v1755
    %v1757 = vpop.f32.mrb[0].mxu0
    %1758 = vmatprep.mubr.f32.mxu0 0.0
    %v1759 = vand.u32 %v1386, 4294901760
    %1760 = vmatmul.mubr.f32.gmra.mrb[0].mxu0 %v1759
    %v1761 = vpop.f32.mrb[0].mxu0
    %v1762 = vadd.f32 %v1563, %v1761
    %v1763 = vpop.f32.mrb[0].mxu0
    %1764 = vmatprep.mubr.f32.mxu0 0.0
    %v1765 = vand.u32 %v1389, 4294901760
    %1766 = vmatmul.mubr.f32.gmra.mrb[0].mxu0 %v1765
    %v1767 = vpop.f32.mrb[0].mxu0
    %v1768 = vadd.f32 %v1573, %v1767
    %v1769 = vpop.f32.mrb[0].mxu0
    %1770 = vmatprep.mubr.f32.mxu0 0.0
    %v1771 = vand.u32 %v1392, 4294901760
    %1772 = vmatmul.mubr.f32.gmra.mrb[0].mxu0 %v1771
    %v1773 = vpop.f32.mrb[0].mxu0
    %v1774 = vadd.f32 %v1583, %v1773
    %v1775 = vpop.f32.mrb[0].mxu0
    %1776 = vmatprep.mubr.f32.mxu0 0.0
    %v1777 = vand.u32 %v1395, 4294901760
    %1778 = vmatmul.mubr.f32.gmra.mrb[0].mxu0 %v1777
    %v1779 = vpop.f32.mrb[0].mxu0
    %v1780 = vadd.f32 %v1593, %v1779
    %v1781 = vpop.f32.mrb[0].mxu0
    %1782 = vmatprep.mubr.f32.mxu0 0.0
    %v1783 = vand.u32 %v1398, 4294901760
    %1784 = vmatmul.mubr.f32.gmra.mrb[0].mxu0 %v1783
    %v1785 = vpop.f32.mrb[0].mxu0
    %v1786 = vadd.f32 %v1603, %v1785
    %v1787 = vpop.f32.mrb[0].mxu0
    %1788 = vmatprep.mubr.f32.mxu0 0.0
    %v1789 = vand.u32 %v1401, 4294901760
    %1790 = vmatmul.mubr.f32.gmra.mrb[0].mxu0 %v1789
    %v1791 = vpop.f32.mrb[0].mxu0
    %v1792 = vadd.f32 %v1613, %v1791
    %v1793 = vpop.f32.mrb[0].mxu0
    %1794 = vmatprep.mubr.f32.mxu0 0.0
    %v1795 = vand.u32 %v1404, 4294901760
    %1796 = vmatmul.mubr.f32.gmra.mrb[0].mxu0 %v1795
    %v1797 = vpop.f32.mrb[0].mxu0
    %v1798 = vadd.f32 %v1623, %v1797
    %v1799 = vpop.f32.mrb[0].mxu0
    %1800 = vmatprep.mubr.f32.mxu0 0.0
    %v1801 = vand.u32 %v1407, 4294901760
    %1802 = vmatmul.mubr.f32.gmra.mrb[0].mxu0 %v1801
    %v1803 = vpop.f32.mrb[0].mxu0
    %v1804 = vadd.f32 %v1633, %v1803
    %v1805 = vpop.f32.mrb[0].mxu0
    %1806 = vdwg.mxu0
    %1807 = vmatprep.subr.mxu0 0.0
    %v1808 = vand.u32 %v1358, 4294901760
    %v1809 = vsub.f32 %v1358, %v1808
    %1810 = vmatpush1.msra.mxu0 %v1809
    %1811 = vmatprep.subr.mxu0 0.0
    %v1812 = vand.u32 %v1359, 4294901760
    %v1813 = vsub.f32 %v1359, %v1812
    %1814 = vmatpush1.msra.mxu0 %v1813
    %1815 = vmatprep.subr.mxu0 0.0
    %1816 = vmatpush1.msra.mxu0 0.0
    %1817 = vmatprep.subr.mxu0 0.0
    %1818 = vmatpush1.msra.mxu0 0.0
    %1819 = vmatprep.subr.mxu0 0.0
    %1820 = vmatpush1.msra.mxu0 0.0
    %1821 = vmatprep.subr.mxu0 0.0
    %1822 = vmatpush1.msra.mxu0 0.0
    %1823 = vmatprep.subr.mxu0 0.0
    %1824 = vmatpush1.msra.mxu0 0.0
    %1825 = vmatprep.subr.mxu0 0.0
    %1826 = vmatpush1.msra.mxu0 0.0
    %1827 = vmatprep.subr.mxu0 0.0
    %1828 = vmatpush1.msra.mxu0 0.0
    %1829 = vmatprep.subr.mxu0 0.0
    %1830 = vmatpush1.msra.mxu0 0.0
    %1831 = vmatprep.subr.mxu0 0.0
    %1832 = vmatpush1.msra.mxu0 0.0
    %1833 = vmatprep.subr.mxu0 0.0
    %1834 = vmatpush1.msra.mxu0 0.0
    %1835 = vmatprep.subr.mxu0 0.0
    %1836 = vmatpush1.msra.mxu0 0.0
    %1837 = vmatprep.subr.mxu0 0.0
    %1838 = vmatpush1.msra.mxu0 0.0
    %1839 = vmatprep.subr.mxu0 0.0
    %1840 = vmatpush1.msra.mxu0 0.0
    %1841 = vmatprep.subr.mxu0 0.0
    %1842 = vmatpush1.msra.mxu0 0.0
    %1843 = vmatprep.subr.mxu0 0.0
    %1844 = vmatpush1.msra.mxu0 0.0
    %1845 = vmatprep.subr.mxu0 0.0
    %1846 = vmatpush1.msra.mxu0 0.0
    %1847 = vmatprep.subr.mxu0 0.0
    %1848 = vmatpush1.msra.mxu0 0.0
    %1849 = vmatprep.subr.mxu0 0.0
    %1850 = vmatpush1.msra.mxu0 0.0
    %1851 = vmatprep.subr.mxu0 0.0
    %1852 = vmatpush1.msra.mxu0 0.0
    %1853 = vmatprep.subr.mxu0 0.0
    %1854 = vmatpush1.msra.mxu0 0.0
    %1855 = vmatprep.subr.mxu0 0.0
    %1856 = vmatpush1.msra.mxu0 0.0
    %1857 = vmatprep.subr.mxu0 0.0
    %1858 = vmatpush1.msra.mxu0 0.0
    %1859 = vmatprep.subr.mxu0 0.0
    %1860 = vmatpush1.msra.mxu0 0.0
    %1861 = vmatprep.subr.mxu0 0.0
    %1862 = vmatpush1.msra.mxu0 0.0
    %1863 = vmatprep.subr.mxu0 0.0
    %1864 = vmatpush1.msra.mxu0 0.0
    %1865 = vmatprep.subr.mxu0 0.0
    %1866 = vmatpush1.msra.mxu0 0.0
    %1867 = vmatprep.subr.mxu0 0.0
    %1868 = vmatpush1.msra.mxu0 0.0
    %1869 = vmatprep.subr.mxu0 0.0
    %1870 = vmatpush1.msra.mxu0 0.0
    %1871 = vmatprep.subr.mxu0 0.0
    %1872 = vmatpush1.msra.mxu0 0.0
    %1873 = vmatprep.subr.mxu0 0.0
    %1874 = vmatpush1.msra.mxu0 0.0
    %1875 = vmatprep.mubr.f32.mxu0 0.0
    %v1876 = vand.u32 %v1362, 4294901760
    %v1877 = vsub.f32 %v1362, %v1876
    %1878 = vmatmul.mubr.f32.gmra.mrb[0].mxu0 %v1877
    %v1879 = vpop.f32.mrb[0].mxu0
    %v1880 = vadd.f32 %v1714, %v1879
    %v1881 = vpop.f32.mrb[0].mxu0
    %1882 = vmatprep.mubr.f32.mxu0 0.0
    %v1883 = vand.u32 %v1365, 4294901760
    %v1884 = vsub.f32 %v1365, %v1883
    %1885 = vmatmul.mubr.f32.gmra.mrb[0].mxu0 %v1884
    %v1886 = vpop.f32.mrb[0].mxu0
    %v1887 = vadd.f32 %v1720, %v1886
    %v1888 = vpop.f32.mrb[0].mxu0
    %1889 = vmatprep.mubr.f32.mxu0 0.0
    %v1890 = vand.u32 %v1368, 4294901760
    %v1891 = vsub.f32 %v1368, %v1890
    %1892 = vmatmul.mubr.f32.gmra.mrb[0].mxu0 %v1891
    %v1893 = vpop.f32.mrb[0].mxu0
    %v1894 = vadd.f32 %v1726, %v1893
    %v1895 = vpop.f32.mrb[0].mxu0
    %1896 = vmatprep.mubr.f32.mxu0 0.0
    %v1897 = vand.u32 %v1371, 4294901760
    %v1898 = vsub.f32 %v1371, %v1897
    %1899 = vmatmul.mubr.f32.gmra.mrb[0].mxu0 %v1898
    %v1900 = vpop.f32.mrb[0].mxu0
    %v1901 = vadd.f32 %v1732, %v1900
    %v1902 = vpop.f32.mrb[0].mxu0
    %1903 = vmatprep.mubr.f32.mxu0 0.0
    %v1904 = vand.u32 %v1374, 4294901760
    %v1905 = vsub.f32 %v1374, %v1904
    %1906 = vmatmul.mubr.f32.gmra.mrb[0].mxu0 %v1905
    %v1907 = vpop.f32.mrb[0].mxu0
    %v1908 = vadd.f32 %v1738, %v1907
    %v1909 = vpop.f32.mrb[0].mxu0
    %1910 = vmatprep.mubr.f32.mxu0 0.0
    %v1911 = vand.u32 %v1377, 4294901760
    %v1912 = vsub.f32 %v1377, %v1911
    %1913 = vmatmul.mubr.f32.gmra.mrb[0].mxu0 %v1912
    %v1914 = vpop.f32.mrb[0].mxu0
    %v1915 = vadd.f32 %v1744, %v1914
    %v1916 = vpop.f32.mrb[0].mxu0
    %1917 = vmatprep.mubr.f32.mxu0 0.0
    %v1918 = vand.u32 %v1380, 4294901760
    %v1919 = vsub.f32 %v1380, %v1918
    %1920 = vmatmul.mubr.f32.gmra.mrb[0].mxu0 %v1919
    %v1921 = vpop.f32.mrb[0].mxu0
    %v1922 = vadd.f32 %v1750, %v1921
    %v1923 = vpop.f32.mrb[0].mxu0
    %1924 = vmatprep.mubr.f32.mxu0 0.0
    %v1925 = vand.u32 %v1383, 4294901760
    %v1926 = vsub.f32 %v1383, %v1925
    %1927 = vmatmul.mubr.f32.gmra.mrb[0].mxu0 %v1926
    %v1928 = vpop.f32.mrb[0].mxu0
    %v1929 = vadd.f32 %v1756, %v1928
    %v1930 = vpop.f32.mrb[0].mxu0
    %1931 = vmatprep.mubr.f32.mxu0 0.0
    %v1932 = vand.u32 %v1386, 4294901760
    %v1933 = vsub.f32 %v1386, %v1932
    %1934 = vmatmul.mubr.f32.gmra.mrb[0].mxu0 %v1933
    %v1935 = vpop.f32.mrb[0].mxu0
    %v1936 = vadd.f32 %v1762, %v1935
    %v1937 = vpop.f32.mrb[0].mxu0
    %1938 = vmatprep.mubr.f32.mxu0 0.0
    %v1939 = vand.u32 %v1389, 4294901760
    %v1940 = vsub.f32 %v1389, %v1939
    %1941 = vmatmul.mubr.f32.gmra.mrb[0].mxu0 %v1940
    %v1942 = vpop.f32.mrb[0].mxu0
    %v1943 = vadd.f32 %v1768, %v1942
    %v1944 = vpop.f32.mrb[0].mxu0
    %1945 = vmatprep.mubr.f32.mxu0 0.0
    %v1946 = vand.u32 %v1392, 4294901760
    %v1947 = vsub.f32 %v1392, %v1946
    %1948 = vmatmul.mubr.f32.gmra.mrb[0].mxu0 %v1947
    %v1949 = vpop.f32.mrb[0].mxu0
    %v1950 = vadd.f32 %v1774, %v1949
    %v1951 = vpop.f32.mrb[0].mxu0
    %1952 = vmatprep.mubr.f32.mxu0 0.0
    %v1953 = vand.u32 %v1395, 4294901760
    %v1954 = vsub.f32 %v1395, %v1953
    %1955 = vmatmul.mubr.f32.gmra.mrb[0].mxu0 %v1954
    %v1956 = vpop.f32.mrb[0].mxu0
    %v1957 = vadd.f32 %v1780, %v1956
    %v1958 = vpop.f32.mrb[0].mxu0
    %1959 = vmatprep.mubr.f32.mxu0 0.0
    %v1960 = vand.u32 %v1398, 4294901760
    %v1961 = vsub.f32 %v1398, %v1960
    %1962 = vmatmul.mubr.f32.gmra.mrb[0].mxu0 %v1961
    %v1963 = vpop.f32.mrb[0].mxu0
    %v1964 = vadd.f32 %v1786, %v1963
    %v1965 = vpop.f32.mrb[0].mxu0
    %1966 = vmatprep.mubr.f32.mxu0 0.0
    %v1967 = vand.u32 %v1401, 4294901760
    %v1968 = vsub.f32 %v1401, %v1967
    %1969 = vmatmul.mubr.f32.gmra.mrb[0].mxu0 %v1968
    %v1970 = vpop.f32.mrb[0].mxu0
    %v1971 = vadd.f32 %v1792, %v1970
    %v1972 = vpop.f32.mrb[0].mxu0
    %1973 = vmatprep.mubr.f32.mxu0 0.0
    %v1974 = vand.u32 %v1404, 4294901760
    %v1975 = vsub.f32 %v1404, %v1974
    %1976 = vmatmul.mubr.f32.gmra.mrb[0].mxu0 %v1975
    %v1977 = vpop.f32.mrb[0].mxu0
    %v1978 = vadd.f32 %v1798, %v1977
    %v1979 = vpop.f32.mrb[0].mxu0
    %1980 = vmatprep.mubr.f32.mxu0 0.0
    %v1981 = vand.u32 %v1407, 4294901760
    %v1982 = vsub.f32 %v1407, %v1981
    %1983 = vmatmul.mubr.f32.gmra.mrb[0].mxu0 %v1982
    %v1984 = vpop.f32.mrb[0].mxu0
    %v1985 = vadd.f32 %v1804, %v1984
    %v1986 = vpop.f32.mrb[0].mxu0
    %1987 = vdwg.mxu0
    %1988 = vmatprep.subr.mxu0 0.0
    %v1989 = vand.u32 %v1358, 4294901760
    %1990 = vmatpush1.msra.mxu0 %v1989
    %1991 = vmatprep.subr.mxu0 0.0
    %v1992 = vand.u32 %v1359, 4294901760
    %1993 = vmatpush1.msra.mxu0 %v1992
    %1994 = vmatprep.subr.mxu0 0.0
    %1995 = vmatpush1.msra.mxu0 0.0
    %1996 = vmatprep.subr.mxu0 0.0
    %1997 = vmatpush1.msra.mxu0 0.0
    %1998 = vmatprep.subr.mxu0 0.0
    %1999 = vmatpush1.msra.mxu0 0.0
    %2000 = vmatprep.subr.mxu0 0.0
    %2001 = vmatpush1.msra.mxu0 0.0
    %2002 = vmatprep.subr.mxu0 0.0
    %2003 = vmatpush1.msra.mxu0 0.0
    %2004 = vmatprep.subr.mxu0 0.0
    %2005 = vmatpush1.msra.mxu0 0.0
    %2006 = vmatprep.subr.mxu0 0.0
    %2007 = vmatpush1.msra.mxu0 0.0
    %2008 = vmatprep.subr.mxu0 0.0
    %2009 = vmatpush1.msra.mxu0 0.0
    %2010 = vmatprep.subr.mxu0 0.0
    %2011 = vmatpush1.msra.mxu0 0.0
    %2012 = vmatprep.subr.mxu0 0.0
    %2013 = vmatpush1.msra.mxu0 0.0
    %2014 = vmatprep.subr.mxu0 0.0
    %2015 = vmatpush1.msra.mxu0 0.0
    %2016 = vmatprep.subr.mxu0 0.0
    %2017 = vmatpush1.msra.mxu0 0.0
    %2018 = vmatprep.subr.mxu0 0.0
    %2019 = vmatpush1.msra.mxu0 0.0
    %2020 = vmatprep.subr.mxu0 0.0
    %2021 = vmatpush1.msra.mxu0 0.0
    %2022 = vmatprep.subr.mxu0 0.0
    %2023 = vmatpush1.msra.mxu0 0.0
    %2024 = vmatprep.subr.mxu0 0.0
    %2025 = vmatpush1.msra.mxu0 0.0
    %2026 = vmatprep.subr.mxu0 0.0
    %2027 = vmatpush1.msra.mxu0 0.0
    %2028 = vmatprep.subr.mxu0 0.0
    %2029 = vmatpush1.msra.mxu0 0.0
    %2030 = vmatprep.subr.mxu0 0.0
    %2031 = vmatpush1.msra.mxu0 0.0
    %2032 = vmatprep.subr.mxu0 0.0
    %2033 = vmatpush1.msra.mxu0 0.0
    %2034 = vmatprep.subr.mxu0 0.0
    %2035 = vmatpush1.msra.mxu0 0.0
    %2036 = vmatprep.subr.mxu0 0.0
    %2037 = vmatpush1.msra.mxu0 0.0
    %2038 = vmatprep.subr.mxu0 0.0
    %2039 = vmatpush1.msra.mxu0 0.0
    %2040 = vmatprep.subr.mxu0 0.0
    %2041 = vmatpush1.msra.mxu0 0.0
    %2042 = vmatprep.subr.mxu0 0.0
    %2043 = vmatpush1.msra.mxu0 0.0
    %2044 = vmatprep.subr.mxu0 0.0
    %2045 = vmatpush1.msra.mxu0 0.0
    %2046 = vmatprep.subr.mxu0 0.0
    %2047 = vmatpush1.msra.mxu0 0.0
    %2048 = vmatprep.subr.mxu0 0.0
    %2049 = vmatpush1.msra.mxu0 0.0
    %2050 = vmatprep.subr.mxu0 0.0
    %2051 = vmatpush1.msra.mxu0 0.0
    %2052 = vmatprep.subr.mxu0 0.0
    %2053 = vmatpush1.msra.mxu0 0.0
    %2054 = vmatprep.mubr.f32.mxu0 0.0
    %v2055 = vand.u32 %v1362, 4294901760
    %v2056 = vsub.f32 %v1362, %v2055
    %v2057 = vand.u32 %v2056, 4294901760
    %2058 = vmatmul.mubr.f32.gmra.mrb[0].mxu0 %v2057
    %v2059 = vpop.f32.mrb[0].mxu0
    %v2060 = vadd.f32 %v1880, %v2059
    %v2061 = vpop.f32.mrb[0].mxu0
    %2062 = vmatprep.mubr.f32.mxu0 0.0
    %v2063 = vand.u32 %v1365, 4294901760
    %v2064 = vsub.f32 %v1365, %v2063
    %v2065 = vand.u32 %v2064, 4294901760
    %2066 = vmatmul.mubr.f32.gmra.mrb[0].mxu0 %v2065
    %v2067 = vpop.f32.mrb[0].mxu0
    %v2068 = vadd.f32 %v1887, %v2067
    %v2069 = vpop.f32.mrb[0].mxu0
    %2070 = vmatprep.mubr.f32.mxu0 0.0
    %v2071 = vand.u32 %v1368, 4294901760
    %v2072 = vsub.f32 %v1368, %v2071
    %v2073 = vand.u32 %v2072, 4294901760
    %2074 = vmatmul.mubr.f32.gmra.mrb[0].mxu0 %v2073
    %v2075 = vpop.f32.mrb[0].mxu0
    %v2076 = vadd.f32 %v1894, %v2075
    %v2077 = vpop.f32.mrb[0].mxu0
    %2078 = vmatprep.mubr.f32.mxu0 0.0
    %v2079 = vand.u32 %v1371, 4294901760
    %v2080 = vsub.f32 %v1371, %v2079
    %v2081 = vand.u32 %v2080, 4294901760
    %2082 = vmatmul.mubr.f32.gmra.mrb[0].mxu0 %v2081
    %v2083 = vpop.f32.mrb[0].mxu0
    %v2084 = vadd.f32 %v1901, %v2083
    %v2085 = vpop.f32.mrb[0].mxu0
    %2086 = vmatprep.mubr.f32.mxu0 0.0
    %v2087 = vand.u32 %v1374, 4294901760
    %v2088 = vsub.f32 %v1374, %v2087
    %v2089 = vand.u32 %v2088, 4294901760
    %2090 = vmatmul.mubr.f32.gmra.mrb[0].mxu0 %v2089
    %v2091 = vpop.f32.mrb[0].mxu0
    %v2092 = vadd.f32 %v1908, %v2091
    %v2093 = vpop.f32.mrb[0].mxu0
    %2094 = vmatprep.mubr.f32.mxu0 0.0
    %v2095 = vand.u32 %v1377, 4294901760
    %v2096 = vsub.f32 %v1377, %v2095
    %v2097 = vand.u32 %v2096, 4294901760
    %2098 = vmatmul.mubr.f32.gmra.mrb[0].mxu0 %v2097
    %v2099 = vpop.f32.mrb[0].mxu0
    %v2100 = vadd.f32 %v1915, %v2099
    %v2101 = vpop.f32.mrb[0].mxu0
    %2102 = vmatprep.mubr.f32.mxu0 0.0
    %v2103 = vand.u32 %v1380, 4294901760
    %v2104 = vsub.f32 %v1380, %v2103
    %v2105 = vand.u32 %v2104, 4294901760
    %2106 = vmatmul.mubr.f32.gmra.mrb[0].mxu0 %v2105
    %v2107 = vpop.f32.mrb[0].mxu0
    %v2108 = vadd.f32 %v1922, %v2107
    %v2109 = vpop.f32.mrb[0].mxu0
    %2110 = vmatprep.mubr.f32.mxu0 0.0
    %v2111 = vand.u32 %v1383, 4294901760
    %v2112 = vsub.f32 %v1383, %v2111
    %v2113 = vand.u32 %v2112, 4294901760
    %2114 = vmatmul.mubr.f32.gmra.mrb[0].mxu0 %v2113
    %v2115 = vpop.f32.mrb[0].mxu0
    %v2116 = vadd.f32 %v1929, %v2115
    %v2117 = vpop.f32.mrb[0].mxu0
    %2118 = vmatprep.mubr.f32.mxu0 0.0
    %v2119 = vand.u32 %v1386, 4294901760
    %v2120 = vsub.f32 %v1386, %v2119
    %v2121 = vand.u32 %v2120, 4294901760
    %2122 = vmatmul.mubr.f32.gmra.mrb[0].mxu0 %v2121
    %v2123 = vpop.f32.mrb[0].mxu0
    %v2124 = vadd.f32 %v1936, %v2123
    %v2125 = vpop.f32.mrb[0].mxu0
    %2126 = vmatprep.mubr.f32.mxu0 0.0
    %v2127 = vand.u32 %v1389, 4294901760
    %v2128 = vsub.f32 %v1389, %v2127
    %v2129 = vand.u32 %v2128, 4294901760
    %2130 = vmatmul.mubr.f32.gmra.mrb[0].mxu0 %v2129
    %v2131 = vpop.f32.mrb[0].mxu0
    %v2132 = vadd.f32 %v1943, %v2131
    %v2133 = vpop.f32.mrb[0].mxu0
    %2134 = vmatprep.mubr.f32.mxu0 0.0
    %v2135 = vand.u32 %v1392, 4294901760
    %v2136 = vsub.f32 %v1392, %v2135
    %v2137 = vand.u32 %v2136, 4294901760
    %2138 = vmatmul.mubr.f32.gmra.mrb[0].mxu0 %v2137
    %v2139 = vpop.f32.mrb[0].mxu0
    %v2140 = vadd.f32 %v1950, %v2139
    %v2141 = vpop.f32.mrb[0].mxu0
    %2142 = vmatprep.mubr.f32.mxu0 0.0
    %v2143 = vand.u32 %v1395, 4294901760
    %v2144 = vsub.f32 %v1395, %v2143
    %v2145 = vand.u32 %v2144, 4294901760
    %2146 = vmatmul.mubr.f32.gmra.mrb[0].mxu0 %v2145
    %v2147 = vpop.f32.mrb[0].mxu0
    %v2148 = vadd.f32 %v1957, %v2147
    %v2149 = vpop.f32.mrb[0].mxu0
    %2150 = vmatprep.mubr.f32.mxu0 0.0
    %v2151 = vand.u32 %v1398, 4294901760
    %v2152 = vsub.f32 %v1398, %v2151
    %v2153 = vand.u32 %v2152, 4294901760
    %2154 = vmatmul.mubr.f32.gmra.mrb[0].mxu0 %v2153
    %v2155 = vpop.f32.mrb[0].mxu0
    %v2156 = vadd.f32 %v1964, %v2155
    %v2157 = vpop.f32.mrb[0].mxu0
    %2158 = vmatprep.mubr.f32.mxu0 0.0
    %v2159 = vand.u32 %v1401, 4294901760
    %v2160 = vsub.f32 %v1401, %v2159
    %v2161 = vand.u32 %v2160, 4294901760
    %2162 = vmatmul.mubr.f32.gmra.mrb[0].mxu0 %v2161
    %v2163 = vpop.f32.mrb[0].mxu0
    %v2164 = vadd.f32 %v1971, %v2163
    %v2165 = vpop.f32.mrb[0].mxu0
    %2166 = vmatprep.mubr.f32.mxu0 0.0
    %v2167 = vand.u32 %v1404, 4294901760
    %v2168 = vsub.f32 %v1404, %v2167
    %v2169 = vand.u32 %v2168, 4294901760
    %2170 = vmatmul.mubr.f32.gmra.mrb[0].mxu0 %v2169
    %v2171 = vpop.f32.mrb[0].mxu0
    %v2172 = vadd.f32 %v1978, %v2171
    %v2173 = vpop.f32.mrb[0].mxu0
    %2174 = vmatprep.mubr.f32.mxu0 0.0
    %v2175 = vand.u32 %v1407, 4294901760
    %v2176 = vsub.f32 %v1407, %v2175
    %v2177 = vand.u32 %v2176, 4294901760
    %2178 = vmatmul.mubr.f32.gmra.mrb[0].mxu0 %v2177
    %v2179 = vpop.f32.mrb[0].mxu0
    %v2180 = vadd.f32 %v1985, %v2179
    %v2181 = vpop.f32.mrb[0].mxu0
    %2182 = vdwg.mxu0
    %2183 = vmatprep.subr.mxu0 0.0
    %v2184 = vand.u32 %v1358, 4294901760
    %v2185 = vsub.f32 %v1358, %v2184
    %v2186 = vand.u32 %v2185, 4294901760
    %2187 = vmatpush1.msra.mxu0 %v2186
    %2188 = vmatprep.subr.mxu0 0.0
    %v2189 = vand.u32 %v1359, 4294901760
    %v2190 = vsub.f32 %v1359, %v2189
    %v2191 = vand.u32 %v2190, 4294901760
    %2192 = vmatpush1.msra.mxu0 %v2191
    %2193 = vmatprep.subr.mxu0 0.0
    %2194 = vmatpush1.msra.mxu0 0.0
    %2195 = vmatprep.subr.mxu0 0.0
    %2196 = vmatpush1.msra.mxu0 0.0
    %2197 = vmatprep.subr.mxu0 0.0
    %2198 = vmatpush1.msra.mxu0 0.0
    %2199 = vmatprep.subr.mxu0 0.0
    %2200 = vmatpush1.msra.mxu0 0.0
    %2201 = vmatprep.subr.mxu0 0.0
    %2202 = vmatpush1.msra.mxu0 0.0
    %2203 = vmatprep.subr.mxu0 0.0
    %2204 = vmatpush1.msra.mxu0 0.0
    %2205 = vmatprep.subr.mxu0 0.0
    %2206 = vmatpush1.msra.mxu0 0.0
    %2207 = vmatprep.subr.mxu0 0.0
    %2208 = vmatpush1.msra.mxu0 0.0
    %2209 = vmatprep.subr.mxu0 0.0
    %2210 = vmatpush1.msra.mxu0 0.0
    %2211 = vmatprep.subr.mxu0 0.0
    %2212 = vmatpush1.msra.mxu0 0.0
    %2213 = vmatprep.subr.mxu0 0.0
    %2214 = vmatpush1.msra.mxu0 0.0
    %2215 = vmatprep.subr.mxu0 0.0
    %2216 = vmatpush1.msra.mxu0 0.0
    %2217 = vmatprep.subr.mxu0 0.0
    %2218 = vmatpush1.msra.mxu0 0.0
    %2219 = vmatprep.subr.mxu0 0.0
    %2220 = vmatpush1.msra.mxu0 0.0
    %2221 = vmatprep.subr.mxu0 0.0
    %2222 = vmatpush1.msra.mxu0 0.0
    %2223 = vmatprep.subr.mxu0 0.0
    %2224 = vmatpush1.msra.mxu0 0.0
    %2225 = vmatprep.subr.mxu0 0.0
    %2226 = vmatpush1.msra.mxu0 0.0
    %2227 = vmatprep.subr.mxu0 0.0
    %2228 = vmatpush1.msra.mxu0 0.0
    %2229 = vmatprep.subr.mxu0 0.0
    %2230 = vmatpush1.msra.mxu0 0.0
    %2231 = vmatprep.subr.mxu0 0.0
    %2232 = vmatpush1.msra.mxu0 0.0
    %2233 = vmatprep.subr.mxu0 0.0
    %2234 = vmatpush1.msra.mxu0 0.0
    %2235 = vmatprep.subr.mxu0 0.0
    %2236 = vmatpush1.msra.mxu0 0.0
    %2237 = vmatprep.subr.mxu0 0.0
    %2238 = vmatpush1.msra.mxu0 0.0
    %2239 = vmatprep.subr.mxu0 0.0
    %2240 = vmatpush1.msra.mxu0 0.0
    %2241 = vmatprep.subr.mxu0 0.0
    %2242 = vmatpush1.msra.mxu0 0.0
    %2243 = vmatprep.subr.mxu0 0.0
    %2244 = vmatpush1.msra.mxu0 0.0
    %2245 = vmatprep.subr.mxu0 0.0
    %2246 = vmatpush1.msra.mxu0 0.0
    %2247 = vmatprep.subr.mxu0 0.0
    %2248 = vmatpush1.msra.mxu0 0.0
    %2249 = vmatprep.subr.mxu0 0.0
    %2250 = vmatpush1.msra.mxu0 0.0
    %2251 = vmatprep.subr.mxu0 0.0
    %2252 = vmatpush1.msra.mxu0 0.0
    %2253 = vmatprep.mubr.f32.mxu0 0.0
    %v2254 = vand.u32 %v1362, 4294901760
    %2255 = vmatmul.mubr.f32.gmra.mrb[0].mxu0 %v2254
    %v2256 = vpop.f32.mrb[0].mxu0
    %v2257 = vadd.f32 %v2060, %v2256
    %v2258 = vpop.f32.mrb[0].mxu0
    %2259 = vmatprep.mubr.f32.mxu0 0.0
    %v2260 = vand.u32 %v1365, 4294901760
    %2261 = vmatmul.mubr.f32.gmra.mrb[0].mxu0 %v2260
    %v2262 = vpop.f32.mrb[0].mxu0
    %v2263 = vadd.f32 %v2068, %v2262
    %v2264 = vpop.f32.mrb[0].mxu0
    %2265 = vmatprep.mubr.f32.mxu0 0.0
    %v2266 = vand.u32 %v1368, 4294901760
    %2267 = vmatmul.mubr.f32.gmra.mrb[0].mxu0 %v2266
    %v2268 = vpop.f32.mrb[0].mxu0
    %v2269 = vadd.f32 %v2076, %v2268
    %v2270 = vpop.f32.mrb[0].mxu0
    %2271 = vmatprep.mubr.f32.mxu0 0.0
    %v2272 = vand.u32 %v1371, 4294901760
    %2273 = vmatmul.mubr.f32.gmra.mrb[0].mxu0 %v2272
    %v2274 = vpop.f32.mrb[0].mxu0
    %v2275 = vadd.f32 %v2084, %v2274
    %v2276 = vpop.f32.mrb[0].mxu0
    %2277 = vmatprep.mubr.f32.mxu0 0.0
    %v2278 = vand.u32 %v1374, 4294901760
    %2279 = vmatmul.mubr.f32.gmra.mrb[0].mxu0 %v2278
    %v2280 = vpop.f32.mrb[0].mxu0
    %v2281 = vadd.f32 %v2092, %v2280
    %v2282 = vpop.f32.mrb[0].mxu0
    %2283 = vmatprep.mubr.f32.mxu0 0.0
    %v2284 = vand.u32 %v1377, 4294901760
    %2285 = vmatmul.mubr.f32.gmra.mrb[0].mxu0 %v2284
    %v2286 = vpop.f32.mrb[0].mxu0
    %v2287 = vadd.f32 %v2100, %v2286
    %v2288 = vpop.f32.mrb[0].mxu0
    %2289 = vmatprep.mubr.f32.mxu0 0.0
    %v2290 = vand.u32 %v1380, 4294901760
    %2291 = vmatmul.mubr.f32.gmra.mrb[0].mxu0 %v2290
    %v2292 = vpop.f32.mrb[0].mxu0
    %v2293 = vadd.f32 %v2108, %v2292
    %v2294 = vpop.f32.mrb[0].mxu0
    %2295 = vmatprep.mubr.f32.mxu0 0.0
    %v2296 = vand.u32 %v1383, 4294901760
    %2297 = vmatmul.mubr.f32.gmra.mrb[0].mxu0 %v2296
    %v2298 = vpop.f32.mrb[0].mxu0
    %v2299 = vadd.f32 %v2116, %v2298
    %v2300 = vpop.f32.mrb[0].mxu0
    %2301 = vmatprep.mubr.f32.mxu0 0.0
    %v2302 = vand.u32 %v1386, 4294901760
    %2303 = vmatmul.mubr.f32.gmra.mrb[0].mxu0 %v2302
    %v2304 = vpop.f32.mrb[0].mxu0
    %v2305 = vadd.f32 %v2124, %v2304
    %v2306 = vpop.f32.mrb[0].mxu0
    %2307 = vmatprep.mubr.f32.mxu0 0.0
    %v2308 = vand.u32 %v1389, 4294901760
    %2309 = vmatmul.mubr.f32.gmra.mrb[0].mxu0 %v2308
    %v2310 = vpop.f32.mrb[0].mxu0
    %v2311 = vadd.f32 %v2132, %v2310
    %v2312 = vpop.f32.mrb[0].mxu0
    %2313 = vmatprep.mubr.f32.mxu0 0.0
    %v2314 = vand.u32 %v1392, 4294901760
    %2315 = vmatmul.mubr.f32.gmra.mrb[0].mxu0 %v2314
    %v2316 = vpop.f32.mrb[0].mxu0
    %v2317 = vadd.f32 %v2140, %v2316
    %v2318 = vpop.f32.mrb[0].mxu0
    %2319 = vmatprep.mubr.f32.mxu0 0.0
    %v2320 = vand.u32 %v1395, 4294901760
    %2321 = vmatmul.mubr.f32.gmra.mrb[0].mxu0 %v2320
    %v2322 = vpop.f32.mrb[0].mxu0
    %v2323 = vadd.f32 %v2148, %v2322
    %v2324 = vpop.f32.mrb[0].mxu0
    %2325 = vmatprep.mubr.f32.mxu0 0.0
    %v2326 = vand.u32 %v1398, 4294901760
    %2327 = vmatmul.mubr.f32.gmra.mrb[0].mxu0 %v2326
    %v2328 = vpop.f32.mrb[0].mxu0
    %v2329 = vadd.f32 %v2156, %v2328
    %v2330 = vpop.f32.mrb[0].mxu0
    %2331 = vmatprep.mubr.f32.mxu0 0.0
    %v2332 = vand.u32 %v1401, 4294901760
    %2333 = vmatmul.mubr.f32.gmra.mrb[0].mxu0 %v2332
    %v2334 = vpop.f32.mrb[0].mxu0
    %v2335 = vadd.f32 %v2164, %v2334
    %v2336 = vpop.f32.mrb[0].mxu0
    %2337 = vmatprep.mubr.f32.mxu0 0.0
    %v2338 = vand.u32 %v1404, 4294901760
    %2339 = vmatmul.mubr.f32.gmra.mrb[0].mxu0 %v2338
    %v2340 = vpop.f32.mrb[0].mxu0
    %v2341 = vadd.f32 %v2172, %v2340
    %v2342 = vpop.f32.mrb[0].mxu0
    %2343 = vmatprep.mubr.f32.mxu0 0.0
    %v2344 = vand.u32 %v1407, 4294901760
    %2345 = vmatmul.mubr.f32.gmra.mrb[0].mxu0 %v2344
    %v2346 = vpop.f32.mrb[0].mxu0
    %v2347 = vadd.f32 %v2180, %v2346
    %v2348 = vpop.f32.mrb[0].mxu0
    %2349 = vdwg.mxu0
    %2350 = vmatprep.subr.mxu0 0.0
    %v2351 = vand.u32 %v1358, 4294901760
    %2352 = vmatpush1.msra.mxu0 %v2351
    %2353 = vmatprep.subr.mxu0 0.0
    %v2354 = vand.u32 %v1359, 4294901760
    %2355 = vmatpush1.msra.mxu0 %v2354
    %2356 = vmatprep.subr.mxu0 0.0
    %2357 = vmatpush1.msra.mxu0 0.0
    %2358 = vmatprep.subr.mxu0 0.0
    %2359 = vmatpush1.msra.mxu0 0.0
    %2360 = vmatprep.subr.mxu0 0.0
    %2361 = vmatpush1.msra.mxu0 0.0
    %2362 = vmatprep.subr.mxu0 0.0
    %2363 = vmatpush1.msra.mxu0 0.0
    %2364 = vmatprep.subr.mxu0 0.0
    %2365 = vmatpush1.msra.mxu0 0.0
    %2366 = vmatprep.subr.mxu0 0.0
    %2367 = vmatpush1.msra.mxu0 0.0
    %2368 = vmatprep.subr.mxu0 0.0
    %2369 = vmatpush1.msra.mxu0 0.0
    %2370 = vmatprep.subr.mxu0 0.0
    %2371 = vmatpush1.msra.mxu0 0.0
    %2372 = vmatprep.subr.mxu0 0.0
    %2373 = vmatpush1.msra.mxu0 0.0
    %2374 = vmatprep.subr.mxu0 0.0
    %2375 = vmatpush1.msra.mxu0 0.0
    %2376 = vmatprep.subr.mxu0 0.0
    %2377 = vmatpush1.msra.mxu0 0.0
    %2378 = vmatprep.subr.mxu0 0.0
    %2379 = vmatpush1.msra.mxu0 0.0
    %2380 = vmatprep.subr.mxu0 0.0
    %2381 = vmatpush1.msra.mxu0 0.0
    %2382 = vmatprep.subr.mxu0 0.0
    %2383 = vmatpush1.msra.mxu0 0.0
    %2384 = vmatprep.subr.mxu0 0.0
    %2385 = vmatpush1.msra.mxu0 0.0
    %2386 = vmatprep.subr.mxu0 0.0
    %2387 = vmatpush1.msra.mxu0 0.0
    %2388 = vmatprep.subr.mxu0 0.0
    %2389 = vmatpush1.msra.mxu0 0.0
    %2390 = vmatprep.subr.mxu0 0.0
    %2391 = vmatpush1.msra.mxu0 0.0
    %2392 = vmatprep.subr.mxu0 0.0
    %2393 = vmatpush1.msra.mxu0 0.0
    %2394 = vmatprep.subr.mxu0 0.0
    %2395 = vmatpush1.msra.mxu0 0.0
    %2396 = vmatprep.subr.mxu0 0.0
    %2397 = vmatpush1.msra.mxu0 0.0
    %2398 = vmatprep.subr.mxu0 0.0
    %2399 = vmatpush1.msra.mxu0 0.0
    %2400 = vmatprep.subr.mxu0 0.0
    %2401 = vmatpush1.msra.mxu0 0.0
    %2402 = vmatprep.subr.mxu0 0.0
    %2403 = vmatpush1.msra.mxu0 0.0
    %2404 = vmatprep.subr.mxu0 0.0
    %2405 = vmatpush1.msra.mxu0 0.0
    %2406 = vmatprep.subr.mxu0 0.0
    %2407 = vmatpush1.msra.mxu0 0.0
    %2408 = vmatprep.subr.mxu0 0.0
    %2409 = vmatpush1.msra.mxu0 0.0
    %2410 = vmatprep.subr.mxu0 0.0
    %2411 = vmatpush1.msra.mxu0 0.0
    %2412 = vmatprep.subr.mxu0 0.0
    %2413 = vmatpush1.msra.mxu0 0.0
    %2414 = vmatprep.subr.mxu0 0.0
    %2415 = vmatpush1.msra.mxu0 0.0
    %2416 = vmatprep.mubr.f32.mxu0 0.0
    %v2417 = vand.u32 %v1362, 4294901760
    %2418 = vmatmul.mubr.f32.gmra.mrb[0].mxu0 %v2417
    %v2419 = vpop.f32.mrb[0].mxu0
    %v2420 = vadd.f32 %v2257, %v2419
    %v2421 = vpop.f32.mrb[0].mxu0
    %2422 = vmatprep.mubr.f32.mxu0 0.0
    %v2423 = vand.u32 %v1365, 4294901760
    %2424 = vmatmul.mubr.f32.gmra.mrb[0].mxu0 %v2423
    %v2425 = vpop.f32.mrb[0].mxu0
    %v2426 = vadd.f32 %v2263, %v2425
    %v2427 = vpop.f32.mrb[0].mxu0
    %2428 = vmatprep.mubr.f32.mxu0 0.0
    %v2429 = vand.u32 %v1368, 4294901760
    %2430 = vmatmul.mubr.f32.gmra.mrb[0].mxu0 %v2429
    %v2431 = vpop.f32.mrb[0].mxu0
    %v2432 = vadd.f32 %v2269, %v2431
    %v2433 = vpop.f32.mrb[0].mxu0
    %2434 = vmatprep.mubr.f32.mxu0 0.0
    %v2435 = vand.u32 %v1371, 4294901760
    %2436 = vmatmul.mubr.f32.gmra.mrb[0].mxu0 %v2435
    %v2437 = vpop.f32.mrb[0].mxu0
    %v2438 = vadd.f32 %v2275, %v2437
    %v2439 = vpop.f32.mrb[0].mxu0
    %2440 = vmatprep.mubr.f32.mxu0 0.0
    %v2441 = vand.u32 %v1374, 4294901760
    %2442 = vmatmul.mubr.f32.gmra.mrb[0].mxu0 %v2441
    %v2443 = vpop.f32.mrb[0].mxu0
    %v2444 = vadd.f32 %v2281, %v2443
    %v2445 = vpop.f32.mrb[0].mxu0
    %2446 = vmatprep.mubr.f32.mxu0 0.0
    %v2447 = vand.u32 %v1377, 4294901760
    %2448 = vmatmul.mubr.f32.gmra.mrb[0].mxu0 %v2447
    %v2449 = vpop.f32.mrb[0].mxu0
    %v2450 = vadd.f32 %v2287, %v2449
    %v2451 = vpop.f32.mrb[0].mxu0
    %2452 = vmatprep.mubr.f32.mxu0 0.0
    %v2453 = vand.u32 %v1380, 4294901760
    %2454 = vmatmul.mubr.f32.gmra.mrb[0].mxu0 %v2453
    %v2455 = vpop.f32.mrb[0].mxu0
    %v2456 = vadd.f32 %v2293, %v2455
    %v2457 = vpop.f32.mrb[0].mxu0
    %2458 = vmatprep.mubr.f32.mxu0 0.0
    %v2459 = vand.u32 %v1383, 4294901760
    %2460 = vmatmul.mubr.f32.gmra.mrb[0].mxu0 %v2459
    %v2461 = vpop.f32.mrb[0].mxu0
    %v2462 = vadd.f32 %v2299, %v2461
    %v2463 = vpop.f32.mrb[0].mxu0
    %2464 = vmatprep.mubr.f32.mxu0 0.0
    %v2465 = vand.u32 %v1386, 4294901760
    %2466 = vmatmul.mubr.f32.gmra.mrb[0].mxu0 %v2465
    %v2467 = vpop.f32.mrb[0].mxu0
    %v2468 = vadd.f32 %v2305, %v2467
    %v2469 = vpop.f32.mrb[0].mxu0
    %2470 = vmatprep.mubr.f32.mxu0 0.0
    %v2471 = vand.u32 %v1389, 4294901760
    %2472 = vmatmul.mubr.f32.gmra.mrb[0].mxu0 %v2471
    %v2473 = vpop.f32.mrb[0].mxu0
    %v2474 = vadd.f32 %v2311, %v2473
    %v2475 = vpop.f32.mrb[0].mxu0
    %2476 = vmatprep.mubr.f32.mxu0 0.0
    %v2477 = vand.u32 %v1392, 4294901760
    %2478 = vmatmul.mubr.f32.gmra.mrb[0].mxu0 %v2477
    %v2479 = vpop.f32.mrb[0].mxu0
    %v2480 = vadd.f32 %v2317, %v2479
    %v2481 = vpop.f32.mrb[0].mxu0
    %2482 = vmatprep.mubr.f32.mxu0 0.0
    %v2483 = vand.u32 %v1395, 4294901760
    %2484 = vmatmul.mubr.f32.gmra.mrb[0].mxu0 %v2483
    %v2485 = vpop.f32.mrb[0].mxu0
    %v2486 = vadd.f32 %v2323, %v2485
    %v2487 = vpop.f32.mrb[0].mxu0
    %2488 = vmatprep.mubr.f32.mxu0 0.0
    %v2489 = vand.u32 %v1398, 4294901760
    %2490 = vmatmul.mubr.f32.gmra.mrb[0].mxu0 %v2489
    %v2491 = vpop.f32.mrb[0].mxu0
    %v2492 = vadd.f32 %v2329, %v2491
    %v2493 = vpop.f32.mrb[0].mxu0
    %2494 = vmatprep.mubr.f32.mxu0 0.0
    %v2495 = vand.u32 %v1401, 4294901760
    %2496 = vmatmul.mubr.f32.gmra.mrb[0].mxu0 %v2495
    %v2497 = vpop.f32.mrb[0].mxu0
    %v2498 = vadd.f32 %v2335, %v2497
    %v2499 = vpop.f32.mrb[0].mxu0
    %2500 = vmatprep.mubr.f32.mxu0 0.0
    %v2501 = vand.u32 %v1404, 4294901760
    %2502 = vmatmul.mubr.f32.gmra.mrb[0].mxu0 %v2501
    %v2503 = vpop.f32.mrb[0].mxu0
    %v2504 = vadd.f32 %v2341, %v2503
    %v2505 = vpop.f32.mrb[0].mxu0
    %2506 = vmatprep.mubr.f32.mxu0 0.0
    %v2507 = vand.u32 %v1407, 4294901760
    %2508 = vmatmul.mubr.f32.gmra.mrb[0].mxu0 %v2507
    %v2509 = vpop.f32.mrb[0].mxu0
    %v2510 = vadd.f32 %v2347, %v2509
    %v2511 = vpop.f32.mrb[0].mxu0
    %2512 = vdwg.mxu0
    %v2513 = vld [vmem:[%s4] sm:$0xff]
    %v2514 = vld [vmem:[%s4 + $0x8] sm:$0xff]
    %v2515 = vld [vmem:[%s4 + $0x10] sm:$0xff]
    %v2516 = vld [vmem:[%s4 + $0x18] sm:$0xff]
    %v2517 = vld [vmem:[%s4 + $0x20] sm:$0xff]
    %v2518 = vld [vmem:[%s4 + $0x28] sm:$0xff]
    %v2519 = vld [vmem:[%s4 + $0x30] sm:$0xff]
    %v2520 = vld [vmem:[%s4 + $0x38] sm:$0xff]
    %v2521 = vld [vmem:[%s4 + $0x40] sm:$0xff]
    %v2522 = vld [vmem:[%s4 + $0x48] sm:$0xff]
    %v2523 = vld [vmem:[%s4 + $0x50] sm:$0xff]
    %v2524 = vld [vmem:[%s4 + $0x58] sm:$0xff]
    %v2525 = vld [vmem:[%s4 + $0x60] sm:$0xff]
    %v2526 = vld [vmem:[%s4 + $0x68] sm:$0xff]
    %v2527 = vld [vmem:[%s4 + $0x70] sm:$0xff]
    %v2528 = vld [vmem:[%s4 + $0x78] sm:$0xff]
    %v2529 = vld [vmem:[%s5] sm:$0xff]
    %v2530 = vld [vmem:[%s5 + $0x8] sm:$0xff]
    %v2532 = vsel %vm1360, %v40, 0
    %v2535 = vsel %vm1360, %v41, 0
    %v2538 = vsel %vm1360, %v42, 0
    %v2541 = vsel %vm1360, %v43, 0
    %v2544 = vsel %vm1360, %v44, 0
    %v2547 = vsel %vm1360, %v45, 0
    %v2550 = vsel %vm1360, %v46, 0
    %v2553 = vsel %vm1360, %v47, 0
    %v2556 = vsel %vm1360, %v48, 0
    %v2559 = vsel %vm1360, %v49, 0
    %v2562 = vsel %vm1360, %v50, 0
    %v2565 = vsel %vm1360, %v51, 0
    %v2568 = vsel %vm1360, %v52, 0
    %v2571 = vsel %vm1360, %v53, 0
    %v2574 = vsel %vm1360, %v54, 0
    %v2577 = vsel %vm1360, %v55, 0
    %2579 = vmatprep.subr.mxu0 0.0
    %v2580 = vand.u32 %v2529, 4294901760
    %2581 = vmatpush1.msra.mxu0 %v2580
    %2582 = vmatprep.subr.mxu0 0.0
    %v2583 = vand.u32 %v2530, 4294901760
    %2584 = vmatpush1.msra.mxu0 %v2583
    %2585 = vmatprep.subr.mxu0 0.0
    %2586 = vmatpush1.msra.mxu0 0.0
    %2587 = vmatprep.subr.mxu0 0.0
    %2588 = vmatpush1.msra.mxu0 0.0
    %2589 = vmatprep.subr.mxu0 0.0
    %2590 = vmatpush1.msra.mxu0 0.0
    %2591 = vmatprep.subr.mxu0 0.0
    %2592 = vmatpush1.msra.mxu0 0.0
    %2593 = vmatprep.subr.mxu0 0.0
    %2594 = vmatpush1.msra.mxu0 0.0
    %2595 = vmatprep.subr.mxu0 0.0
    %2596 = vmatpush1.msra.mxu0 0.0
    %2597 = vmatprep.subr.mxu0 0.0
    %2598 = vmatpush1.msra.mxu0 0.0
    %2599 = vmatprep.subr.mxu0 0.0
    %2600 = vmatpush1.msra.mxu0 0.0
    %2601 = vmatprep.subr.mxu0 0.0
    %2602 = vmatpush1.msra.mxu0 0.0
    %2603 = vmatprep.subr.mxu0 0.0
    %2604 = vmatpush1.msra.mxu0 0.0
    %2605 = vmatprep.subr.mxu0 0.0
    %2606 = vmatpush1.msra.mxu0 0.0
    %2607 = vmatprep.subr.mxu0 0.0
    %2608 = vmatpush1.msra.mxu0 0.0
    %2609 = vmatprep.subr.mxu0 0.0
    %2610 = vmatpush1.msra.mxu0 0.0
    %2611 = vmatprep.subr.mxu0 0.0
    %2612 = vmatpush1.msra.mxu0 0.0
    %2613 = vmatprep.subr.mxu0 0.0
    %2614 = vmatpush1.msra.mxu0 0.0
    %2615 = vmatprep.subr.mxu0 0.0
    %2616 = vmatpush1.msra.mxu0 0.0
    %2617 = vmatprep.subr.mxu0 0.0
    %2618 = vmatpush1.msra.mxu0 0.0
    %2619 = vmatprep.subr.mxu0 0.0
    %2620 = vmatpush1.msra.mxu0 0.0
    %2621 = vmatprep.subr.mxu0 0.0
    %2622 = vmatpush1.msra.mxu0 0.0
    %2623 = vmatprep.subr.mxu0 0.0
    %2624 = vmatpush1.msra.mxu0 0.0
    %2625 = vmatprep.subr.mxu0 0.0
    %2626 = vmatpush1.msra.mxu0 0.0
    %2627 = vmatprep.subr.mxu0 0.0
    %2628 = vmatpush1.msra.mxu0 0.0
    %2629 = vmatprep.subr.mxu0 0.0
    %2630 = vmatpush1.msra.mxu0 0.0
    %2631 = vmatprep.subr.mxu0 0.0
    %2632 = vmatpush1.msra.mxu0 0.0
    %2633 = vmatprep.subr.mxu0 0.0
    %2634 = vmatpush1.msra.mxu0 0.0
    %2635 = vmatprep.subr.mxu0 0.0
    %2636 = vmatpush1.msra.mxu0 0.0
    %2637 = vmatprep.subr.mxu0 0.0
    %2638 = vmatpush1.msra.mxu0 0.0
    %2639 = vmatprep.subr.mxu0 0.0
    %2640 = vmatpush1.msra.mxu0 0.0
    %2641 = vmatprep.subr.mxu0 0.0
    %2642 = vmatpush1.msra.mxu0 0.0
    %2643 = vmatprep.subr.mxu0 0.0
    %2644 = vmatpush1.msra.mxu0 0.0
    %2645 = vmatprep.mubr.f32.mxu0 0.0
    %v2646 = vand.u32 %v2532, 4294901760
    %v2647 = vsub.f32 %v2532, %v2646
    %v2648 = vand.u32 %v2647, 4294901760
    %v2649 = vsub.f32 %v2647, %v2648
    %v2650 = vand.u32 %v2649, 4294901760
    %2651 = vmatmul.mubr.f32.gmra.mrb[0].mxu0 %v2650
    %v2652 = vpop.f32.mrb[0].mxu0
    %v2653 = vadd.f32 0.0, %v2652
    %v2654 = vpop.f32.mrb[0].mxu0
    %2655 = vmatprep.mubr.f32.mxu0 0.0
    %v2656 = vand.u32 %v2535, 4294901760
    %v2657 = vsub.f32 %v2535, %v2656
    %v2658 = vand.u32 %v2657, 4294901760
    %v2659 = vsub.f32 %v2657, %v2658
    %v2660 = vand.u32 %v2659, 4294901760
    %2661 = vmatmul.mubr.f32.gmra.mrb[0].mxu0 %v2660
    %v2662 = vpop.f32.mrb[0].mxu0
    %v2663 = vadd.f32 0.0, %v2662
    %v2664 = vpop.f32.mrb[0].mxu0
    %2665 = vmatprep.mubr.f32.mxu0 0.0
    %v2666 = vand.u32 %v2538, 4294901760
    %v2667 = vsub.f32 %v2538, %v2666
    %v2668 = vand.u32 %v2667, 4294901760
    %v2669 = vsub.f32 %v2667, %v2668
    %v2670 = vand.u32 %v2669, 4294901760
    %2671 = vmatmul.mubr.f32.gmra.mrb[0].mxu0 %v2670
    %v2672 = vpop.f32.mrb[0].mxu0
    %v2673 = vadd.f32 0.0, %v2672
    %v2674 = vpop.f32.mrb[0].mxu0
    %2675 = vmatprep.mubr.f32.mxu0 0.0
    %v2676 = vand.u32 %v2541, 4294901760
    %v2677 = vsub.f32 %v2541, %v2676
    %v2678 = vand.u32 %v2677, 4294901760
    %v2679 = vsub.f32 %v2677, %v2678
    %v2680 = vand.u32 %v2679, 4294901760
    %2681 = vmatmul.mubr.f32.gmra.mrb[0].mxu0 %v2680
    %v2682 = vpop.f32.mrb[0].mxu0
    %v2683 = vadd.f32 0.0, %v2682
    %v2684 = vpop.f32.mrb[0].mxu0
    %2685 = vmatprep.mubr.f32.mxu0 0.0
    %v2686 = vand.u32 %v2544, 4294901760
    %v2687 = vsub.f32 %v2544, %v2686
    %v2688 = vand.u32 %v2687, 4294901760
    %v2689 = vsub.f32 %v2687, %v2688
    %v2690 = vand.u32 %v2689, 4294901760
    %2691 = vmatmul.mubr.f32.gmra.mrb[0].mxu0 %v2690
    %v2692 = vpop.f32.mrb[0].mxu0
    %v2693 = vadd.f32 0.0, %v2692
    %v2694 = vpop.f32.mrb[0].mxu0
    %2695 = vmatprep.mubr.f32.mxu0 0.0
    %v2696 = vand.u32 %v2547, 4294901760
    %v2697 = vsub.f32 %v2547, %v2696
    %v2698 = vand.u32 %v2697, 4294901760
    %v2699 = vsub.f32 %v2697, %v2698
    %v2700 = vand.u32 %v2699, 4294901760
    %2701 = vmatmul.mubr.f32.gmra.mrb[0].mxu0 %v2700
    %v2702 = vpop.f32.mrb[0].mxu0
    %v2703 = vadd.f32 0.0, %v2702
    %v2704 = vpop.f32.mrb[0].mxu0
    %2705 = vmatprep.mubr.f32.mxu0 0.0
    %v2706 = vand.u32 %v2550, 4294901760
    %v2707 = vsub.f32 %v2550, %v2706
    %v2708 = vand.u32 %v2707, 4294901760
    %v2709 = vsub.f32 %v2707, %v2708
    %v2710 = vand.u32 %v2709, 4294901760
    %2711 = vmatmul.mubr.f32.gmra.mrb[0].mxu0 %v2710
    %v2712 = vpop.f32.mrb[0].mxu0
    %v2713 = vadd.f32 0.0, %v2712
    %v2714 = vpop.f32.mrb[0].mxu0
    %2715 = vmatprep.mubr.f32.mxu0 0.0
    %v2716 = vand.u32 %v2553, 4294901760
    %v2717 = vsub.f32 %v2553, %v2716
    %v2718 = vand.u32 %v2717, 4294901760
    %v2719 = vsub.f32 %v2717, %v2718
    %v2720 = vand.u32 %v2719, 4294901760
    %2721 = vmatmul.mubr.f32.gmra.mrb[0].mxu0 %v2720
    %v2722 = vpop.f32.mrb[0].mxu0
    %v2723 = vadd.f32 0.0, %v2722
    %v2724 = vpop.f32.mrb[0].mxu0
    %2725 = vmatprep.mubr.f32.mxu0 0.0
    %v2726 = vand.u32 %v2556, 4294901760
    %v2727 = vsub.f32 %v2556, %v2726
    %v2728 = vand.u32 %v2727, 4294901760
    %v2729 = vsub.f32 %v2727, %v2728
    %v2730 = vand.u32 %v2729, 4294901760
    %2731 = vmatmul.mubr.f32.gmra.mrb[0].mxu0 %v2730
    %v2732 = vpop.f32.mrb[0].mxu0
    %v2733 = vadd.f32 0.0, %v2732
    %v2734 = vpop.f32.mrb[0].mxu0
    %2735 = vmatprep.mubr.f32.mxu0 0.0
    %v2736 = vand.u32 %v2559, 4294901760
    %v2737 = vsub.f32 %v2559, %v2736
    %v2738 = vand.u32 %v2737, 4294901760
    %v2739 = vsub.f32 %v2737, %v2738
    %v2740 = vand.u32 %v2739, 4294901760
    %2741 = vmatmul.mubr.f32.gmra.mrb[0].mxu0 %v2740
    %v2742 = vpop.f32.mrb[0].mxu0
    %v2743 = vadd.f32 0.0, %v2742
    %v2744 = vpop.f32.mrb[0].mxu0
    %2745 = vmatprep.mubr.f32.mxu0 0.0
    %v2746 = vand.u32 %v2562, 4294901760
    %v2747 = vsub.f32 %v2562, %v2746
    %v2748 = vand.u32 %v2747, 4294901760
    %v2749 = vsub.f32 %v2747, %v2748
    %v2750 = vand.u32 %v2749, 4294901760
    %2751 = vmatmul.mubr.f32.gmra.mrb[0].mxu0 %v2750
    %v2752 = vpop.f32.mrb[0].mxu0
    %v2753 = vadd.f32 0.0, %v2752
    %v2754 = vpop.f32.mrb[0].mxu0
    %2755 = vmatprep.mubr.f32.mxu0 0.0
    %v2756 = vand.u32 %v2565, 4294901760
    %v2757 = vsub.f32 %v2565, %v2756
    %v2758 = vand.u32 %v2757, 4294901760
    %v2759 = vsub.f32 %v2757, %v2758
    %v2760 = vand.u32 %v2759, 4294901760
    %2761 = vmatmul.mubr.f32.gmra.mrb[0].mxu0 %v2760
    %v2762 = vpop.f32.mrb[0].mxu0
    %v2763 = vadd.f32 0.0, %v2762
    %v2764 = vpop.f32.mrb[0].mxu0
    %2765 = vmatprep.mubr.f32.mxu0 0.0
    %v2766 = vand.u32 %v2568, 4294901760
    %v2767 = vsub.f32 %v2568, %v2766
    %v2768 = vand.u32 %v2767, 4294901760
    %v2769 = vsub.f32 %v2767, %v2768
    %v2770 = vand.u32 %v2769, 4294901760
    %2771 = vmatmul.mubr.f32.gmra.mrb[0].mxu0 %v2770
    %v2772 = vpop.f32.mrb[0].mxu0
    %v2773 = vadd.f32 0.0, %v2772
    %v2774 = vpop.f32.mrb[0].mxu0
    %2775 = vmatprep.mubr.f32.mxu0 0.0
    %v2776 = vand.u32 %v2571, 4294901760
    %v2777 = vsub.f32 %v2571, %v2776
    %v2778 = vand.u32 %v2777, 4294901760
    %v2779 = vsub.f32 %v2777, %v2778
    %v2780 = vand.u32 %v2779, 4294901760
    %2781 = vmatmul.mubr.f32.gmra.mrb[0].mxu0 %v2780
    %v2782 = vpop.f32.mrb[0].mxu0
    %v2783 = vadd.f32 0.0, %v2782
    %v2784 = vpop.f32.mrb[0].mxu0
    %2785 = vmatprep.mubr.f32.mxu0 0.0
    %v2786 = vand.u32 %v2574, 4294901760
    %v2787 = vsub.f32 %v2574, %v2786
    %v2788 = vand.u32 %v2787, 4294901760
    %v2789 = vsub.f32 %v2787, %v2788
    %v2790 = vand.u32 %v2789, 4294901760
    %2791 = vmatmul.mubr.f32.gmra.mrb[0].mxu0 %v2790
    %v2792 = vpop.f32.mrb[0].mxu0
    %v2793 = vadd.f32 0.0, %v2792
    %v2794 = vpop.f32.mrb[0].mxu0
    %2795 = vmatprep.mubr.f32.mxu0 0.0
    %v2796 = vand.u32 %v2577, 4294901760
    %v2797 = vsub.f32 %v2577, %v2796
    %v2798 = vand.u32 %v2797, 4294901760
    %v2799 = vsub.f32 %v2797, %v2798
    %v2800 = vand.u32 %v2799, 4294901760
    %2801 = vmatmul.mubr.f32.gmra.mrb[0].mxu0 %v2800
    %v2802 = vpop.f32.mrb[0].mxu0
    %v2803 = vadd.f32 0.0, %v2802
    %v2804 = vpop.f32.mrb[0].mxu0
    %2805 = vdwg.mxu0
    %2806 = vmatprep.subr.mxu0 0.0
    %v2807 = vand.u32 %v2529, 4294901760
    %v2808 = vsub.f32 %v2529, %v2807
    %v2809 = vand.u32 %v2808, 4294901760
    %v2810 = vsub.f32 %v2808, %v2809
    %v2811 = vand.u32 %v2810, 4294901760
    %2812 = vmatpush1.msra.mxu0 %v2811
    %2813 = vmatprep.subr.mxu0 0.0
    %v2814 = vand.u32 %v2530, 4294901760
    %v2815 = vsub.f32 %v2530, %v2814
    %v2816 = vand.u32 %v2815, 4294901760
    %v2817 = vsub.f32 %v2815, %v2816
    %v2818 = vand.u32 %v2817, 4294901760
    %2819 = vmatpush1.msra.mxu0 %v2818
    %2820 = vmatprep.subr.mxu0 0.0
    %2821 = vmatpush1.msra.mxu0 0.0
    %2822 = vmatprep.subr.mxu0 0.0
    %2823 = vmatpush1.msra.mxu0 0.0
    %2824 = vmatprep.subr.mxu0 0.0
    %2825 = vmatpush1.msra.mxu0 0.0
    %2826 = vmatprep.subr.mxu0 0.0
    %2827 = vmatpush1.msra.mxu0 0.0
    %2828 = vmatprep.subr.mxu0 0.0
    %2829 = vmatpush1.msra.mxu0 0.0
    %2830 = vmatprep.subr.mxu0 0.0
    %2831 = vmatpush1.msra.mxu0 0.0
    %2832 = vmatprep.subr.mxu0 0.0
    %2833 = vmatpush1.msra.mxu0 0.0
    %2834 = vmatprep.subr.mxu0 0.0
    %2835 = vmatpush1.msra.mxu0 0.0
    %2836 = vmatprep.subr.mxu0 0.0
    %2837 = vmatpush1.msra.mxu0 0.0
    %2838 = vmatprep.subr.mxu0 0.0
    %2839 = vmatpush1.msra.mxu0 0.0
    %2840 = vmatprep.subr.mxu0 0.0
    %2841 = vmatpush1.msra.mxu0 0.0
    %2842 = vmatprep.subr.mxu0 0.0
    %2843 = vmatpush1.msra.mxu0 0.0
    %2844 = vmatprep.subr.mxu0 0.0
    %2845 = vmatpush1.msra.mxu0 0.0
    %2846 = vmatprep.subr.mxu0 0.0
    %2847 = vmatpush1.msra.mxu0 0.0
    %2848 = vmatprep.subr.mxu0 0.0
    %2849 = vmatpush1.msra.mxu0 0.0
    %2850 = vmatprep.subr.mxu0 0.0
    %2851 = vmatpush1.msra.mxu0 0.0
    %2852 = vmatprep.subr.mxu0 0.0
    %2853 = vmatpush1.msra.mxu0 0.0
    %2854 = vmatprep.subr.mxu0 0.0
    %2855 = vmatpush1.msra.mxu0 0.0
    %2856 = vmatprep.subr.mxu0 0.0
    %2857 = vmatpush1.msra.mxu0 0.0
    %2858 = vmatprep.subr.mxu0 0.0
    %2859 = vmatpush1.msra.mxu0 0.0
    %2860 = vmatprep.subr.mxu0 0.0
    %2861 = vmatpush1.msra.mxu0 0.0
    %2862 = vmatprep.subr.mxu0 0.0
    %2863 = vmatpush1.msra.mxu0 0.0
    %2864 = vmatprep.subr.mxu0 0.0
    %2865 = vmatpush1.msra.mxu0 0.0
    %2866 = vmatprep.subr.mxu0 0.0
    %2867 = vmatpush1.msra.mxu0 0.0
    %2868 = vmatprep.subr.mxu0 0.0
    %2869 = vmatpush1.msra.mxu0 0.0
    %2870 = vmatprep.subr.mxu0 0.0
    %2871 = vmatpush1.msra.mxu0 0.0
    %2872 = vmatprep.subr.mxu0 0.0
    %2873 = vmatpush1.msra.mxu0 0.0
    %2874 = vmatprep.subr.mxu0 0.0
    %2875 = vmatpush1.msra.mxu0 0.0
    %2876 = vmatprep.subr.mxu0 0.0
    %2877 = vmatpush1.msra.mxu0 0.0
    %2878 = vmatprep.subr.mxu0 0.0
    %2879 = vmatpush1.msra.mxu0 0.0
    %2880 = vmatprep.mubr.f32.mxu0 0.0
    %v2881 = vand.u32 %v2532, 4294901760
    %2882 = vmatmul.mubr.f32.gmra.mrb[0].mxu0 %v2881
    %v2883 = vpop.f32.mrb[0].mxu0
    %v2884 = vadd.f32 %v2653, %v2883
    %v2885 = vpop.f32.mrb[0].mxu0
    %2886 = vmatprep.mubr.f32.mxu0 0.0
    %v2887 = vand.u32 %v2535, 4294901760
    %2888 = vmatmul.mubr.f32.gmra.mrb[0].mxu0 %v2887
    %v2889 = vpop.f32.mrb[0].mxu0
    %v2890 = vadd.f32 %v2663, %v2889
    %v2891 = vpop.f32.mrb[0].mxu0
    %2892 = vmatprep.mubr.f32.mxu0 0.0
    %v2893 = vand.u32 %v2538, 4294901760
    %2894 = vmatmul.mubr.f32.gmra.mrb[0].mxu0 %v2893
    %v2895 = vpop.f32.mrb[0].mxu0
    %v2896 = vadd.f32 %v2673, %v2895
    %v2897 = vpop.f32.mrb[0].mxu0
    %2898 = vmatprep.mubr.f32.mxu0 0.0
    %v2899 = vand.u32 %v2541, 4294901760
    %2900 = vmatmul.mubr.f32.gmra.mrb[0].mxu0 %v2899
    %v2901 = vpop.f32.mrb[0].mxu0
    %v2902 = vadd.f32 %v2683, %v2901
    %v2903 = vpop.f32.mrb[0].mxu0
    %2904 = vmatprep.mubr.f32.mxu0 0.0
    %v2905 = vand.u32 %v2544, 4294901760
    %2906 = vmatmul.mubr.f32.gmra.mrb[0].mxu0 %v2905
    %v2907 = vpop.f32.mrb[0].mxu0
    %v2908 = vadd.f32 %v2693, %v2907
    %v2909 = vpop.f32.mrb[0].mxu0
    %2910 = vmatprep.mubr.f32.mxu0 0.0
    %v2911 = vand.u32 %v2547, 4294901760
    %2912 = vmatmul.mubr.f32.gmra.mrb[0].mxu0 %v2911
    %v2913 = vpop.f32.mrb[0].mxu0
    %v2914 = vadd.f32 %v2703, %v2913
    %v2915 = vpop.f32.mrb[0].mxu0
    %2916 = vmatprep.mubr.f32.mxu0 0.0
    %v2917 = vand.u32 %v2550, 4294901760
    %2918 = vmatmul.mubr.f32.gmra.mrb[0].mxu0 %v2917
    %v2919 = vpop.f32.mrb[0].mxu0
    %v2920 = vadd.f32 %v2713, %v2919
    %v2921 = vpop.f32.mrb[0].mxu0
    %2922 = vmatprep.mubr.f32.mxu0 0.0
    %v2923 = vand.u32 %v2553, 4294901760
    %2924 = vmatmul.mubr.f32.gmra.mrb[0].mxu0 %v2923
    %v2925 = vpop.f32.mrb[0].mxu0
    %v2926 = vadd.f32 %v2723, %v2925
    %v2927 = vpop.f32.mrb[0].mxu0
    %2928 = vmatprep.mubr.f32.mxu0 0.0
    %v2929 = vand.u32 %v2556, 4294901760
    %2930 = vmatmul.mubr.f32.gmra.mrb[0].mxu0 %v2929
    %v2931 = vpop.f32.mrb[0].mxu0
    %v2932 = vadd.f32 %v2733, %v2931
    %v2933 = vpop.f32.mrb[0].mxu0
    %2934 = vmatprep.mubr.f32.mxu0 0.0
    %v2935 = vand.u32 %v2559, 4294901760
    %2936 = vmatmul.mubr.f32.gmra.mrb[0].mxu0 %v2935
    %v2937 = vpop.f32.mrb[0].mxu0
    %v2938 = vadd.f32 %v2743, %v2937
    %v2939 = vpop.f32.mrb[0].mxu0
    %2940 = vmatprep.mubr.f32.mxu0 0.0
    %v2941 = vand.u32 %v2562, 4294901760
    %2942 = vmatmul.mubr.f32.gmra.mrb[0].mxu0 %v2941
    %v2943 = vpop.f32.mrb[0].mxu0
    %v2944 = vadd.f32 %v2753, %v2943
    %v2945 = vpop.f32.mrb[0].mxu0
    %2946 = vmatprep.mubr.f32.mxu0 0.0
    %v2947 = vand.u32 %v2565, 4294901760
    %2948 = vmatmul.mubr.f32.gmra.mrb[0].mxu0 %v2947
    %v2949 = vpop.f32.mrb[0].mxu0
    %v2950 = vadd.f32 %v2763, %v2949
    %v2951 = vpop.f32.mrb[0].mxu0
    %2952 = vmatprep.mubr.f32.mxu0 0.0
    %v2953 = vand.u32 %v2568, 4294901760
    %2954 = vmatmul.mubr.f32.gmra.mrb[0].mxu0 %v2953
    %v2955 = vpop.f32.mrb[0].mxu0
    %v2956 = vadd.f32 %v2773, %v2955
    %v2957 = vpop.f32.mrb[0].mxu0
    %2958 = vmatprep.mubr.f32.mxu0 0.0
    %v2959 = vand.u32 %v2571, 4294901760
    %2960 = vmatmul.mubr.f32.gmra.mrb[0].mxu0 %v2959
    %v2961 = vpop.f32.mrb[0].mxu0
    %v2962 = vadd.f32 %v2783, %v2961
    %v2963 = vpop.f32.mrb[0].mxu0
    %2964 = vmatprep.mubr.f32.mxu0 0.0
    %v2965 = vand.u32 %v2574, 4294901760
    %2966 = vmatmul.mubr.f32.gmra.mrb[0].mxu0 %v2965
    %v2967 = vpop.f32.mrb[0].mxu0
    %v2968 = vadd.f32 %v2793, %v2967
    %v2969 = vpop.f32.mrb[0].mxu0
    %2970 = vmatprep.mubr.f32.mxu0 0.0
    %v2971 = vand.u32 %v2577, 4294901760
    %2972 = vmatmul.mubr.f32.gmra.mrb[0].mxu0 %v2971
    %v2973 = vpop.f32.mrb[0].mxu0
    %v2974 = vadd.f32 %v2803, %v2973
    %v2975 = vpop.f32.mrb[0].mxu0
    %2976 = vdwg.mxu0
    %2977 = vmatprep.subr.mxu0 0.0
    %v2978 = vand.u32 %v2529, 4294901760
    %v2979 = vsub.f32 %v2529, %v2978
    %2980 = vmatpush1.msra.mxu0 %v2979
    %2981 = vmatprep.subr.mxu0 0.0
    %v2982 = vand.u32 %v2530, 4294901760
    %v2983 = vsub.f32 %v2530, %v2982
    %2984 = vmatpush1.msra.mxu0 %v2983
    %2985 = vmatprep.subr.mxu0 0.0
    %2986 = vmatpush1.msra.mxu0 0.0
    %2987 = vmatprep.subr.mxu0 0.0
    %2988 = vmatpush1.msra.mxu0 0.0
    %2989 = vmatprep.subr.mxu0 0.0
    %2990 = vmatpush1.msra.mxu0 0.0
    %2991 = vmatprep.subr.mxu0 0.0
    %2992 = vmatpush1.msra.mxu0 0.0
    %2993 = vmatprep.subr.mxu0 0.0
    %2994 = vmatpush1.msra.mxu0 0.0
    %2995 = vmatprep.subr.mxu0 0.0
    %2996 = vmatpush1.msra.mxu0 0.0
    %2997 = vmatprep.subr.mxu0 0.0
    %2998 = vmatpush1.msra.mxu0 0.0
    %2999 = vmatprep.subr.mxu0 0.0
    %3000 = vmatpush1.msra.mxu0 0.0
    %3001 = vmatprep.subr.mxu0 0.0
    %3002 = vmatpush1.msra.mxu0 0.0
    %3003 = vmatprep.subr.mxu0 0.0
    %3004 = vmatpush1.msra.mxu0 0.0
    %3005 = vmatprep.subr.mxu0 0.0
    %3006 = vmatpush1.msra.mxu0 0.0
    %3007 = vmatprep.subr.mxu0 0.0
    %3008 = vmatpush1.msra.mxu0 0.0
    %3009 = vmatprep.subr.mxu0 0.0
    %3010 = vmatpush1.msra.mxu0 0.0
    %3011 = vmatprep.subr.mxu0 0.0
    %3012 = vmatpush1.msra.mxu0 0.0
    %3013 = vmatprep.subr.mxu0 0.0
    %3014 = vmatpush1.msra.mxu0 0.0
    %3015 = vmatprep.subr.mxu0 0.0
    %3016 = vmatpush1.msra.mxu0 0.0
    %3017 = vmatprep.subr.mxu0 0.0
    %3018 = vmatpush1.msra.mxu0 0.0
    %3019 = vmatprep.subr.mxu0 0.0
    %3020 = vmatpush1.msra.mxu0 0.0
    %3021 = vmatprep.subr.mxu0 0.0
    %3022 = vmatpush1.msra.mxu0 0.0
    %3023 = vmatprep.subr.mxu0 0.0
    %3024 = vmatpush1.msra.mxu0 0.0
    %3025 = vmatprep.subr.mxu0 0.0
    %3026 = vmatpush1.msra.mxu0 0.0
    %3027 = vmatprep.subr.mxu0 0.0
    %3028 = vmatpush1.msra.mxu0 0.0
    %3029 = vmatprep.subr.mxu0 0.0
    %3030 = vmatpush1.msra.mxu0 0.0
    %3031 = vmatprep.subr.mxu0 0.0
    %3032 = vmatpush1.msra.mxu0 0.0
    %3033 = vmatprep.subr.mxu0 0.0
    %3034 = vmatpush1.msra.mxu0 0.0
    %3035 = vmatprep.subr.mxu0 0.0
    %3036 = vmatpush1.msra.mxu0 0.0
    %3037 = vmatprep.subr.mxu0 0.0
    %3038 = vmatpush1.msra.mxu0 0.0
    %3039 = vmatprep.subr.mxu0 0.0
    %3040 = vmatpush1.msra.mxu0 0.0
    %3041 = vmatprep.subr.mxu0 0.0
    %3042 = vmatpush1.msra.mxu0 0.0
    %3043 = vmatprep.subr.mxu0 0.0
    %3044 = vmatpush1.msra.mxu0 0.0
    %3045 = vmatprep.mubr.f32.mxu0 0.0
    %v3046 = vand.u32 %v2532, 4294901760
    %v3047 = vsub.f32 %v2532, %v3046
    %3048 = vmatmul.mubr.f32.gmra.mrb[0].mxu0 %v3047
    %v3049 = vpop.f32.mrb[0].mxu0
    %v3050 = vadd.f32 %v2884, %v3049
    %v3051 = vpop.f32.mrb[0].mxu0
    %3052 = vmatprep.mubr.f32.mxu0 0.0
    %v3053 = vand.u32 %v2535, 4294901760
    %v3054 = vsub.f32 %v2535, %v3053
    %3055 = vmatmul.mubr.f32.gmra.mrb[0].mxu0 %v3054
    %v3056 = vpop.f32.mrb[0].mxu0
    %v3057 = vadd.f32 %v2890, %v3056
    %v3058 = vpop.f32.mrb[0].mxu0
    %3059 = vmatprep.mubr.f32.mxu0 0.0
    %v3060 = vand.u32 %v2538, 4294901760
    %v3061 = vsub.f32 %v2538, %v3060
    %3062 = vmatmul.mubr.f32.gmra.mrb[0].mxu0 %v3061
    %v3063 = vpop.f32.mrb[0].mxu0
    %v3064 = vadd.f32 %v2896, %v3063
    %v3065 = vpop.f32.mrb[0].mxu0
    %3066 = vmatprep.mubr.f32.mxu0 0.0
    %v3067 = vand.u32 %v2541, 4294901760
    %v3068 = vsub.f32 %v2541, %v3067
    %3069 = vmatmul.mubr.f32.gmra.mrb[0].mxu0 %v3068
    %v3070 = vpop.f32.mrb[0].mxu0
    %v3071 = vadd.f32 %v2902, %v3070
    %v3072 = vpop.f32.mrb[0].mxu0
    %3073 = vmatprep.mubr.f32.mxu0 0.0
    %v3074 = vand.u32 %v2544, 4294901760
    %v3075 = vsub.f32 %v2544, %v3074
    %3076 = vmatmul.mubr.f32.gmra.mrb[0].mxu0 %v3075
    %v3077 = vpop.f32.mrb[0].mxu0
    %v3078 = vadd.f32 %v2908, %v3077
    %v3079 = vpop.f32.mrb[0].mxu0
    %3080 = vmatprep.mubr.f32.mxu0 0.0
    %v3081 = vand.u32 %v2547, 4294901760
    %v3082 = vsub.f32 %v2547, %v3081
    %3083 = vmatmul.mubr.f32.gmra.mrb[0].mxu0 %v3082
    %v3084 = vpop.f32.mrb[0].mxu0
    %v3085 = vadd.f32 %v2914, %v3084
    %v3086 = vpop.f32.mrb[0].mxu0
    %3087 = vmatprep.mubr.f32.mxu0 0.0
    %v3088 = vand.u32 %v2550, 4294901760
    %v3089 = vsub.f32 %v2550, %v3088
    %3090 = vmatmul.mubr.f32.gmra.mrb[0].mxu0 %v3089
    %v3091 = vpop.f32.mrb[0].mxu0
    %v3092 = vadd.f32 %v2920, %v3091
    %v3093 = vpop.f32.mrb[0].mxu0
    %3094 = vmatprep.mubr.f32.mxu0 0.0
    %v3095 = vand.u32 %v2553, 4294901760
    %v3096 = vsub.f32 %v2553, %v3095
    %3097 = vmatmul.mubr.f32.gmra.mrb[0].mxu0 %v3096
    %v3098 = vpop.f32.mrb[0].mxu0
    %v3099 = vadd.f32 %v2926, %v3098
    %v3100 = vpop.f32.mrb[0].mxu0
    %3101 = vmatprep.mubr.f32.mxu0 0.0
    %v3102 = vand.u32 %v2556, 4294901760
    %v3103 = vsub.f32 %v2556, %v3102
    %3104 = vmatmul.mubr.f32.gmra.mrb[0].mxu0 %v3103
    %v3105 = vpop.f32.mrb[0].mxu0
    %v3106 = vadd.f32 %v2932, %v3105
    %v3107 = vpop.f32.mrb[0].mxu0
    %3108 = vmatprep.mubr.f32.mxu0 0.0
    %v3109 = vand.u32 %v2559, 4294901760
    %v3110 = vsub.f32 %v2559, %v3109
    %3111 = vmatmul.mubr.f32.gmra.mrb[0].mxu0 %v3110
    %v3112 = vpop.f32.mrb[0].mxu0
    %v3113 = vadd.f32 %v2938, %v3112
    %v3114 = vpop.f32.mrb[0].mxu0
    %3115 = vmatprep.mubr.f32.mxu0 0.0
    %v3116 = vand.u32 %v2562, 4294901760
    %v3117 = vsub.f32 %v2562, %v3116
    %3118 = vmatmul.mubr.f32.gmra.mrb[0].mxu0 %v3117
    %v3119 = vpop.f32.mrb[0].mxu0
    %v3120 = vadd.f32 %v2944, %v3119
    %v3121 = vpop.f32.mrb[0].mxu0
    %3122 = vmatprep.mubr.f32.mxu0 0.0
    %v3123 = vand.u32 %v2565, 4294901760
    %v3124 = vsub.f32 %v2565, %v3123
    %3125 = vmatmul.mubr.f32.gmra.mrb[0].mxu0 %v3124
    %v3126 = vpop.f32.mrb[0].mxu0
    %v3127 = vadd.f32 %v2950, %v3126
    %v3128 = vpop.f32.mrb[0].mxu0
    %3129 = vmatprep.mubr.f32.mxu0 0.0
    %v3130 = vand.u32 %v2568, 4294901760
    %v3131 = vsub.f32 %v2568, %v3130
    %3132 = vmatmul.mubr.f32.gmra.mrb[0].mxu0 %v3131
    %v3133 = vpop.f32.mrb[0].mxu0
    %v3134 = vadd.f32 %v2956, %v3133
    %v3135 = vpop.f32.mrb[0].mxu0
    %3136 = vmatprep.mubr.f32.mxu0 0.0
    %v3137 = vand.u32 %v2571, 4294901760
    %v3138 = vsub.f32 %v2571, %v3137
    %3139 = vmatmul.mubr.f32.gmra.mrb[0].mxu0 %v3138
    %v3140 = vpop.f32.mrb[0].mxu0
    %v3141 = vadd.f32 %v2962, %v3140
    %v3142 = vpop.f32.mrb[0].mxu0
    %3143 = vmatprep.mubr.f32.mxu0 0.0
    %v3144 = vand.u32 %v2574, 4294901760
    %v3145 = vsub.f32 %v2574, %v3144
    %3146 = vmatmul.mubr.f32.gmra.mrb[0].mxu0 %v3145
    %v3147 = vpop.f32.mrb[0].mxu0
    %v3148 = vadd.f32 %v2968, %v3147
    %v3149 = vpop.f32.mrb[0].mxu0
    %3150 = vmatprep.mubr.f32.mxu0 0.0
    %v3151 = vand.u32 %v2577, 4294901760
    %v3152 = vsub.f32 %v2577, %v3151
    %3153 = vmatmul.mubr.f32.gmra.mrb[0].mxu0 %v3152
    %v3154 = vpop.f32.mrb[0].mxu0
    %v3155 = vadd.f32 %v2974, %v3154
    %v3156 = vpop.f32.mrb[0].mxu0
    %3157 = vdwg.mxu0
    %3158 = vmatprep.subr.mxu0 0.0
    %v3159 = vand.u32 %v2529, 4294901760
    %3160 = vmatpush1.msra.mxu0 %v3159
    %3161 = vmatprep.subr.mxu0 0.0
    %v3162 = vand.u32 %v2530, 4294901760
    %3163 = vmatpush1.msra.mxu0 %v3162
    %3164 = vmatprep.subr.mxu0 0.0
    %3165 = vmatpush1.msra.mxu0 0.0
    %3166 = vmatprep.subr.mxu0 0.0
    %3167 = vmatpush1.msra.mxu0 0.0
    %3168 = vmatprep.subr.mxu0 0.0
    %3169 = vmatpush1.msra.mxu0 0.0
    %3170 = vmatprep.subr.mxu0 0.0
    %3171 = vmatpush1.msra.mxu0 0.0
    %3172 = vmatprep.subr.mxu0 0.0
    %3173 = vmatpush1.msra.mxu0 0.0
    %3174 = vmatprep.subr.mxu0 0.0
    %3175 = vmatpush1.msra.mxu0 0.0
    %3176 = vmatprep.subr.mxu0 0.0
    %3177 = vmatpush1.msra.mxu0 0.0
    %3178 = vmatprep.subr.mxu0 0.0
    %3179 = vmatpush1.msra.mxu0 0.0
    %3180 = vmatprep.subr.mxu0 0.0
    %3181 = vmatpush1.msra.mxu0 0.0
    %3182 = vmatprep.subr.mxu0 0.0
    %3183 = vmatpush1.msra.mxu0 0.0
    %3184 = vmatprep.subr.mxu0 0.0
    %3185 = vmatpush1.msra.mxu0 0.0
    %3186 = vmatprep.subr.mxu0 0.0
    %3187 = vmatpush1.msra.mxu0 0.0
    %3188 = vmatprep.subr.mxu0 0.0
    %3189 = vmatpush1.msra.mxu0 0.0
    %3190 = vmatprep.subr.mxu0 0.0
    %3191 = vmatpush1.msra.mxu0 0.0
    %3192 = vmatprep.subr.mxu0 0.0
    %3193 = vmatpush1.msra.mxu0 0.0
    %3194 = vmatprep.subr.mxu0 0.0
    %3195 = vmatpush1.msra.mxu0 0.0
    %3196 = vmatprep.subr.mxu0 0.0
    %3197 = vmatpush1.msra.mxu0 0.0
    %3198 = vmatprep.subr.mxu0 0.0
    %3199 = vmatpush1.msra.mxu0 0.0
    %3200 = vmatprep.subr.mxu0 0.0
    %3201 = vmatpush1.msra.mxu0 0.0
    %3202 = vmatprep.subr.mxu0 0.0
    %3203 = vmatpush1.msra.mxu0 0.0
    %3204 = vmatprep.subr.mxu0 0.0
    %3205 = vmatpush1.msra.mxu0 0.0
    %3206 = vmatprep.subr.mxu0 0.0
    %3207 = vmatpush1.msra.mxu0 0.0
    %3208 = vmatprep.subr.mxu0 0.0
    %3209 = vmatpush1.msra.mxu0 0.0
    %3210 = vmatprep.subr.mxu0 0.0
    %3211 = vmatpush1.msra.mxu0 0.0
    %3212 = vmatprep.subr.mxu0 0.0
    %3213 = vmatpush1.msra.mxu0 0.0
    %3214 = vmatprep.subr.mxu0 0.0
    %3215 = vmatpush1.msra.mxu0 0.0
    %3216 = vmatprep.subr.mxu0 0.0
    %3217 = vmatpush1.msra.mxu0 0.0
    %3218 = vmatprep.subr.mxu0 0.0
    %3219 = vmatpush1.msra.mxu0 0.0
    %3220 = vmatprep.subr.mxu0 0.0
    %3221 = vmatpush1.msra.mxu0 0.0
    %3222 = vmatprep.subr.mxu0 0.0
    %3223 = vmatpush1.msra.mxu0 0.0
    %3224 = vmatprep.mubr.f32.mxu0 0.0
    %v3225 = vand.u32 %v2532, 4294901760
    %v3226 = vsub.f32 %v2532, %v3225
    %v3227 = vand.u32 %v3226, 4294901760
    %3228 = vmatmul.mubr.f32.gmra.mrb[0].mxu0 %v3227
    %v3229 = vpop.f32.mrb[0].mxu0
    %v3230 = vadd.f32 %v3050, %v3229
    %v3231 = vpop.f32.mrb[0].mxu0
    %3232 = vmatprep.mubr.f32.mxu0 0.0
    %v3233 = vand.u32 %v2535, 4294901760
    %v3234 = vsub.f32 %v2535, %v3233
    %v3235 = vand.u32 %v3234, 4294901760
    %3236 = vmatmul.mubr.f32.gmra.mrb[0].mxu0 %v3235
    %v3237 = vpop.f32.mrb[0].mxu0
    %v3238 = vadd.f32 %v3057, %v3237
    %v3239 = vpop.f32.mrb[0].mxu0
    %3240 = vmatprep.mubr.f32.mxu0 0.0
    %v3241 = vand.u32 %v2538, 4294901760
    %v3242 = vsub.f32 %v2538, %v3241
    %v3243 = vand.u32 %v3242, 4294901760
    %3244 = vmatmul.mubr.f32.gmra.mrb[0].mxu0 %v3243
    %v3245 = vpop.f32.mrb[0].mxu0
    %v3246 = vadd.f32 %v3064, %v3245
    %v3247 = vpop.f32.mrb[0].mxu0
    %3248 = vmatprep.mubr.f32.mxu0 0.0
    %v3249 = vand.u32 %v2541, 4294901760
    %v3250 = vsub.f32 %v2541, %v3249
    %v3251 = vand.u32 %v3250, 4294901760
    %3252 = vmatmul.mubr.f32.gmra.mrb[0].mxu0 %v3251
    %v3253 = vpop.f32.mrb[0].mxu0
    %v3254 = vadd.f32 %v3071, %v3253
    %v3255 = vpop.f32.mrb[0].mxu0
    %3256 = vmatprep.mubr.f32.mxu0 0.0
    %v3257 = vand.u32 %v2544, 4294901760
    %v3258 = vsub.f32 %v2544, %v3257
    %v3259 = vand.u32 %v3258, 4294901760
    %3260 = vmatmul.mubr.f32.gmra.mrb[0].mxu0 %v3259
    %v3261 = vpop.f32.mrb[0].mxu0
    %v3262 = vadd.f32 %v3078, %v3261
    %v3263 = vpop.f32.mrb[0].mxu0
    %3264 = vmatprep.mubr.f32.mxu0 0.0
    %v3265 = vand.u32 %v2547, 4294901760
    %v3266 = vsub.f32 %v2547, %v3265
    %v3267 = vand.u32 %v3266, 4294901760
    %3268 = vmatmul.mubr.f32.gmra.mrb[0].mxu0 %v3267
    %v3269 = vpop.f32.mrb[0].mxu0
    %v3270 = vadd.f32 %v3085, %v3269
    %v3271 = vpop.f32.mrb[0].mxu0
    %3272 = vmatprep.mubr.f32.mxu0 0.0
    %v3273 = vand.u32 %v2550, 4294901760
    %v3274 = vsub.f32 %v2550, %v3273
    %v3275 = vand.u32 %v3274, 4294901760
    %3276 = vmatmul.mubr.f32.gmra.mrb[0].mxu0 %v3275
    %v3277 = vpop.f32.mrb[0].mxu0
    %v3278 = vadd.f32 %v3092, %v3277
    %v3279 = vpop.f32.mrb[0].mxu0
    %3280 = vmatprep.mubr.f32.mxu0 0.0
    %v3281 = vand.u32 %v2553, 4294901760
    %v3282 = vsub.f32 %v2553, %v3281
    %v3283 = vand.u32 %v3282, 4294901760
    %3284 = vmatmul.mubr.f32.gmra.mrb[0].mxu0 %v3283
    %v3285 = vpop.f32.mrb[0].mxu0
    %v3286 = vadd.f32 %v3099, %v3285
    %v3287 = vpop.f32.mrb[0].mxu0
    %3288 = vmatprep.mubr.f32.mxu0 0.0
    %v3289 = vand.u32 %v2556, 4294901760
    %v3290 = vsub.f32 %v2556, %v3289
    %v3291 = vand.u32 %v3290, 4294901760
    %3292 = vmatmul.mubr.f32.gmra.mrb[0].mxu0 %v3291
    %v3293 = vpop.f32.mrb[0].mxu0
    %v3294 = vadd.f32 %v3106, %v3293
    %v3295 = vpop.f32.mrb[0].mxu0
    %3296 = vmatprep.mubr.f32.mxu0 0.0
    %v3297 = vand.u32 %v2559, 4294901760
    %v3298 = vsub.f32 %v2559, %v3297
    %v3299 = vand.u32 %v3298, 4294901760
    %3300 = vmatmul.mubr.f32.gmra.mrb[0].mxu0 %v3299
    %v3301 = vpop.f32.mrb[0].mxu0
    %v3302 = vadd.f32 %v3113, %v3301
    %v3303 = vpop.f32.mrb[0].mxu0
    %3304 = vmatprep.mubr.f32.mxu0 0.0
    %v3305 = vand.u32 %v2562, 4294901760
    %v3306 = vsub.f32 %v2562, %v3305
    %v3307 = vand.u32 %v3306, 4294901760
    %3308 = vmatmul.mubr.f32.gmra.mrb[0].mxu0 %v3307
    %v3309 = vpop.f32.mrb[0].mxu0
    %v3310 = vadd.f32 %v3120, %v3309
    %v3311 = vpop.f32.mrb[0].mxu0
    %3312 = vmatprep.mubr.f32.mxu0 0.0
    %v3313 = vand.u32 %v2565, 4294901760
    %v3314 = vsub.f32 %v2565, %v3313
    %v3315 = vand.u32 %v3314, 4294901760
    %3316 = vmatmul.mubr.f32.gmra.mrb[0].mxu0 %v3315
    %v3317 = vpop.f32.mrb[0].mxu0
    %v3318 = vadd.f32 %v3127, %v3317
    %v3319 = vpop.f32.mrb[0].mxu0
    %3320 = vmatprep.mubr.f32.mxu0 0.0
    %v3321 = vand.u32 %v2568, 4294901760
    %v3322 = vsub.f32 %v2568, %v3321
    %v3323 = vand.u32 %v3322, 4294901760
    %3324 = vmatmul.mubr.f32.gmra.mrb[0].mxu0 %v3323
    %v3325 = vpop.f32.mrb[0].mxu0
    %v3326 = vadd.f32 %v3134, %v3325
    %v3327 = vpop.f32.mrb[0].mxu0
    %3328 = vmatprep.mubr.f32.mxu0 0.0
    %v3329 = vand.u32 %v2571, 4294901760
    %v3330 = vsub.f32 %v2571, %v3329
    %v3331 = vand.u32 %v3330, 4294901760
    %3332 = vmatmul.mubr.f32.gmra.mrb[0].mxu0 %v3331
    %v3333 = vpop.f32.mrb[0].mxu0
    %v3334 = vadd.f32 %v3141, %v3333
    %v3335 = vpop.f32.mrb[0].mxu0
    %3336 = vmatprep.mubr.f32.mxu0 0.0
    %v3337 = vand.u32 %v2574, 4294901760
    %v3338 = vsub.f32 %v2574, %v3337
    %v3339 = vand.u32 %v3338, 4294901760
    %3340 = vmatmul.mubr.f32.gmra.mrb[0].mxu0 %v3339
    %v3341 = vpop.f32.mrb[0].mxu0
    %v3342 = vadd.f32 %v3148, %v3341
    %v3343 = vpop.f32.mrb[0].mxu0
    %3344 = vmatprep.mubr.f32.mxu0 0.0
    %v3345 = vand.u32 %v2577, 4294901760
    %v3346 = vsub.f32 %v2577, %v3345
    %v3347 = vand.u32 %v3346, 4294901760
    %3348 = vmatmul.mubr.f32.gmra.mrb[0].mxu0 %v3347
    %v3349 = vpop.f32.mrb[0].mxu0
    %v3350 = vadd.f32 %v3155, %v3349
    %v3351 = vpop.f32.mrb[0].mxu0
    %3352 = vdwg.mxu0
    %3353 = vmatprep.subr.mxu0 0.0
    %v3354 = vand.u32 %v2529, 4294901760
    %v3355 = vsub.f32 %v2529, %v3354
    %v3356 = vand.u32 %v3355, 4294901760
    %3357 = vmatpush1.msra.mxu0 %v3356
    %3358 = vmatprep.subr.mxu0 0.0
    %v3359 = vand.u32 %v2530, 4294901760
    %v3360 = vsub.f32 %v2530, %v3359
    %v3361 = vand.u32 %v3360, 4294901760
    %3362 = vmatpush1.msra.mxu0 %v3361
    %3363 = vmatprep.subr.mxu0 0.0
    %3364 = vmatpush1.msra.mxu0 0.0
    %3365 = vmatprep.subr.mxu0 0.0
    %3366 = vmatpush1.msra.mxu0 0.0
    %3367 = vmatprep.subr.mxu0 0.0
    %3368 = vmatpush1.msra.mxu0 0.0
    %3369 = vmatprep.subr.mxu0 0.0
    %3370 = vmatpush1.msra.mxu0 0.0
    %3371 = vmatprep.subr.mxu0 0.0
    %3372 = vmatpush1.msra.mxu0 0.0
    %3373 = vmatprep.subr.mxu0 0.0
    %3374 = vmatpush1.msra.mxu0 0.0
    %3375 = vmatprep.subr.mxu0 0.0
    %3376 = vmatpush1.msra.mxu0 0.0
    %3377 = vmatprep.subr.mxu0 0.0
    %3378 = vmatpush1.msra.mxu0 0.0
    %3379 = vmatprep.subr.mxu0 0.0
    %3380 = vmatpush1.msra.mxu0 0.0
    %3381 = vmatprep.subr.mxu0 0.0
    %3382 = vmatpush1.msra.mxu0 0.0
    %3383 = vmatprep.subr.mxu0 0.0
    %3384 = vmatpush1.msra.mxu0 0.0
    %3385 = vmatprep.subr.mxu0 0.0
    %3386 = vmatpush1.msra.mxu0 0.0
    %3387 = vmatprep.subr.mxu0 0.0
    %3388 = vmatpush1.msra.mxu0 0.0
    %3389 = vmatprep.subr.mxu0 0.0
    %3390 = vmatpush1.msra.mxu0 0.0
    %3391 = vmatprep.subr.mxu0 0.0
    %3392 = vmatpush1.msra.mxu0 0.0
    %3393 = vmatprep.subr.mxu0 0.0
    %3394 = vmatpush1.msra.mxu0 0.0
    %3395 = vmatprep.subr.mxu0 0.0
    %3396 = vmatpush1.msra.mxu0 0.0
    %3397 = vmatprep.subr.mxu0 0.0
    %3398 = vmatpush1.msra.mxu0 0.0
    %3399 = vmatprep.subr.mxu0 0.0
    %3400 = vmatpush1.msra.mxu0 0.0
    %3401 = vmatprep.subr.mxu0 0.0
    %3402 = vmatpush1.msra.mxu0 0.0
    %3403 = vmatprep.subr.mxu0 0.0
    %3404 = vmatpush1.msra.mxu0 0.0
    %3405 = vmatprep.subr.mxu0 0.0
    %3406 = vmatpush1.msra.mxu0 0.0
    %3407 = vmatprep.subr.mxu0 0.0
    %3408 = vmatpush1.msra.mxu0 0.0
    %3409 = vmatprep.subr.mxu0 0.0
    %3410 = vmatpush1.msra.mxu0 0.0
    %3411 = vmatprep.subr.mxu0 0.0
    %3412 = vmatpush1.msra.mxu0 0.0
    %3413 = vmatprep.subr.mxu0 0.0
    %3414 = vmatpush1.msra.mxu0 0.0
    %3415 = vmatprep.subr.mxu0 0.0
    %3416 = vmatpush1.msra.mxu0 0.0
    %3417 = vmatprep.subr.mxu0 0.0
    %3418 = vmatpush1.msra.mxu0 0.0
    %3419 = vmatprep.subr.mxu0 0.0
    %3420 = vmatpush1.msra.mxu0 0.0
    %3421 = vmatprep.subr.mxu0 0.0
    %3422 = vmatpush1.msra.mxu0 0.0
    %3423 = vmatprep.mubr.f32.mxu0 0.0
    %v3424 = vand.u32 %v2532, 4294901760
    %3425 = vmatmul.mubr.f32.gmra.mrb[0].mxu0 %v3424
    %v3426 = vpop.f32.mrb[0].mxu0
    %v3427 = vadd.f32 %v3230, %v3426
    %v3428 = vpop.f32.mrb[0].mxu0
    %3429 = vmatprep.mubr.f32.mxu0 0.0
    %v3430 = vand.u32 %v2535, 4294901760
    %3431 = vmatmul.mubr.f32.gmra.mrb[0].mxu0 %v3430
    %v3432 = vpop.f32.mrb[0].mxu0
    %v3433 = vadd.f32 %v3238, %v3432
    %v3434 = vpop.f32.mrb[0].mxu0
    %3435 = vmatprep.mubr.f32.mxu0 0.0
    %v3436 = vand.u32 %v2538, 4294901760
    %3437 = vmatmul.mubr.f32.gmra.mrb[0].mxu0 %v3436
    %v3438 = vpop.f32.mrb[0].mxu0
    %v3439 = vadd.f32 %v3246, %v3438
    %v3440 = vpop.f32.mrb[0].mxu0
    %3441 = vmatprep.mubr.f32.mxu0 0.0
    %v3442 = vand.u32 %v2541, 4294901760
    %3443 = vmatmul.mubr.f32.gmra.mrb[0].mxu0 %v3442
    %v3444 = vpop.f32.mrb[0].mxu0
    %v3445 = vadd.f32 %v3254, %v3444
    %v3446 = vpop.f32.mrb[0].mxu0
    %3447 = vmatprep.mubr.f32.mxu0 0.0
    %v3448 = vand.u32 %v2544, 4294901760
    %3449 = vmatmul.mubr.f32.gmra.mrb[0].mxu0 %v3448
    %v3450 = vpop.f32.mrb[0].mxu0
    %v3451 = vadd.f32 %v3262, %v3450
    %v3452 = vpop.f32.mrb[0].mxu0
    %3453 = vmatprep.mubr.f32.mxu0 0.0
    %v3454 = vand.u32 %v2547, 4294901760
    %3455 = vmatmul.mubr.f32.gmra.mrb[0].mxu0 %v3454
    %v3456 = vpop.f32.mrb[0].mxu0
    %v3457 = vadd.f32 %v3270, %v3456
    %v3458 = vpop.f32.mrb[0].mxu0
    %3459 = vmatprep.mubr.f32.mxu0 0.0
    %v3460 = vand.u32 %v2550, 4294901760
    %3461 = vmatmul.mubr.f32.gmra.mrb[0].mxu0 %v3460
    %v3462 = vpop.f32.mrb[0].mxu0
    %v3463 = vadd.f32 %v3278, %v3462
    %v3464 = vpop.f32.mrb[0].mxu0
    %3465 = vmatprep.mubr.f32.mxu0 0.0
    %v3466 = vand.u32 %v2553, 4294901760
    %3467 = vmatmul.mubr.f32.gmra.mrb[0].mxu0 %v3466
    %v3468 = vpop.f32.mrb[0].mxu0
    %v3469 = vadd.f32 %v3286, %v3468
    %v3470 = vpop.f32.mrb[0].mxu0
    %3471 = vmatprep.mubr.f32.mxu0 0.0
    %v3472 = vand.u32 %v2556, 4294901760
    %3473 = vmatmul.mubr.f32.gmra.mrb[0].mxu0 %v3472
    %v3474 = vpop.f32.mrb[0].mxu0
    %v3475 = vadd.f32 %v3294, %v3474
    %v3476 = vpop.f32.mrb[0].mxu0
    %3477 = vmatprep.mubr.f32.mxu0 0.0
    %v3478 = vand.u32 %v2559, 4294901760
    %3479 = vmatmul.mubr.f32.gmra.mrb[0].mxu0 %v3478
    %v3480 = vpop.f32.mrb[0].mxu0
    %v3481 = vadd.f32 %v3302, %v3480
    %v3482 = vpop.f32.mrb[0].mxu0
    %3483 = vmatprep.mubr.f32.mxu0 0.0
    %v3484 = vand.u32 %v2562, 4294901760
    %3485 = vmatmul.mubr.f32.gmra.mrb[0].mxu0 %v3484
    %v3486 = vpop.f32.mrb[0].mxu0
    %v3487 = vadd.f32 %v3310, %v3486
    %v3488 = vpop.f32.mrb[0].mxu0
    %3489 = vmatprep.mubr.f32.mxu0 0.0
    %v3490 = vand.u32 %v2565, 4294901760
    %3491 = vmatmul.mubr.f32.gmra.mrb[0].mxu0 %v3490
    %v3492 = vpop.f32.mrb[0].mxu0
    %v3493 = vadd.f32 %v3318, %v3492
    %v3494 = vpop.f32.mrb[0].mxu0
    %3495 = vmatprep.mubr.f32.mxu0 0.0
    %v3496 = vand.u32 %v2568, 4294901760
    %3497 = vmatmul.mubr.f32.gmra.mrb[0].mxu0 %v3496
    %v3498 = vpop.f32.mrb[0].mxu0
    %v3499 = vadd.f32 %v3326, %v3498
    %v3500 = vpop.f32.mrb[0].mxu0
    %3501 = vmatprep.mubr.f32.mxu0 0.0
    %v3502 = vand.u32 %v2571, 4294901760
    %3503 = vmatmul.mubr.f32.gmra.mrb[0].mxu0 %v3502
    %v3504 = vpop.f32.mrb[0].mxu0
    %v3505 = vadd.f32 %v3334, %v3504
    %v3506 = vpop.f32.mrb[0].mxu0
    %3507 = vmatprep.mubr.f32.mxu0 0.0
    %v3508 = vand.u32 %v2574, 4294901760
    %3509 = vmatmul.mubr.f32.gmra.mrb[0].mxu0 %v3508
    %v3510 = vpop.f32.mrb[0].mxu0
    %v3511 = vadd.f32 %v3342, %v3510
    %v3512 = vpop.f32.mrb[0].mxu0
    %3513 = vmatprep.mubr.f32.mxu0 0.0
    %v3514 = vand.u32 %v2577, 4294901760
    %3515 = vmatmul.mubr.f32.gmra.mrb[0].mxu0 %v3514
    %v3516 = vpop.f32.mrb[0].mxu0
    %v3517 = vadd.f32 %v3350, %v3516
    %v3518 = vpop.f32.mrb[0].mxu0
    %3519 = vdwg.mxu0
    %3520 = vmatprep.subr.mxu0 0.0
    %v3521 = vand.u32 %v2529, 4294901760
    %3522 = vmatpush1.msra.mxu0 %v3521
    %3523 = vmatprep.subr.mxu0 0.0
    %v3524 = vand.u32 %v2530, 4294901760
    %3525 = vmatpush1.msra.mxu0 %v3524
    %3526 = vmatprep.subr.mxu0 0.0
    %3527 = vmatpush1.msra.mxu0 0.0
    %3528 = vmatprep.subr.mxu0 0.0
    %3529 = vmatpush1.msra.mxu0 0.0
    %3530 = vmatprep.subr.mxu0 0.0
    %3531 = vmatpush1.msra.mxu0 0.0
    %3532 = vmatprep.subr.mxu0 0.0
    %3533 = vmatpush1.msra.mxu0 0.0
    %3534 = vmatprep.subr.mxu0 0.0
    %3535 = vmatpush1.msra.mxu0 0.0
    %3536 = vmatprep.subr.mxu0 0.0
    %3537 = vmatpush1.msra.mxu0 0.0
    %3538 = vmatprep.subr.mxu0 0.0
    %3539 = vmatpush1.msra.mxu0 0.0
    %3540 = vmatprep.subr.mxu0 0.0
    %3541 = vmatpush1.msra.mxu0 0.0
    %3542 = vmatprep.subr.mxu0 0.0
    %3543 = vmatpush1.msra.mxu0 0.0
    %3544 = vmatprep.subr.mxu0 0.0
    %3545 = vmatpush1.msra.mxu0 0.0
    %3546 = vmatprep.subr.mxu0 0.0
    %3547 = vmatpush1.msra.mxu0 0.0
    %3548 = vmatprep.subr.mxu0 0.0
    %3549 = vmatpush1.msra.mxu0 0.0
    %3550 = vmatprep.subr.mxu0 0.0
    %3551 = vmatpush1.msra.mxu0 0.0
    %3552 = vmatprep.subr.mxu0 0.0
    %3553 = vmatpush1.msra.mxu0 0.0
    %3554 = vmatprep.subr.mxu0 0.0
    %3555 = vmatpush1.msra.mxu0 0.0
    %3556 = vmatprep.subr.mxu0 0.0
    %3557 = vmatpush1.msra.mxu0 0.0
    %3558 = vmatprep.subr.mxu0 0.0
    %3559 = vmatpush1.msra.mxu0 0.0
    %3560 = vmatprep.subr.mxu0 0.0
    %3561 = vmatpush1.msra.mxu0 0.0
    %3562 = vmatprep.subr.mxu0 0.0
    %3563 = vmatpush1.msra.mxu0 0.0
    %3564 = vmatprep.subr.mxu0 0.0
    %3565 = vmatpush1.msra.mxu0 0.0
    %3566 = vmatprep.subr.mxu0 0.0
    %3567 = vmatpush1.msra.mxu0 0.0
    %3568 = vmatprep.subr.mxu0 0.0
    %3569 = vmatpush1.msra.mxu0 0.0
    %3570 = vmatprep.subr.mxu0 0.0
    %3571 = vmatpush1.msra.mxu0 0.0
    %3572 = vmatprep.subr.mxu0 0.0
    %3573 = vmatpush1.msra.mxu0 0.0
    %3574 = vmatprep.subr.mxu0 0.0
    %3575 = vmatpush1.msra.mxu0 0.0
    %3576 = vmatprep.subr.mxu0 0.0
    %3577 = vmatpush1.msra.mxu0 0.0
    %3578 = vmatprep.subr.mxu0 0.0
    %3579 = vmatpush1.msra.mxu0 0.0
    %3580 = vmatprep.subr.mxu0 0.0
    %3581 = vmatpush1.msra.mxu0 0.0
    %3582 = vmatprep.subr.mxu0 0.0
    %3583 = vmatpush1.msra.mxu0 0.0
    %3584 = vmatprep.subr.mxu0 0.0
    %3585 = vmatpush1.msra.mxu0 0.0
    %3586 = vmatprep.mubr.f32.mxu0 0.0
    %v3587 = vand.u32 %v2532, 4294901760
    %3588 = vmatmul.mubr.f32.gmra.mrb[0].mxu0 %v3587
    %v3589 = vpop.f32.mrb[0].mxu0
    %v3590 = vadd.f32 %v3427, %v3589
    %v3591 = vpop.f32.mrb[0].mxu0
    %3592 = vmatprep.mubr.f32.mxu0 0.0
    %v3593 = vand.u32 %v2535, 4294901760
    %3594 = vmatmul.mubr.f32.gmra.mrb[0].mxu0 %v3593
    %v3595 = vpop.f32.mrb[0].mxu0
    %v3596 = vadd.f32 %v3433, %v3595
    %v3597 = vpop.f32.mrb[0].mxu0
    %3598 = vmatprep.mubr.f32.mxu0 0.0
    %v3599 = vand.u32 %v2538, 4294901760
    %3600 = vmatmul.mubr.f32.gmra.mrb[0].mxu0 %v3599
    %v3601 = vpop.f32.mrb[0].mxu0
    %v3602 = vadd.f32 %v3439, %v3601
    %v3603 = vpop.f32.mrb[0].mxu0
    %3604 = vmatprep.mubr.f32.mxu0 0.0
    %v3605 = vand.u32 %v2541, 4294901760
    %3606 = vmatmul.mubr.f32.gmra.mrb[0].mxu0 %v3605
    %v3607 = vpop.f32.mrb[0].mxu0
    %v3608 = vadd.f32 %v3445, %v3607
    %v3609 = vpop.f32.mrb[0].mxu0
    %3610 = vmatprep.mubr.f32.mxu0 0.0
    %v3611 = vand.u32 %v2544, 4294901760
    %3612 = vmatmul.mubr.f32.gmra.mrb[0].mxu0 %v3611
    %v3613 = vpop.f32.mrb[0].mxu0
    %v3614 = vadd.f32 %v3451, %v3613
    %v3615 = vpop.f32.mrb[0].mxu0
    %3616 = vmatprep.mubr.f32.mxu0 0.0
    %v3617 = vand.u32 %v2547, 4294901760
    %3618 = vmatmul.mubr.f32.gmra.mrb[0].mxu0 %v3617
    %v3619 = vpop.f32.mrb[0].mxu0
    %v3620 = vadd.f32 %v3457, %v3619
    %v3621 = vpop.f32.mrb[0].mxu0
    %3622 = vmatprep.mubr.f32.mxu0 0.0
    %v3623 = vand.u32 %v2550, 4294901760
    %3624 = vmatmul.mubr.f32.gmra.mrb[0].mxu0 %v3623
    %v3625 = vpop.f32.mrb[0].mxu0
    %v3626 = vadd.f32 %v3463, %v3625
    %v3627 = vpop.f32.mrb[0].mxu0
    %3628 = vmatprep.mubr.f32.mxu0 0.0
    %v3629 = vand.u32 %v2553, 4294901760
    %3630 = vmatmul.mubr.f32.gmra.mrb[0].mxu0 %v3629
    %v3631 = vpop.f32.mrb[0].mxu0
    %v3632 = vadd.f32 %v3469, %v3631
    %v3633 = vpop.f32.mrb[0].mxu0
    %3634 = vmatprep.mubr.f32.mxu0 0.0
    %v3635 = vand.u32 %v2556, 4294901760
    %3636 = vmatmul.mubr.f32.gmra.mrb[0].mxu0 %v3635
    %v3637 = vpop.f32.mrb[0].mxu0
    %v3638 = vadd.f32 %v3475, %v3637
    %v3639 = vpop.f32.mrb[0].mxu0
    %3640 = vmatprep.mubr.f32.mxu0 0.0
    %v3641 = vand.u32 %v2559, 4294901760
    %3642 = vmatmul.mubr.f32.gmra.mrb[0].mxu0 %v3641
    %v3643 = vpop.f32.mrb[0].mxu0
    %v3644 = vadd.f32 %v3481, %v3643
    %v3645 = vpop.f32.mrb[0].mxu0
    %3646 = vmatprep.mubr.f32.mxu0 0.0
    %v3647 = vand.u32 %v2562, 4294901760
    %3648 = vmatmul.mubr.f32.gmra.mrb[0].mxu0 %v3647
    %v3649 = vpop.f32.mrb[0].mxu0
    %v3650 = vadd.f32 %v3487, %v3649
    %v3651 = vpop.f32.mrb[0].mxu0
    %3652 = vmatprep.mubr.f32.mxu0 0.0
    %v3653 = vand.u32 %v2565, 4294901760
    %3654 = vmatmul.mubr.f32.gmra.mrb[0].mxu0 %v3653
    %v3655 = vpop.f32.mrb[0].mxu0
    %v3656 = vadd.f32 %v3493, %v3655
    %v3657 = vpop.f32.mrb[0].mxu0
    %3658 = vmatprep.mubr.f32.mxu0 0.0
    %v3659 = vand.u32 %v2568, 4294901760
    %3660 = vmatmul.mubr.f32.gmra.mrb[0].mxu0 %v3659
    %v3661 = vpop.f32.mrb[0].mxu0
    %v3662 = vadd.f32 %v3499, %v3661
    %v3663 = vpop.f32.mrb[0].mxu0
    %3664 = vmatprep.mubr.f32.mxu0 0.0
    %v3665 = vand.u32 %v2571, 4294901760
    %3666 = vmatmul.mubr.f32.gmra.mrb[0].mxu0 %v3665
    %v3667 = vpop.f32.mrb[0].mxu0
    %v3668 = vadd.f32 %v3505, %v3667
    %v3669 = vpop.f32.mrb[0].mxu0
    %3670 = vmatprep.mubr.f32.mxu0 0.0
    %v3671 = vand.u32 %v2574, 4294901760
    %3672 = vmatmul.mubr.f32.gmra.mrb[0].mxu0 %v3671
    %v3673 = vpop.f32.mrb[0].mxu0
    %v3674 = vadd.f32 %v3511, %v3673
    %v3675 = vpop.f32.mrb[0].mxu0
    %3676 = vmatprep.mubr.f32.mxu0 0.0
    %v3677 = vand.u32 %v2577, 4294901760
    %3678 = vmatmul.mubr.f32.gmra.mrb[0].mxu0 %v3677
    %v3679 = vpop.f32.mrb[0].mxu0
    %v3680 = vadd.f32 %v3517, %v3679
    %v3681 = vpop.f32.mrb[0].mxu0
    %3682 = vdwg.mxu0
    %3683 = vmatprep.subr.mxu0 0.0
    %v3684 = vand.u32 %v40, 4294901760
    %3685 = vmatpush1.msra.mxu0 %v3684
    %3686 = vmatprep.subr.mxu0 0.0
    %v3687 = vand.u32 %v41, 4294901760
    %3688 = vmatpush1.msra.mxu0 %v3687
    %3689 = vmatprep.subr.mxu0 0.0
    %v3690 = vand.u32 %v42, 4294901760
    %3691 = vmatpush1.msra.mxu0 %v3690
    %3692 = vmatprep.subr.mxu0 0.0
    %v3693 = vand.u32 %v43, 4294901760
    %3694 = vmatpush1.msra.mxu0 %v3693
    %3695 = vmatprep.subr.mxu0 0.0
    %v3696 = vand.u32 %v44, 4294901760
    %3697 = vmatpush1.msra.mxu0 %v3696
    %3698 = vmatprep.subr.mxu0 0.0
    %v3699 = vand.u32 %v45, 4294901760
    %3700 = vmatpush1.msra.mxu0 %v3699
    %3701 = vmatprep.subr.mxu0 0.0
    %v3702 = vand.u32 %v46, 4294901760
    %3703 = vmatpush1.msra.mxu0 %v3702
    %3704 = vmatprep.subr.mxu0 0.0
    %v3705 = vand.u32 %v47, 4294901760
    %3706 = vmatpush1.msra.mxu0 %v3705
    %3707 = vmatprep.subr.mxu0 0.0
    %v3708 = vand.u32 %v48, 4294901760
    %3709 = vmatpush1.msra.mxu0 %v3708
    %3710 = vmatprep.subr.mxu0 0.0
    %v3711 = vand.u32 %v49, 4294901760
    %3712 = vmatpush1.msra.mxu0 %v3711
    %3713 = vmatprep.subr.mxu0 0.0
    %v3714 = vand.u32 %v50, 4294901760
    %3715 = vmatpush1.msra.mxu0 %v3714
    %3716 = vmatprep.subr.mxu0 0.0
    %v3717 = vand.u32 %v51, 4294901760
    %3718 = vmatpush1.msra.mxu0 %v3717
    %3719 = vmatprep.subr.mxu0 0.0
    %v3720 = vand.u32 %v52, 4294901760
    %3721 = vmatpush1.msra.mxu0 %v3720
    %3722 = vmatprep.subr.mxu0 0.0
    %v3723 = vand.u32 %v53, 4294901760
    %3724 = vmatpush1.msra.mxu0 %v3723
    %3725 = vmatprep.subr.mxu0 0.0
    %v3726 = vand.u32 %v54, 4294901760
    %3727 = vmatpush1.msra.mxu0 %v3726
    %3728 = vmatprep.subr.mxu0 0.0
    %v3729 = vand.u32 %v55, 4294901760
    %3730 = vmatpush1.msra.mxu0 %v3729
    %3731 = vmatprep.subr.mxu0 0.0
    %3732 = vmatpush1.msra.mxu0 0.0
    %3733 = vmatprep.subr.mxu0 0.0
    %3734 = vmatpush1.msra.mxu0 0.0
    %3735 = vmatprep.subr.mxu0 0.0
    %3736 = vmatpush1.msra.mxu0 0.0
    %3737 = vmatprep.subr.mxu0 0.0
    %3738 = vmatpush1.msra.mxu0 0.0
    %3739 = vmatprep.subr.mxu0 0.0
    %3740 = vmatpush1.msra.mxu0 0.0
    %3741 = vmatprep.subr.mxu0 0.0
    %3742 = vmatpush1.msra.mxu0 0.0
    %3743 = vmatprep.subr.mxu0 0.0
    %3744 = vmatpush1.msra.mxu0 0.0
    %3745 = vmatprep.subr.mxu0 0.0
    %3746 = vmatpush1.msra.mxu0 0.0
    %3747 = vmatprep.subr.mxu0 0.0
    %3748 = vmatpush1.msra.mxu0 0.0
    %3749 = vmatprep.subr.mxu0 0.0
    %3750 = vmatpush1.msra.mxu0 0.0
    %3751 = vmatprep.subr.mxu0 0.0
    %3752 = vmatpush1.msra.mxu0 0.0
    %3753 = vmatprep.subr.mxu0 0.0
    %3754 = vmatpush1.msra.mxu0 0.0
    %3755 = vmatprep.subr.mxu0 0.0
    %3756 = vmatpush1.msra.mxu0 0.0
    %3757 = vmatprep.subr.mxu0 0.0
    %3758 = vmatpush1.msra.mxu0 0.0
    %3759 = vmatprep.subr.mxu0 0.0
    %3760 = vmatpush1.msra.mxu0 0.0
    %3761 = vmatprep.subr.mxu0 0.0
    %3762 = vmatpush1.msra.mxu0 0.0
    %3763 = vmatprep.mubr.f32.mxu0 0.0
    %v3764 = vand.u32 %v2513, 4294901760
    %v3765 = vsub.f32 %v2513, %v3764
    %v3766 = vand.u32 %v3765, 4294901760
    %v3767 = vsub.f32 %v3765, %v3766
    %v3768 = vand.u32 %v3767, 4294901760
    %3769 = vmatmul.mubr.f32.gmra.mrb[0].mxu0 %v3768
    %v3770 = vpop.f32.mrb[0].mxu0
    %v3771 = vadd.f32 %v3590, %v3770
    %v3772 = vpop.f32.mrb[0].mxu0
    %3773 = vmatprep.mubr.f32.mxu0 0.0
    %v3774 = vand.u32 %v2514, 4294901760
    %v3775 = vsub.f32 %v2514, %v3774
    %v3776 = vand.u32 %v3775, 4294901760
    %v3777 = vsub.f32 %v3775, %v3776
    %v3778 = vand.u32 %v3777, 4294901760
    %3779 = vmatmul.mubr.f32.gmra.mrb[0].mxu0 %v3778
    %v3780 = vpop.f32.mrb[0].mxu0
    %v3781 = vadd.f32 %v3596, %v3780
    %v3782 = vpop.f32.mrb[0].mxu0
    %3783 = vmatprep.mubr.f32.mxu0 0.0
    %v3784 = vand.u32 %v2515, 4294901760
    %v3785 = vsub.f32 %v2515, %v3784
    %v3786 = vand.u32 %v3785, 4294901760
    %v3787 = vsub.f32 %v3785, %v3786
    %v3788 = vand.u32 %v3787, 4294901760
    %3789 = vmatmul.mubr.f32.gmra.mrb[0].mxu0 %v3788
    %v3790 = vpop.f32.mrb[0].mxu0
    %v3791 = vadd.f32 %v3602, %v3790
    %v3792 = vpop.f32.mrb[0].mxu0
    %3793 = vmatprep.mubr.f32.mxu0 0.0
    %v3794 = vand.u32 %v2516, 4294901760
    %v3795 = vsub.f32 %v2516, %v3794
    %v3796 = vand.u32 %v3795, 4294901760
    %v3797 = vsub.f32 %v3795, %v3796
    %v3798 = vand.u32 %v3797, 4294901760
    %3799 = vmatmul.mubr.f32.gmra.mrb[0].mxu0 %v3798
    %v3800 = vpop.f32.mrb[0].mxu0
    %v3801 = vadd.f32 %v3608, %v3800
    %v3802 = vpop.f32.mrb[0].mxu0
    %3803 = vmatprep.mubr.f32.mxu0 0.0
    %v3804 = vand.u32 %v2517, 4294901760
    %v3805 = vsub.f32 %v2517, %v3804
    %v3806 = vand.u32 %v3805, 4294901760
    %v3807 = vsub.f32 %v3805, %v3806
    %v3808 = vand.u32 %v3807, 4294901760
    %3809 = vmatmul.mubr.f32.gmra.mrb[0].mxu0 %v3808
    %v3810 = vpop.f32.mrb[0].mxu0
    %v3811 = vadd.f32 %v3614, %v3810
    %v3812 = vpop.f32.mrb[0].mxu0
    %3813 = vmatprep.mubr.f32.mxu0 0.0
    %v3814 = vand.u32 %v2518, 4294901760
    %v3815 = vsub.f32 %v2518, %v3814
    %v3816 = vand.u32 %v3815, 4294901760
    %v3817 = vsub.f32 %v3815, %v3816
    %v3818 = vand.u32 %v3817, 4294901760
    %3819 = vmatmul.mubr.f32.gmra.mrb[0].mxu0 %v3818
    %v3820 = vpop.f32.mrb[0].mxu0
    %v3821 = vadd.f32 %v3620, %v3820
    %v3822 = vpop.f32.mrb[0].mxu0
    %3823 = vmatprep.mubr.f32.mxu0 0.0
    %v3824 = vand.u32 %v2519, 4294901760
    %v3825 = vsub.f32 %v2519, %v3824
    %v3826 = vand.u32 %v3825, 4294901760
    %v3827 = vsub.f32 %v3825, %v3826
    %v3828 = vand.u32 %v3827, 4294901760
    %3829 = vmatmul.mubr.f32.gmra.mrb[0].mxu0 %v3828
    %v3830 = vpop.f32.mrb[0].mxu0
    %v3831 = vadd.f32 %v3626, %v3830
    %v3832 = vpop.f32.mrb[0].mxu0
    %3833 = vmatprep.mubr.f32.mxu0 0.0
    %v3834 = vand.u32 %v2520, 4294901760
    %v3835 = vsub.f32 %v2520, %v3834
    %v3836 = vand.u32 %v3835, 4294901760
    %v3837 = vsub.f32 %v3835, %v3836
    %v3838 = vand.u32 %v3837, 4294901760
    %3839 = vmatmul.mubr.f32.gmra.mrb[0].mxu0 %v3838
    %v3840 = vpop.f32.mrb[0].mxu0
    %v3841 = vadd.f32 %v3632, %v3840
    %v3842 = vpop.f32.mrb[0].mxu0
    %3843 = vmatprep.mubr.f32.mxu0 0.0
    %v3844 = vand.u32 %v2521, 4294901760
    %v3845 = vsub.f32 %v2521, %v3844
    %v3846 = vand.u32 %v3845, 4294901760
    %v3847 = vsub.f32 %v3845, %v3846
    %v3848 = vand.u32 %v3847, 4294901760
    %3849 = vmatmul.mubr.f32.gmra.mrb[0].mxu0 %v3848
    %v3850 = vpop.f32.mrb[0].mxu0
    %v3851 = vadd.f32 %v3638, %v3850
    %v3852 = vpop.f32.mrb[0].mxu0
    %3853 = vmatprep.mubr.f32.mxu0 0.0
    %v3854 = vand.u32 %v2522, 4294901760
    %v3855 = vsub.f32 %v2522, %v3854
    %v3856 = vand.u32 %v3855, 4294901760
    %v3857 = vsub.f32 %v3855, %v3856
    %v3858 = vand.u32 %v3857, 4294901760
    %3859 = vmatmul.mubr.f32.gmra.mrb[0].mxu0 %v3858
    %v3860 = vpop.f32.mrb[0].mxu0
    %v3861 = vadd.f32 %v3644, %v3860
    %v3862 = vpop.f32.mrb[0].mxu0
    %3863 = vmatprep.mubr.f32.mxu0 0.0
    %v3864 = vand.u32 %v2523, 4294901760
    %v3865 = vsub.f32 %v2523, %v3864
    %v3866 = vand.u32 %v3865, 4294901760
    %v3867 = vsub.f32 %v3865, %v3866
    %v3868 = vand.u32 %v3867, 4294901760
    %3869 = vmatmul.mubr.f32.gmra.mrb[0].mxu0 %v3868
    %v3870 = vpop.f32.mrb[0].mxu0
    %v3871 = vadd.f32 %v3650, %v3870
    %v3872 = vpop.f32.mrb[0].mxu0
    %3873 = vmatprep.mubr.f32.mxu0 0.0
    %v3874 = vand.u32 %v2524, 4294901760
    %v3875 = vsub.f32 %v2524, %v3874
    %v3876 = vand.u32 %v3875, 4294901760
    %v3877 = vsub.f32 %v3875, %v3876
    %v3878 = vand.u32 %v3877, 4294901760
    %3879 = vmatmul.mubr.f32.gmra.mrb[0].mxu0 %v3878
    %v3880 = vpop.f32.mrb[0].mxu0
    %v3881 = vadd.f32 %v3656, %v3880
    %v3882 = vpop.f32.mrb[0].mxu0
    %3883 = vmatprep.mubr.f32.mxu0 0.0
    %v3884 = vand.u32 %v2525, 4294901760
    %v3885 = vsub.f32 %v2525, %v3884
    %v3886 = vand.u32 %v3885, 4294901760
    %v3887 = vsub.f32 %v3885, %v3886
    %v3888 = vand.u32 %v3887, 4294901760
    %3889 = vmatmul.mubr.f32.gmra.mrb[0].mxu0 %v3888
    %v3890 = vpop.f32.mrb[0].mxu0
    %v3891 = vadd.f32 %v3662, %v3890
    %v3892 = vpop.f32.mrb[0].mxu0
    %3893 = vmatprep.mubr.f32.mxu0 0.0
    %v3894 = vand.u32 %v2526, 4294901760
    %v3895 = vsub.f32 %v2526, %v3894
    %v3896 = vand.u32 %v3895, 4294901760
    %v3897 = vsub.f32 %v3895, %v3896
    %v3898 = vand.u32 %v3897, 4294901760
    %3899 = vmatmul.mubr.f32.gmra.mrb[0].mxu0 %v3898
    %v3900 = vpop.f32.mrb[0].mxu0
    %v3901 = vadd.f32 %v3668, %v3900
    %v3902 = vpop.f32.mrb[0].mxu0
    %3903 = vmatprep.mubr.f32.mxu0 0.0
    %v3904 = vand.u32 %v2527, 4294901760
    %v3905 = vsub.f32 %v2527, %v3904
    %v3906 = vand.u32 %v3905, 4294901760
    %v3907 = vsub.f32 %v3905, %v3906
    %v3908 = vand.u32 %v3907, 4294901760
    %3909 = vmatmul.mubr.f32.gmra.mrb[0].mxu0 %v3908
    %v3910 = vpop.f32.mrb[0].mxu0
    %v3911 = vadd.f32 %v3674, %v3910
    %v3912 = vpop.f32.mrb[0].mxu0
    %3913 = vmatprep.mubr.f32.mxu0 0.0
    %v3914 = vand.u32 %v2528, 4294901760
    %v3915 = vsub.f32 %v2528, %v3914
    %v3916 = vand.u32 %v3915, 4294901760
    %v3917 = vsub.f32 %v3915, %v3916
    %v3918 = vand.u32 %v3917, 4294901760
    %3919 = vmatmul.mubr.f32.gmra.mrb[0].mxu0 %v3918
    %v3920 = vpop.f32.mrb[0].mxu0
    %v3921 = vadd.f32 %v3680, %v3920
    %v3922 = vpop.f32.mrb[0].mxu0
    %3923 = vdwg.mxu0
    %3924 = vmatprep.subr.mxu0 0.0
    %v3925 = vand.u32 %v40, 4294901760
    %v3926 = vsub.f32 %v40, %v3925
    %v3927 = vand.u32 %v3926, 4294901760
    %v3928 = vsub.f32 %v3926, %v3927
    %v3929 = vand.u32 %v3928, 4294901760
    %3930 = vmatpush1.msra.mxu0 %v3929
    %3931 = vmatprep.subr.mxu0 0.0
    %v3932 = vand.u32 %v41, 4294901760
    %v3933 = vsub.f32 %v41, %v3932
    %v3934 = vand.u32 %v3933, 4294901760
    %v3935 = vsub.f32 %v3933, %v3934
    %v3936 = vand.u32 %v3935, 4294901760
    %3937 = vmatpush1.msra.mxu0 %v3936
    %3938 = vmatprep.subr.mxu0 0.0
    %v3939 = vand.u32 %v42, 4294901760
    %v3940 = vsub.f32 %v42, %v3939
    %v3941 = vand.u32 %v3940, 4294901760
    %v3942 = vsub.f32 %v3940, %v3941
    %v3943 = vand.u32 %v3942, 4294901760
    %3944 = vmatpush1.msra.mxu0 %v3943
    %3945 = vmatprep.subr.mxu0 0.0
    %v3946 = vand.u32 %v43, 4294901760
    %v3947 = vsub.f32 %v43, %v3946
    %v3948 = vand.u32 %v3947, 4294901760
    %v3949 = vsub.f32 %v3947, %v3948
    %v3950 = vand.u32 %v3949, 4294901760
    %3951 = vmatpush1.msra.mxu0 %v3950
    %3952 = vmatprep.subr.mxu0 0.0
    %v3953 = vand.u32 %v44, 4294901760
    %v3954 = vsub.f32 %v44, %v3953
    %v3955 = vand.u32 %v3954, 4294901760
    %v3956 = vsub.f32 %v3954, %v3955
    %v3957 = vand.u32 %v3956, 4294901760
    %3958 = vmatpush1.msra.mxu0 %v3957
    %3959 = vmatprep.subr.mxu0 0.0
    %v3960 = vand.u32 %v45, 4294901760
    %v3961 = vsub.f32 %v45, %v3960
    %v3962 = vand.u32 %v3961, 4294901760
    %v3963 = vsub.f32 %v3961, %v3962
    %v3964 = vand.u32 %v3963, 4294901760
    %3965 = vmatpush1.msra.mxu0 %v3964
    %3966 = vmatprep.subr.mxu0 0.0
    %v3967 = vand.u32 %v46, 4294901760
    %v3968 = vsub.f32 %v46, %v3967
    %v3969 = vand.u32 %v3968, 4294901760
    %v3970 = vsub.f32 %v3968, %v3969
    %v3971 = vand.u32 %v3970, 4294901760
    %3972 = vmatpush1.msra.mxu0 %v3971
    %3973 = vmatprep.subr.mxu0 0.0
    %v3974 = vand.u32 %v47, 4294901760
    %v3975 = vsub.f32 %v47, %v3974
    %v3976 = vand.u32 %v3975, 4294901760
    %v3977 = vsub.f32 %v3975, %v3976
    %v3978 = vand.u32 %v3977, 4294901760
    %3979 = vmatpush1.msra.mxu0 %v3978
    %3980 = vmatprep.subr.mxu0 0.0
    %v3981 = vand.u32 %v48, 4294901760
    %v3982 = vsub.f32 %v48, %v3981
    %v3983 = vand.u32 %v3982, 4294901760
    %v3984 = vsub.f32 %v3982, %v3983
    %v3985 = vand.u32 %v3984, 4294901760
    %3986 = vmatpush1.msra.mxu0 %v3985
    %3987 = vmatprep.subr.mxu0 0.0
    %v3988 = vand.u32 %v49, 4294901760
    %v3989 = vsub.f32 %v49, %v3988
    %v3990 = vand.u32 %v3989, 4294901760
    %v3991 = vsub.f32 %v3989, %v3990
    %v3992 = vand.u32 %v3991, 4294901760
    %3993 = vmatpush1.msra.mxu0 %v3992
    %3994 = vmatprep.subr.mxu0 0.0
    %v3995 = vand.u32 %v50, 4294901760
    %v3996 = vsub.f32 %v50, %v3995
    %v3997 = vand.u32 %v3996, 4294901760
    %v3998 = vsub.f32 %v3996, %v3997
    %v3999 = vand.u32 %v3998, 4294901760
    %4000 = vmatpush1.msra.mxu0 %v3999
    %4001 = vmatprep.subr.mxu0 0.0
    %v4002 = vand.u32 %v51, 4294901760
    %v4003 = vsub.f32 %v51, %v4002
    %v4004 = vand.u32 %v4003, 4294901760
    %v4005 = vsub.f32 %v4003, %v4004
    %v4006 = vand.u32 %v4005, 4294901760
    %4007 = vmatpush1.msra.mxu0 %v4006
    %4008 = vmatprep.subr.mxu0 0.0
    %v4009 = vand.u32 %v52, 4294901760
    %v4010 = vsub.f32 %v52, %v4009
    %v4011 = vand.u32 %v4010, 4294901760
    %v4012 = vsub.f32 %v4010, %v4011
    %v4013 = vand.u32 %v4012, 4294901760
    %4014 = vmatpush1.msra.mxu0 %v4013
    %4015 = vmatprep.subr.mxu0 0.0
    %v4016 = vand.u32 %v53, 4294901760
    %v4017 = vsub.f32 %v53, %v4016
    %v4018 = vand.u32 %v4017, 4294901760
    %v4019 = vsub.f32 %v4017, %v4018
    %v4020 = vand.u32 %v4019, 4294901760
    %4021 = vmatpush1.msra.mxu0 %v4020
    %4022 = vmatprep.subr.mxu0 0.0
    %v4023 = vand.u32 %v54, 4294901760
    %v4024 = vsub.f32 %v54, %v4023
    %v4025 = vand.u32 %v4024, 4294901760
    %v4026 = vsub.f32 %v4024, %v4025
    %v4027 = vand.u32 %v4026, 4294901760
    %4028 = vmatpush1.msra.mxu0 %v4027
    %4029 = vmatprep.subr.mxu0 0.0
    %v4030 = vand.u32 %v55, 4294901760
    %v4031 = vsub.f32 %v55, %v4030
    %v4032 = vand.u32 %v4031, 4294901760
    %v4033 = vsub.f32 %v4031, %v4032
    %v4034 = vand.u32 %v4033, 4294901760
    %4035 = vmatpush1.msra.mxu0 %v4034
    %4036 = vmatprep.subr.mxu0 0.0
    %4037 = vmatpush1.msra.mxu0 0.0
    %4038 = vmatprep.subr.mxu0 0.0
    %4039 = vmatpush1.msra.mxu0 0.0
    %4040 = vmatprep.subr.mxu0 0.0
    %4041 = vmatpush1.msra.mxu0 0.0
    %4042 = vmatprep.subr.mxu0 0.0
    %4043 = vmatpush1.msra.mxu0 0.0
    %4044 = vmatprep.subr.mxu0 0.0
    %4045 = vmatpush1.msra.mxu0 0.0
    %4046 = vmatprep.subr.mxu0 0.0
    %4047 = vmatpush1.msra.mxu0 0.0
    %4048 = vmatprep.subr.mxu0 0.0
    %4049 = vmatpush1.msra.mxu0 0.0
    %4050 = vmatprep.subr.mxu0 0.0
    %4051 = vmatpush1.msra.mxu0 0.0
    %4052 = vmatprep.subr.mxu0 0.0
    %4053 = vmatpush1.msra.mxu0 0.0
    %4054 = vmatprep.subr.mxu0 0.0
    %4055 = vmatpush1.msra.mxu0 0.0
    %4056 = vmatprep.subr.mxu0 0.0
    %4057 = vmatpush1.msra.mxu0 0.0
    %4058 = vmatprep.subr.mxu0 0.0
    %4059 = vmatpush1.msra.mxu0 0.0
    %4060 = vmatprep.subr.mxu0 0.0
    %4061 = vmatpush1.msra.mxu0 0.0
    %4062 = vmatprep.subr.mxu0 0.0
    %4063 = vmatpush1.msra.mxu0 0.0
    %4064 = vmatprep.subr.mxu0 0.0
    %4065 = vmatpush1.msra.mxu0 0.0
    %4066 = vmatprep.subr.mxu0 0.0
    %4067 = vmatpush1.msra.mxu0 0.0
    %4068 = vmatprep.mubr.f32.mxu0 0.0
    %v4069 = vand.u32 %v2513, 4294901760
    %4070 = vmatmul.mubr.f32.gmra.mrb[0].mxu0 %v4069
    %v4071 = vpop.f32.mrb[0].mxu0
    %v4072 = vadd.f32 %v3771, %v4071
    %v4073 = vpop.f32.mrb[0].mxu0
    %4074 = vmatprep.mubr.f32.mxu0 0.0
    %v4075 = vand.u32 %v2514, 4294901760
    %4076 = vmatmul.mubr.f32.gmra.mrb[0].mxu0 %v4075
    %v4077 = vpop.f32.mrb[0].mxu0
    %v4078 = vadd.f32 %v3781, %v4077
    %v4079 = vpop.f32.mrb[0].mxu0
    %4080 = vmatprep.mubr.f32.mxu0 0.0
    %v4081 = vand.u32 %v2515, 4294901760
    %4082 = vmatmul.mubr.f32.gmra.mrb[0].mxu0 %v4081
    %v4083 = vpop.f32.mrb[0].mxu0
    %v4084 = vadd.f32 %v3791, %v4083
    %v4085 = vpop.f32.mrb[0].mxu0
    %4086 = vmatprep.mubr.f32.mxu0 0.0
    %v4087 = vand.u32 %v2516, 4294901760
    %4088 = vmatmul.mubr.f32.gmra.mrb[0].mxu0 %v4087
    %v4089 = vpop.f32.mrb[0].mxu0
    %v4090 = vadd.f32 %v3801, %v4089
    %v4091 = vpop.f32.mrb[0].mxu0
    %4092 = vmatprep.mubr.f32.mxu0 0.0
    %v4093 = vand.u32 %v2517, 4294901760
    %4094 = vmatmul.mubr.f32.gmra.mrb[0].mxu0 %v4093
    %v4095 = vpop.f32.mrb[0].mxu0
    %v4096 = vadd.f32 %v3811, %v4095
    %v4097 = vpop.f32.mrb[0].mxu0
    %4098 = vmatprep.mubr.f32.mxu0 0.0
    %v4099 = vand.u32 %v2518, 4294901760
    %4100 = vmatmul.mubr.f32.gmra.mrb[0].mxu0 %v4099
    %v4101 = vpop.f32.mrb[0].mxu0
    %v4102 = vadd.f32 %v3821, %v4101
    %v4103 = vpop.f32.mrb[0].mxu0
    %4104 = vmatprep.mubr.f32.mxu0 0.0
    %v4105 = vand.u32 %v2519, 4294901760
    %4106 = vmatmul.mubr.f32.gmra.mrb[0].mxu0 %v4105
    %v4107 = vpop.f32.mrb[0].mxu0
    %v4108 = vadd.f32 %v3831, %v4107
    %v4109 = vpop.f32.mrb[0].mxu0
    %4110 = vmatprep.mubr.f32.mxu0 0.0
    %v4111 = vand.u32 %v2520, 4294901760
    %4112 = vmatmul.mubr.f32.gmra.mrb[0].mxu0 %v4111
    %v4113 = vpop.f32.mrb[0].mxu0
    %v4114 = vadd.f32 %v3841, %v4113
    %v4115 = vpop.f32.mrb[0].mxu0
    %4116 = vmatprep.mubr.f32.mxu0 0.0
    %v4117 = vand.u32 %v2521, 4294901760
    %4118 = vmatmul.mubr.f32.gmra.mrb[0].mxu0 %v4117
    %v4119 = vpop.f32.mrb[0].mxu0
    %v4120 = vadd.f32 %v3851, %v4119
    %v4121 = vpop.f32.mrb[0].mxu0
    %4122 = vmatprep.mubr.f32.mxu0 0.0
    %v4123 = vand.u32 %v2522, 4294901760
    %4124 = vmatmul.mubr.f32.gmra.mrb[0].mxu0 %v4123
    %v4125 = vpop.f32.mrb[0].mxu0
    %v4126 = vadd.f32 %v3861, %v4125
    %v4127 = vpop.f32.mrb[0].mxu0
    %4128 = vmatprep.mubr.f32.mxu0 0.0
    %v4129 = vand.u32 %v2523, 4294901760
    %4130 = vmatmul.mubr.f32.gmra.mrb[0].mxu0 %v4129
    %v4131 = vpop.f32.mrb[0].mxu0
    %v4132 = vadd.f32 %v3871, %v4131
    %v4133 = vpop.f32.mrb[0].mxu0
    %4134 = vmatprep.mubr.f32.mxu0 0.0
    %v4135 = vand.u32 %v2524, 4294901760
    %4136 = vmatmul.mubr.f32.gmra.mrb[0].mxu0 %v4135
    %v4137 = vpop.f32.mrb[0].mxu0
    %v4138 = vadd.f32 %v3881, %v4137
    %v4139 = vpop.f32.mrb[0].mxu0
    %4140 = vmatprep.mubr.f32.mxu0 0.0
    %v4141 = vand.u32 %v2525, 4294901760
    %4142 = vmatmul.mubr.f32.gmra.mrb[0].mxu0 %v4141
    %v4143 = vpop.f32.mrb[0].mxu0
    %v4144 = vadd.f32 %v3891, %v4143
    %v4145 = vpop.f32.mrb[0].mxu0
    %4146 = vmatprep.mubr.f32.mxu0 0.0
    %v4147 = vand.u32 %v2526, 4294901760
    %4148 = vmatmul.mubr.f32.gmra.mrb[0].mxu0 %v4147
    %v4149 = vpop.f32.mrb[0].mxu0
    %v4150 = vadd.f32 %v3901, %v4149
    %v4151 = vpop.f32.mrb[0].mxu0
    %4152 = vmatprep.mubr.f32.mxu0 0.0
    %v4153 = vand.u32 %v2527, 4294901760
    %4154 = vmatmul.mubr.f32.gmra.mrb[0].mxu0 %v4153
    %v4155 = vpop.f32.mrb[0].mxu0
    %v4156 = vadd.f32 %v3911, %v4155
    %v4157 = vpop.f32.mrb[0].mxu0
    %4158 = vmatprep.mubr.f32.mxu0 0.0
    %v4159 = vand.u32 %v2528, 4294901760
    %4160 = vmatmul.mubr.f32.gmra.mrb[0].mxu0 %v4159
    %v4161 = vpop.f32.mrb[0].mxu0
    %v4162 = vadd.f32 %v3921, %v4161
    %v4163 = vpop.f32.mrb[0].mxu0
    %4164 = vdwg.mxu0
    %4165 = vmatprep.subr.mxu0 0.0
    %v4166 = vand.u32 %v40, 4294901760
    %v4167 = vsub.f32 %v40, %v4166
    %4168 = vmatpush1.msra.mxu0 %v4167
    %4169 = vmatprep.subr.mxu0 0.0
    %v4170 = vand.u32 %v41, 4294901760
    %v4171 = vsub.f32 %v41, %v4170
    %4172 = vmatpush1.msra.mxu0 %v4171
    %4173 = vmatprep.subr.mxu0 0.0
    %v4174 = vand.u32 %v42, 4294901760
    %v4175 = vsub.f32 %v42, %v4174
    %4176 = vmatpush1.msra.mxu0 %v4175
    %4177 = vmatprep.subr.mxu0 0.0
    %v4178 = vand.u32 %v43, 4294901760
    %v4179 = vsub.f32 %v43, %v4178
    %4180 = vmatpush1.msra.mxu0 %v4179
    %4181 = vmatprep.subr.mxu0 0.0
    %v4182 = vand.u32 %v44, 4294901760
    %v4183 = vsub.f32 %v44, %v4182
    %4184 = vmatpush1.msra.mxu0 %v4183
    %4185 = vmatprep.subr.mxu0 0.0
    %v4186 = vand.u32 %v45, 4294901760
    %v4187 = vsub.f32 %v45, %v4186
    %4188 = vmatpush1.msra.mxu0 %v4187
    %4189 = vmatprep.subr.mxu0 0.0
    %v4190 = vand.u32 %v46, 4294901760
    %v4191 = vsub.f32 %v46, %v4190
    %4192 = vmatpush1.msra.mxu0 %v4191
    %4193 = vmatprep.subr.mxu0 0.0
    %v4194 = vand.u32 %v47, 4294901760
    %v4195 = vsub.f32 %v47, %v4194
    %4196 = vmatpush1.msra.mxu0 %v4195
    %4197 = vmatprep.subr.mxu0 0.0
    %v4198 = vand.u32 %v48, 4294901760
    %v4199 = vsub.f32 %v48, %v4198
    %4200 = vmatpush1.msra.mxu0 %v4199
    %4201 = vmatprep.subr.mxu0 0.0
    %v4202 = vand.u32 %v49, 4294901760
    %v4203 = vsub.f32 %v49, %v4202
    %4204 = vmatpush1.msra.mxu0 %v4203
    %4205 = vmatprep.subr.mxu0 0.0
    %v4206 = vand.u32 %v50, 4294901760
    %v4207 = vsub.f32 %v50, %v4206
    %4208 = vmatpush1.msra.mxu0 %v4207
    %4209 = vmatprep.subr.mxu0 0.0
    %v4210 = vand.u32 %v51, 4294901760
    %v4211 = vsub.f32 %v51, %v4210
    %4212 = vmatpush1.msra.mxu0 %v4211
    %4213 = vmatprep.subr.mxu0 0.0
    %v4214 = vand.u32 %v52, 4294901760
    %v4215 = vsub.f32 %v52, %v4214
    %4216 = vmatpush1.msra.mxu0 %v4215
    %4217 = vmatprep.subr.mxu0 0.0
    %v4218 = vand.u32 %v53, 4294901760
    %v4219 = vsub.f32 %v53, %v4218
    %4220 = vmatpush1.msra.mxu0 %v4219
    %4221 = vmatprep.subr.mxu0 0.0
    %v4222 = vand.u32 %v54, 4294901760
    %v4223 = vsub.f32 %v54, %v4222
    %4224 = vmatpush1.msra.mxu0 %v4223
    %4225 = vmatprep.subr.mxu0 0.0
    %v4226 = vand.u32 %v55, 4294901760
    %v4227 = vsub.f32 %v55, %v4226
    %4228 = vmatpush1.msra.mxu0 %v4227
    %4229 = vmatprep.subr.mxu0 0.0
    %4230 = vmatpush1.msra.mxu0 0.0
    %4231 = vmatprep.subr.mxu0 0.0
    %4232 = vmatpush1.msra.mxu0 0.0
    %4233 = vmatprep.subr.mxu0 0.0
    %4234 = vmatpush1.msra.mxu0 0.0
    %4235 = vmatprep.subr.mxu0 0.0
    %4236 = vmatpush1.msra.mxu0 0.0
    %4237 = vmatprep.subr.mxu0 0.0
    %4238 = vmatpush1.msra.mxu0 0.0
    %4239 = vmatprep.subr.mxu0 0.0
    %4240 = vmatpush1.msra.mxu0 0.0
    %4241 = vmatprep.subr.mxu0 0.0
    %4242 = vmatpush1.msra.mxu0 0.0
    %4243 = vmatprep.subr.mxu0 0.0
    %4244 = vmatpush1.msra.mxu0 0.0
    %4245 = vmatprep.subr.mxu0 0.0
    %4246 = vmatpush1.msra.mxu0 0.0
    %4247 = vmatprep.subr.mxu0 0.0
    %4248 = vmatpush1.msra.mxu0 0.0
    %4249 = vmatprep.subr.mxu0 0.0
    %4250 = vmatpush1.msra.mxu0 0.0
    %4251 = vmatprep.subr.mxu0 0.0
    %4252 = vmatpush1.msra.mxu0 0.0
    %4253 = vmatprep.subr.mxu0 0.0
    %4254 = vmatpush1.msra.mxu0 0.0
    %4255 = vmatprep.subr.mxu0 0.0
    %4256 = vmatpush1.msra.mxu0 0.0
    %4257 = vmatprep.subr.mxu0 0.0
    %4258 = vmatpush1.msra.mxu0 0.0
    %4259 = vmatprep.subr.mxu0 0.0
    %4260 = vmatpush1.msra.mxu0 0.0
    %4261 = vmatprep.mubr.f32.mxu0 0.0
    %v4262 = vand.u32 %v2513, 4294901760
    %v4263 = vsub.f32 %v2513, %v4262
    %4264 = vmatmul.mubr.f32.gmra.mrb[0].mxu0 %v4263
    %v4265 = vpop.f32.mrb[0].mxu0
    %v4266 = vadd.f32 %v4072, %v4265
    %v4267 = vpop.f32.mrb[0].mxu0
    %4268 = vmatprep.mubr.f32.mxu0 0.0
    %v4269 = vand.u32 %v2514, 4294901760
    %v4270 = vsub.f32 %v2514, %v4269
    %4271 = vmatmul.mubr.f32.gmra.mrb[0].mxu0 %v4270
    %v4272 = vpop.f32.mrb[0].mxu0
    %v4273 = vadd.f32 %v4078, %v4272
    %v4274 = vpop.f32.mrb[0].mxu0
    %4275 = vmatprep.mubr.f32.mxu0 0.0
    %v4276 = vand.u32 %v2515, 4294901760
    %v4277 = vsub.f32 %v2515, %v4276
    %4278 = vmatmul.mubr.f32.gmra.mrb[0].mxu0 %v4277
    %v4279 = vpop.f32.mrb[0].mxu0
    %v4280 = vadd.f32 %v4084, %v4279
    %v4281 = vpop.f32.mrb[0].mxu0
    %4282 = vmatprep.mubr.f32.mxu0 0.0
    %v4283 = vand.u32 %v2516, 4294901760
    %v4284 = vsub.f32 %v2516, %v4283
    %4285 = vmatmul.mubr.f32.gmra.mrb[0].mxu0 %v4284
    %v4286 = vpop.f32.mrb[0].mxu0
    %v4287 = vadd.f32 %v4090, %v4286
    %v4288 = vpop.f32.mrb[0].mxu0
    %4289 = vmatprep.mubr.f32.mxu0 0.0
    %v4290 = vand.u32 %v2517, 4294901760
    %v4291 = vsub.f32 %v2517, %v4290
    %4292 = vmatmul.mubr.f32.gmra.mrb[0].mxu0 %v4291
    %v4293 = vpop.f32.mrb[0].mxu0
    %v4294 = vadd.f32 %v4096, %v4293
    %v4295 = vpop.f32.mrb[0].mxu0
    %4296 = vmatprep.mubr.f32.mxu0 0.0
    %v4297 = vand.u32 %v2518, 4294901760
    %v4298 = vsub.f32 %v2518, %v4297
    %4299 = vmatmul.mubr.f32.gmra.mrb[0].mxu0 %v4298
    %v4300 = vpop.f32.mrb[0].mxu0
    %v4301 = vadd.f32 %v4102, %v4300
    %v4302 = vpop.f32.mrb[0].mxu0
    %4303 = vmatprep.mubr.f32.mxu0 0.0
    %v4304 = vand.u32 %v2519, 4294901760
    %v4305 = vsub.f32 %v2519, %v4304
    %4306 = vmatmul.mubr.f32.gmra.mrb[0].mxu0 %v4305
    %v4307 = vpop.f32.mrb[0].mxu0
    %v4308 = vadd.f32 %v4108, %v4307
    %v4309 = vpop.f32.mrb[0].mxu0
    %4310 = vmatprep.mubr.f32.mxu0 0.0
    %v4311 = vand.u32 %v2520, 4294901760
    %v4312 = vsub.f32 %v2520, %v4311
    %4313 = vmatmul.mubr.f32.gmra.mrb[0].mxu0 %v4312
    %v4314 = vpop.f32.mrb[0].mxu0
    %v4315 = vadd.f32 %v4114, %v4314
    %v4316 = vpop.f32.mrb[0].mxu0
    %4317 = vmatprep.mubr.f32.mxu0 0.0
    %v4318 = vand.u32 %v2521, 4294901760
    %v4319 = vsub.f32 %v2521, %v4318
    %4320 = vmatmul.mubr.f32.gmra.mrb[0].mxu0 %v4319
    %v4321 = vpop.f32.mrb[0].mxu0
    %v4322 = vadd.f32 %v4120, %v4321
    %v4323 = vpop.f32.mrb[0].mxu0
    %4324 = vmatprep.mubr.f32.mxu0 0.0
    %v4325 = vand.u32 %v2522, 4294901760
    %v4326 = vsub.f32 %v2522, %v4325
    %4327 = vmatmul.mubr.f32.gmra.mrb[0].mxu0 %v4326
    %v4328 = vpop.f32.mrb[0].mxu0
    %v4329 = vadd.f32 %v4126, %v4328
    %v4330 = vpop.f32.mrb[0].mxu0
    %4331 = vmatprep.mubr.f32.mxu0 0.0
    %v4332 = vand.u32 %v2523, 4294901760
    %v4333 = vsub.f32 %v2523, %v4332
    %4334 = vmatmul.mubr.f32.gmra.mrb[0].mxu0 %v4333
    %v4335 = vpop.f32.mrb[0].mxu0
    %v4336 = vadd.f32 %v4132, %v4335
    %v4337 = vpop.f32.mrb[0].mxu0
    %4338 = vmatprep.mubr.f32.mxu0 0.0
    %v4339 = vand.u32 %v2524, 4294901760
    %v4340 = vsub.f32 %v2524, %v4339
    %4341 = vmatmul.mubr.f32.gmra.mrb[0].mxu0 %v4340
    %v4342 = vpop.f32.mrb[0].mxu0
    %v4343 = vadd.f32 %v4138, %v4342
    %v4344 = vpop.f32.mrb[0].mxu0
    %4345 = vmatprep.mubr.f32.mxu0 0.0
    %v4346 = vand.u32 %v2525, 4294901760
    %v4347 = vsub.f32 %v2525, %v4346
    %4348 = vmatmul.mubr.f32.gmra.mrb[0].mxu0 %v4347
    %v4349 = vpop.f32.mrb[0].mxu0
    %v4350 = vadd.f32 %v4144, %v4349
    %v4351 = vpop.f32.mrb[0].mxu0
    %4352 = vmatprep.mubr.f32.mxu0 0.0
    %v4353 = vand.u32 %v2526, 4294901760
    %v4354 = vsub.f32 %v2526, %v4353
    %4355 = vmatmul.mubr.f32.gmra.mrb[0].mxu0 %v4354
    %v4356 = vpop.f32.mrb[0].mxu0
    %v4357 = vadd.f32 %v4150, %v4356
    %v4358 = vpop.f32.mrb[0].mxu0
    %4359 = vmatprep.mubr.f32.mxu0 0.0
    %v4360 = vand.u32 %v2527, 4294901760
    %v4361 = vsub.f32 %v2527, %v4360
    %4362 = vmatmul.mubr.f32.gmra.mrb[0].mxu0 %v4361
    %v4363 = vpop.f32.mrb[0].mxu0
    %v4364 = vadd.f32 %v4156, %v4363
    %v4365 = vpop.f32.mrb[0].mxu0
    %4366 = vmatprep.mubr.f32.mxu0 0.0
    %v4367 = vand.u32 %v2528, 4294901760
    %v4368 = vsub.f32 %v2528, %v4367
    %4369 = vmatmul.mubr.f32.gmra.mrb[0].mxu0 %v4368
    %v4370 = vpop.f32.mrb[0].mxu0
    %v4371 = vadd.f32 %v4162, %v4370
    %v4372 = vpop.f32.mrb[0].mxu0
    %4373 = vdwg.mxu0
    %4374 = vmatprep.subr.mxu0 0.0
    %v4375 = vand.u32 %v40, 4294901760
    %4376 = vmatpush1.msra.mxu0 %v4375
    %4377 = vmatprep.subr.mxu0 0.0
    %v4378 = vand.u32 %v41, 4294901760
    %4379 = vmatpush1.msra.mxu0 %v4378
    %4380 = vmatprep.subr.mxu0 0.0
    %v4381 = vand.u32 %v42, 4294901760
    %4382 = vmatpush1.msra.mxu0 %v4381
    %4383 = vmatprep.subr.mxu0 0.0
    %v4384 = vand.u32 %v43, 4294901760
    %4385 = vmatpush1.msra.mxu0 %v4384
    %4386 = vmatprep.subr.mxu0 0.0
    %v4387 = vand.u32 %v44, 4294901760
    %4388 = vmatpush1.msra.mxu0 %v4387
    %4389 = vmatprep.subr.mxu0 0.0
    %v4390 = vand.u32 %v45, 4294901760
    %4391 = vmatpush1.msra.mxu0 %v4390
    %4392 = vmatprep.subr.mxu0 0.0
    %v4393 = vand.u32 %v46, 4294901760
    %4394 = vmatpush1.msra.mxu0 %v4393
    %4395 = vmatprep.subr.mxu0 0.0
    %v4396 = vand.u32 %v47, 4294901760
    %4397 = vmatpush1.msra.mxu0 %v4396
    %4398 = vmatprep.subr.mxu0 0.0
    %v4399 = vand.u32 %v48, 4294901760
    %4400 = vmatpush1.msra.mxu0 %v4399
    %4401 = vmatprep.subr.mxu0 0.0
    %v4402 = vand.u32 %v49, 4294901760
    %4403 = vmatpush1.msra.mxu0 %v4402
    %4404 = vmatprep.subr.mxu0 0.0
    %v4405 = vand.u32 %v50, 4294901760
    %4406 = vmatpush1.msra.mxu0 %v4405
    %4407 = vmatprep.subr.mxu0 0.0
    %v4408 = vand.u32 %v51, 4294901760
    %4409 = vmatpush1.msra.mxu0 %v4408
    %4410 = vmatprep.subr.mxu0 0.0
    %v4411 = vand.u32 %v52, 4294901760
    %4412 = vmatpush1.msra.mxu0 %v4411
    %4413 = vmatprep.subr.mxu0 0.0
    %v4414 = vand.u32 %v53, 4294901760
    %4415 = vmatpush1.msra.mxu0 %v4414
    %4416 = vmatprep.subr.mxu0 0.0
    %v4417 = vand.u32 %v54, 4294901760
    %4418 = vmatpush1.msra.mxu0 %v4417
    %4419 = vmatprep.subr.mxu0 0.0
    %v4420 = vand.u32 %v55, 4294901760
    %4421 = vmatpush1.msra.mxu0 %v4420
    %4422 = vmatprep.subr.mxu0 0.0
    %4423 = vmatpush1.msra.mxu0 0.0
    %4424 = vmatprep.subr.mxu0 0.0
    %4425 = vmatpush1.msra.mxu0 0.0
    %4426 = vmatprep.subr.mxu0 0.0
    %4427 = vmatpush1.msra.mxu0 0.0
    %4428 = vmatprep.subr.mxu0 0.0
    %4429 = vmatpush1.msra.mxu0 0.0
    %4430 = vmatprep.subr.mxu0 0.0
    %4431 = vmatpush1.msra.mxu0 0.0
    %4432 = vmatprep.subr.mxu0 0.0
    %4433 = vmatpush1.msra.mxu0 0.0
    %4434 = vmatprep.subr.mxu0 0.0
    %4435 = vmatpush1.msra.mxu0 0.0
    %4436 = vmatprep.subr.mxu0 0.0
    %4437 = vmatpush1.msra.mxu0 0.0
    %4438 = vmatprep.subr.mxu0 0.0
    %4439 = vmatpush1.msra.mxu0 0.0
    %4440 = vmatprep.subr.mxu0 0.0
    %4441 = vmatpush1.msra.mxu0 0.0
    %4442 = vmatprep.subr.mxu0 0.0
    %4443 = vmatpush1.msra.mxu0 0.0
    %4444 = vmatprep.subr.mxu0 0.0
    %4445 = vmatpush1.msra.mxu0 0.0
    %4446 = vmatprep.subr.mxu0 0.0
    %4447 = vmatpush1.msra.mxu0 0.0
    %4448 = vmatprep.subr.mxu0 0.0
    %4449 = vmatpush1.msra.mxu0 0.0
    %4450 = vmatprep.subr.mxu0 0.0
    %4451 = vmatpush1.msra.mxu0 0.0
    %4452 = vmatprep.subr.mxu0 0.0
    %4453 = vmatpush1.msra.mxu0 0.0
    %4454 = vmatprep.mubr.f32.mxu0 0.0
    %v4455 = vand.u32 %v2513, 4294901760
    %v4456 = vsub.f32 %v2513, %v4455
    %v4457 = vand.u32 %v4456, 4294901760
    %4458 = vmatmul.mubr.f32.gmra.mrb[0].mxu0 %v4457
    %v4459 = vpop.f32.mrb[0].mxu0
    %v4460 = vadd.f32 %v4266, %v4459
    %v4461 = vpop.f32.mrb[0].mxu0
    %4462 = vmatprep.mubr.f32.mxu0 0.0
    %v4463 = vand.u32 %v2514, 4294901760
    %v4464 = vsub.f32 %v2514, %v4463
    %v4465 = vand.u32 %v4464, 4294901760
    %4466 = vmatmul.mubr.f32.gmra.mrb[0].mxu0 %v4465
    %v4467 = vpop.f32.mrb[0].mxu0
    %v4468 = vadd.f32 %v4273, %v4467
    %v4469 = vpop.f32.mrb[0].mxu0
    %4470 = vmatprep.mubr.f32.mxu0 0.0
    %v4471 = vand.u32 %v2515, 4294901760
    %v4472 = vsub.f32 %v2515, %v4471
    %v4473 = vand.u32 %v4472, 4294901760
    %4474 = vmatmul.mubr.f32.gmra.mrb[0].mxu0 %v4473
    %v4475 = vpop.f32.mrb[0].mxu0
    %v4476 = vadd.f32 %v4280, %v4475
    %v4477 = vpop.f32.mrb[0].mxu0
    %4478 = vmatprep.mubr.f32.mxu0 0.0
    %v4479 = vand.u32 %v2516, 4294901760
    %v4480 = vsub.f32 %v2516, %v4479
    %v4481 = vand.u32 %v4480, 4294901760
    %4482 = vmatmul.mubr.f32.gmra.mrb[0].mxu0 %v4481
    %v4483 = vpop.f32.mrb[0].mxu0
    %v4484 = vadd.f32 %v4287, %v4483
    %v4485 = vpop.f32.mrb[0].mxu0
    %4486 = vmatprep.mubr.f32.mxu0 0.0
    %v4487 = vand.u32 %v2517, 4294901760
    %v4488 = vsub.f32 %v2517, %v4487
    %v4489 = vand.u32 %v4488, 4294901760
    %4490 = vmatmul.mubr.f32.gmra.mrb[0].mxu0 %v4489
    %v4491 = vpop.f32.mrb[0].mxu0
    %v4492 = vadd.f32 %v4294, %v4491
    %v4493 = vpop.f32.mrb[0].mxu0
    %4494 = vmatprep.mubr.f32.mxu0 0.0
    %v4495 = vand.u32 %v2518, 4294901760
    %v4496 = vsub.f32 %v2518, %v4495
    %v4497 = vand.u32 %v4496, 4294901760
    %4498 = vmatmul.mubr.f32.gmra.mrb[0].mxu0 %v4497
    %v4499 = vpop.f32.mrb[0].mxu0
    %v4500 = vadd.f32 %v4301, %v4499
    %v4501 = vpop.f32.mrb[0].mxu0
    %4502 = vmatprep.mubr.f32.mxu0 0.0
    %v4503 = vand.u32 %v2519, 4294901760
    %v4504 = vsub.f32 %v2519, %v4503
    %v4505 = vand.u32 %v4504, 4294901760
    %4506 = vmatmul.mubr.f32.gmra.mrb[0].mxu0 %v4505
    %v4507 = vpop.f32.mrb[0].mxu0
    %v4508 = vadd.f32 %v4308, %v4507
    %v4509 = vpop.f32.mrb[0].mxu0
    %4510 = vmatprep.mubr.f32.mxu0 0.0
    %v4511 = vand.u32 %v2520, 4294901760
    %v4512 = vsub.f32 %v2520, %v4511
    %v4513 = vand.u32 %v4512, 4294901760
    %4514 = vmatmul.mubr.f32.gmra.mrb[0].mxu0 %v4513
    %v4515 = vpop.f32.mrb[0].mxu0
    %v4516 = vadd.f32 %v4315, %v4515
    %v4517 = vpop.f32.mrb[0].mxu0
    %4518 = vmatprep.mubr.f32.mxu0 0.0
    %v4519 = vand.u32 %v2521, 4294901760
    %v4520 = vsub.f32 %v2521, %v4519
    %v4521 = vand.u32 %v4520, 4294901760
    %4522 = vmatmul.mubr.f32.gmra.mrb[0].mxu0 %v4521
    %v4523 = vpop.f32.mrb[0].mxu0
    %v4524 = vadd.f32 %v4322, %v4523
    %v4525 = vpop.f32.mrb[0].mxu0
    %4526 = vmatprep.mubr.f32.mxu0 0.0
    %v4527 = vand.u32 %v2522, 4294901760
    %v4528 = vsub.f32 %v2522, %v4527
    %v4529 = vand.u32 %v4528, 4294901760
    %4530 = vmatmul.mubr.f32.gmra.mrb[0].mxu0 %v4529
    %v4531 = vpop.f32.mrb[0].mxu0
    %v4532 = vadd.f32 %v4329, %v4531
    %v4533 = vpop.f32.mrb[0].mxu0
    %4534 = vmatprep.mubr.f32.mxu0 0.0
    %v4535 = vand.u32 %v2523, 4294901760
    %v4536 = vsub.f32 %v2523, %v4535
    %v4537 = vand.u32 %v4536, 4294901760
    %4538 = vmatmul.mubr.f32.gmra.mrb[0].mxu0 %v4537
    %v4539 = vpop.f32.mrb[0].mxu0
    %v4540 = vadd.f32 %v4336, %v4539
    %v4541 = vpop.f32.mrb[0].mxu0
    %4542 = vmatprep.mubr.f32.mxu0 0.0
    %v4543 = vand.u32 %v2524, 4294901760
    %v4544 = vsub.f32 %v2524, %v4543
    %v4545 = vand.u32 %v4544, 4294901760
    %4546 = vmatmul.mubr.f32.gmra.mrb[0].mxu0 %v4545
    %v4547 = vpop.f32.mrb[0].mxu0
    %v4548 = vadd.f32 %v4343, %v4547
    %v4549 = vpop.f32.mrb[0].mxu0
    %4550 = vmatprep.mubr.f32.mxu0 0.0
    %v4551 = vand.u32 %v2525, 4294901760
    %v4552 = vsub.f32 %v2525, %v4551
    %v4553 = vand.u32 %v4552, 4294901760
    %4554 = vmatmul.mubr.f32.gmra.mrb[0].mxu0 %v4553
    %v4555 = vpop.f32.mrb[0].mxu0
    %v4556 = vadd.f32 %v4350, %v4555
    %v4557 = vpop.f32.mrb[0].mxu0
    %4558 = vmatprep.mubr.f32.mxu0 0.0
    %v4559 = vand.u32 %v2526, 4294901760
    %v4560 = vsub.f32 %v2526, %v4559
    %v4561 = vand.u32 %v4560, 4294901760
    %4562 = vmatmul.mubr.f32.gmra.mrb[0].mxu0 %v4561
    %v4563 = vpop.f32.mrb[0].mxu0
    %v4564 = vadd.f32 %v4357, %v4563
    %v4565 = vpop.f32.mrb[0].mxu0
    %4566 = vmatprep.mubr.f32.mxu0 0.0
    %v4567 = vand.u32 %v2527, 4294901760
    %v4568 = vsub.f32 %v2527, %v4567
    %v4569 = vand.u32 %v4568, 4294901760
    %4570 = vmatmul.mubr.f32.gmra.mrb[0].mxu0 %v4569
    %v4571 = vpop.f32.mrb[0].mxu0
    %v4572 = vadd.f32 %v4364, %v4571
    %v4573 = vpop.f32.mrb[0].mxu0
    %4574 = vmatprep.mubr.f32.mxu0 0.0
    %v4575 = vand.u32 %v2528, 4294901760
    %v4576 = vsub.f32 %v2528, %v4575
    %v4577 = vand.u32 %v4576, 4294901760
    %4578 = vmatmul.mubr.f32.gmra.mrb[0].mxu0 %v4577
    %v4579 = vpop.f32.mrb[0].mxu0
    %v4580 = vadd.f32 %v4371, %v4579
    %v4581 = vpop.f32.mrb[0].mxu0
    %4582 = vdwg.mxu0
    %4583 = vmatprep.subr.mxu0 0.0
    %v4584 = vand.u32 %v40, 4294901760
    %v4585 = vsub.f32 %v40, %v4584
    %v4586 = vand.u32 %v4585, 4294901760
    %4587 = vmatpush1.msra.mxu0 %v4586
    %4588 = vmatprep.subr.mxu0 0.0
    %v4589 = vand.u32 %v41, 4294901760
    %v4590 = vsub.f32 %v41, %v4589
    %v4591 = vand.u32 %v4590, 4294901760
    %4592 = vmatpush1.msra.mxu0 %v4591
    %4593 = vmatprep.subr.mxu0 0.0
    %v4594 = vand.u32 %v42, 4294901760
    %v4595 = vsub.f32 %v42, %v4594
    %v4596 = vand.u32 %v4595, 4294901760
    %4597 = vmatpush1.msra.mxu0 %v4596
    %4598 = vmatprep.subr.mxu0 0.0
    %v4599 = vand.u32 %v43, 4294901760
    %v4600 = vsub.f32 %v43, %v4599
    %v4601 = vand.u32 %v4600, 4294901760
    %4602 = vmatpush1.msra.mxu0 %v4601
    %4603 = vmatprep.subr.mxu0 0.0
    %v4604 = vand.u32 %v44, 4294901760
    %v4605 = vsub.f32 %v44, %v4604
    %v4606 = vand.u32 %v4605, 4294901760
    %4607 = vmatpush1.msra.mxu0 %v4606
    %4608 = vmatprep.subr.mxu0 0.0
    %v4609 = vand.u32 %v45, 4294901760
    %v4610 = vsub.f32 %v45, %v4609
    %v4611 = vand.u32 %v4610, 4294901760
    %4612 = vmatpush1.msra.mxu0 %v4611
    %4613 = vmatprep.subr.mxu0 0.0
    %v4614 = vand.u32 %v46, 4294901760
    %v4615 = vsub.f32 %v46, %v4614
    %v4616 = vand.u32 %v4615, 4294901760
    %4617 = vmatpush1.msra.mxu0 %v4616
    %4618 = vmatprep.subr.mxu0 0.0
    %v4619 = vand.u32 %v47, 4294901760
    %v4620 = vsub.f32 %v47, %v4619
    %v4621 = vand.u32 %v4620, 4294901760
    %4622 = vmatpush1.msra.mxu0 %v4621
    %4623 = vmatprep.subr.mxu0 0.0
    %v4624 = vand.u32 %v48, 4294901760
    %v4625 = vsub.f32 %v48, %v4624
    %v4626 = vand.u32 %v4625, 4294901760
    %4627 = vmatpush1.msra.mxu0 %v4626
    %4628 = vmatprep.subr.mxu0 0.0
    %v4629 = vand.u32 %v49, 4294901760
    %v4630 = vsub.f32 %v49, %v4629
    %v4631 = vand.u32 %v4630, 4294901760
    %4632 = vmatpush1.msra.mxu0 %v4631
    %4633 = vmatprep.subr.mxu0 0.0
    %v4634 = vand.u32 %v50, 4294901760
    %v4635 = vsub.f32 %v50, %v4634
    %v4636 = vand.u32 %v4635, 4294901760
    %4637 = vmatpush1.msra.mxu0 %v4636
    %4638 = vmatprep.subr.mxu0 0.0
    %v4639 = vand.u32 %v51, 4294901760
    %v4640 = vsub.f32 %v51, %v4639
    %v4641 = vand.u32 %v4640, 4294901760
    %4642 = vmatpush1.msra.mxu0 %v4641
    %4643 = vmatprep.subr.mxu0 0.0
    %v4644 = vand.u32 %v52, 4294901760
    %v4645 = vsub.f32 %v52, %v4644
    %v4646 = vand.u32 %v4645, 4294901760
    %4647 = vmatpush1.msra.mxu0 %v4646
    %4648 = vmatprep.subr.mxu0 0.0
    %v4649 = vand.u32 %v53, 4294901760
    %v4650 = vsub.f32 %v53, %v4649
    %v4651 = vand.u32 %v4650, 4294901760
    %4652 = vmatpush1.msra.mxu0 %v4651
    %4653 = vmatprep.subr.mxu0 0.0
    %v4654 = vand.u32 %v54, 4294901760
    %v4655 = vsub.f32 %v54, %v4654
    %v4656 = vand.u32 %v4655, 4294901760
    %4657 = vmatpush1.msra.mxu0 %v4656
    %4658 = vmatprep.subr.mxu0 0.0
    %v4659 = vand.u32 %v55, 4294901760
    %v4660 = vsub.f32 %v55, %v4659
    %v4661 = vand.u32 %v4660, 4294901760
    %4662 = vmatpush1.msra.mxu0 %v4661
    %4663 = vmatprep.subr.mxu0 0.0
    %4664 = vmatpush1.msra.mxu0 0.0
    %4665 = vmatprep.subr.mxu0 0.0
    %4666 = vmatpush1.msra.mxu0 0.0
    %4667 = vmatprep.subr.mxu0 0.0
    %4668 = vmatpush1.msra.mxu0 0.0
    %4669 = vmatprep.subr.mxu0 0.0
    %4670 = vmatpush1.msra.mxu0 0.0
    %4671 = vmatprep.subr.mxu0 0.0
    %4672 = vmatpush1.msra.mxu0 0.0
    %4673 = vmatprep.subr.mxu0 0.0
    %4674 = vmatpush1.msra.mxu0 0.0
    %4675 = vmatprep.subr.mxu0 0.0
    %4676 = vmatpush1.msra.mxu0 0.0
    %4677 = vmatprep.subr.mxu0 0.0
    %4678 = vmatpush1.msra.mxu0 0.0
    %4679 = vmatprep.subr.mxu0 0.0
    %4680 = vmatpush1.msra.mxu0 0.0
    %4681 = vmatprep.subr.mxu0 0.0
    %4682 = vmatpush1.msra.mxu0 0.0
    %4683 = vmatprep.subr.mxu0 0.0
    %4684 = vmatpush1.msra.mxu0 0.0
    %4685 = vmatprep.subr.mxu0 0.0
    %4686 = vmatpush1.msra.mxu0 0.0
    %4687 = vmatprep.subr.mxu0 0.0
    %4688 = vmatpush1.msra.mxu0 0.0
    %4689 = vmatprep.subr.mxu0 0.0
    %4690 = vmatpush1.msra.mxu0 0.0
    %4691 = vmatprep.subr.mxu0 0.0
    %4692 = vmatpush1.msra.mxu0 0.0
    %4693 = vmatprep.subr.mxu0 0.0
    %4694 = vmatpush1.msra.mxu0 0.0
    %4695 = vmatprep.mubr.f32.mxu0 0.0
    %v4696 = vand.u32 %v2513, 4294901760
    %4697 = vmatmul.mubr.f32.gmra.mrb[0].mxu0 %v4696
    %v4698 = vpop.f32.mrb[0].mxu0
    %v4699 = vadd.f32 %v4460, %v4698
    %v4700 = vpop.f32.mrb[0].mxu0
    %4701 = vmatprep.mubr.f32.mxu0 0.0
    %v4702 = vand.u32 %v2514, 4294901760
    %4703 = vmatmul.mubr.f32.gmra.mrb[0].mxu0 %v4702
    %v4704 = vpop.f32.mrb[0].mxu0
    %v4705 = vadd.f32 %v4468, %v4704
    %v4706 = vpop.f32.mrb[0].mxu0
    %4707 = vmatprep.mubr.f32.mxu0 0.0
    %v4708 = vand.u32 %v2515, 4294901760
    %4709 = vmatmul.mubr.f32.gmra.mrb[0].mxu0 %v4708
    %v4710 = vpop.f32.mrb[0].mxu0
    %v4711 = vadd.f32 %v4476, %v4710
    %v4712 = vpop.f32.mrb[0].mxu0
    %4713 = vmatprep.mubr.f32.mxu0 0.0
    %v4714 = vand.u32 %v2516, 4294901760
    %4715 = vmatmul.mubr.f32.gmra.mrb[0].mxu0 %v4714
    %v4716 = vpop.f32.mrb[0].mxu0
    %v4717 = vadd.f32 %v4484, %v4716
    %v4718 = vpop.f32.mrb[0].mxu0
    %4719 = vmatprep.mubr.f32.mxu0 0.0
    %v4720 = vand.u32 %v2517, 4294901760
    %4721 = vmatmul.mubr.f32.gmra.mrb[0].mxu0 %v4720
    %v4722 = vpop.f32.mrb[0].mxu0
    %v4723 = vadd.f32 %v4492, %v4722
    %v4724 = vpop.f32.mrb[0].mxu0
    %4725 = vmatprep.mubr.f32.mxu0 0.0
    %v4726 = vand.u32 %v2518, 4294901760
    %4727 = vmatmul.mubr.f32.gmra.mrb[0].mxu0 %v4726
    %v4728 = vpop.f32.mrb[0].mxu0
    %v4729 = vadd.f32 %v4500, %v4728
    %v4730 = vpop.f32.mrb[0].mxu0
    %4731 = vmatprep.mubr.f32.mxu0 0.0
    %v4732 = vand.u32 %v2519, 4294901760
    %4733 = vmatmul.mubr.f32.gmra.mrb[0].mxu0 %v4732
    %v4734 = vpop.f32.mrb[0].mxu0
    %v4735 = vadd.f32 %v4508, %v4734
    %v4736 = vpop.f32.mrb[0].mxu0
    %4737 = vmatprep.mubr.f32.mxu0 0.0
    %v4738 = vand.u32 %v2520, 4294901760
    %4739 = vmatmul.mubr.f32.gmra.mrb[0].mxu0 %v4738
    %v4740 = vpop.f32.mrb[0].mxu0
    %v4741 = vadd.f32 %v4516, %v4740
    %v4742 = vpop.f32.mrb[0].mxu0
    %4743 = vmatprep.mubr.f32.mxu0 0.0
    %v4744 = vand.u32 %v2521, 4294901760
    %4745 = vmatmul.mubr.f32.gmra.mrb[0].mxu0 %v4744
    %v4746 = vpop.f32.mrb[0].mxu0
    %v4747 = vadd.f32 %v4524, %v4746
    %v4748 = vpop.f32.mrb[0].mxu0
    %4749 = vmatprep.mubr.f32.mxu0 0.0
    %v4750 = vand.u32 %v2522, 4294901760
    %4751 = vmatmul.mubr.f32.gmra.mrb[0].mxu0 %v4750
    %v4752 = vpop.f32.mrb[0].mxu0
    %v4753 = vadd.f32 %v4532, %v4752
    %v4754 = vpop.f32.mrb[0].mxu0
    %4755 = vmatprep.mubr.f32.mxu0 0.0
    %v4756 = vand.u32 %v2523, 4294901760
    %4757 = vmatmul.mubr.f32.gmra.mrb[0].mxu0 %v4756
    %v4758 = vpop.f32.mrb[0].mxu0
    %v4759 = vadd.f32 %v4540, %v4758
    %v4760 = vpop.f32.mrb[0].mxu0
    %4761 = vmatprep.mubr.f32.mxu0 0.0
    %v4762 = vand.u32 %v2524, 4294901760
    %4763 = vmatmul.mubr.f32.gmra.mrb[0].mxu0 %v4762
    %v4764 = vpop.f32.mrb[0].mxu0
    %v4765 = vadd.f32 %v4548, %v4764
    %v4766 = vpop.f32.mrb[0].mxu0
    %4767 = vmatprep.mubr.f32.mxu0 0.0
    %v4768 = vand.u32 %v2525, 4294901760
    %4769 = vmatmul.mubr.f32.gmra.mrb[0].mxu0 %v4768
    %v4770 = vpop.f32.mrb[0].mxu0
    %v4771 = vadd.f32 %v4556, %v4770
    %v4772 = vpop.f32.mrb[0].mxu0
    %4773 = vmatprep.mubr.f32.mxu0 0.0
    %v4774 = vand.u32 %v2526, 4294901760
    %4775 = vmatmul.mubr.f32.gmra.mrb[0].mxu0 %v4774
    %v4776 = vpop.f32.mrb[0].mxu0
    %v4777 = vadd.f32 %v4564, %v4776
    %v4778 = vpop.f32.mrb[0].mxu0
    %4779 = vmatprep.mubr.f32.mxu0 0.0
    %v4780 = vand.u32 %v2527, 4294901760
    %4781 = vmatmul.mubr.f32.gmra.mrb[0].mxu0 %v4780
    %v4782 = vpop.f32.mrb[0].mxu0
    %v4783 = vadd.f32 %v4572, %v4782
    %v4784 = vpop.f32.mrb[0].mxu0
    %4785 = vmatprep.mubr.f32.mxu0 0.0
    %v4786 = vand.u32 %v2528, 4294901760
    %4787 = vmatmul.mubr.f32.gmra.mrb[0].mxu0 %v4786
    %v4788 = vpop.f32.mrb[0].mxu0
    %v4789 = vadd.f32 %v4580, %v4788
    %v4790 = vpop.f32.mrb[0].mxu0
    %4791 = vdwg.mxu0
    %4792 = vmatprep.subr.mxu0 0.0
    %v4793 = vand.u32 %v40, 4294901760
    %4794 = vmatpush1.msra.mxu0 %v4793
    %4795 = vmatprep.subr.mxu0 0.0
    %v4796 = vand.u32 %v41, 4294901760
    %4797 = vmatpush1.msra.mxu0 %v4796
    %4798 = vmatprep.subr.mxu0 0.0
    %v4799 = vand.u32 %v42, 4294901760
    %4800 = vmatpush1.msra.mxu0 %v4799
    %4801 = vmatprep.subr.mxu0 0.0
    %v4802 = vand.u32 %v43, 4294901760
    %4803 = vmatpush1.msra.mxu0 %v4802
    %4804 = vmatprep.subr.mxu0 0.0
    %v4805 = vand.u32 %v44, 4294901760
    %4806 = vmatpush1.msra.mxu0 %v4805
    %4807 = vmatprep.subr.mxu0 0.0
    %v4808 = vand.u32 %v45, 4294901760
    %4809 = vmatpush1.msra.mxu0 %v4808
    %4810 = vmatprep.subr.mxu0 0.0
    %v4811 = vand.u32 %v46, 4294901760
    %4812 = vmatpush1.msra.mxu0 %v4811
    %4813 = vmatprep.subr.mxu0 0.0
    %v4814 = vand.u32 %v47, 4294901760
    %4815 = vmatpush1.msra.mxu0 %v4814
    %4816 = vmatprep.subr.mxu0 0.0
    %v4817 = vand.u32 %v48, 4294901760
    %4818 = vmatpush1.msra.mxu0 %v4817
    %4819 = vmatprep.subr.mxu0 0.0
    %v4820 = vand.u32 %v49, 4294901760
    %4821 = vmatpush1.msra.mxu0 %v4820
    %4822 = vmatprep.subr.mxu0 0.0
    %v4823 = vand.u32 %v50, 4294901760
    %4824 = vmatpush1.msra.mxu0 %v4823
    %4825 = vmatprep.subr.mxu0 0.0
    %v4826 = vand.u32 %v51, 4294901760
    %4827 = vmatpush1.msra.mxu0 %v4826
    %4828 = vmatprep.subr.mxu0 0.0
    %v4829 = vand.u32 %v52, 4294901760
    %4830 = vmatpush1.msra.mxu0 %v4829
    %4831 = vmatprep.subr.mxu0 0.0
    %v4832 = vand.u32 %v53, 4294901760
    %4833 = vmatpush1.msra.mxu0 %v4832
    %4834 = vmatprep.subr.mxu0 0.0
    %v4835 = vand.u32 %v54, 4294901760
    %4836 = vmatpush1.msra.mxu0 %v4835
    %4837 = vmatprep.subr.mxu0 0.0
    %v4838 = vand.u32 %v55, 4294901760
    %4839 = vmatpush1.msra.mxu0 %v4838
    %4840 = vmatprep.subr.mxu0 0.0
    %4841 = vmatpush1.msra.mxu0 0.0
    %4842 = vmatprep.subr.mxu0 0.0
    %4843 = vmatpush1.msra.mxu0 0.0
    %4844 = vmatprep.subr.mxu0 0.0
    %4845 = vmatpush1.msra.mxu0 0.0
    %4846 = vmatprep.subr.mxu0 0.0
    %4847 = vmatpush1.msra.mxu0 0.0
    %4848 = vmatprep.subr.mxu0 0.0
    %4849 = vmatpush1.msra.mxu0 0.0
    %4850 = vmatprep.subr.mxu0 0.0
    %4851 = vmatpush1.msra.mxu0 0.0
    %4852 = vmatprep.subr.mxu0 0.0
    %4853 = vmatpush1.msra.mxu0 0.0
    %4854 = vmatprep.subr.mxu0 0.0
    %4855 = vmatpush1.msra.mxu0 0.0
    %4856 = vmatprep.subr.mxu0 0.0
    %4857 = vmatpush1.msra.mxu0 0.0
    %4858 = vmatprep.subr.mxu0 0.0
    %4859 = vmatpush1.msra.mxu0 0.0
    %4860 = vmatprep.subr.mxu0 0.0
    %4861 = vmatpush1.msra.mxu0 0.0
    %4862 = vmatprep.subr.mxu0 0.0
    %4863 = vmatpush1.msra.mxu0 0.0
    %4864 = vmatprep.subr.mxu0 0.0
    %4865 = vmatpush1.msra.mxu0 0.0
    %4866 = vmatprep.subr.mxu0 0.0
    %4867 = vmatpush1.msra.mxu0 0.0
    %4868 = vmatprep.subr.mxu0 0.0
    %4869 = vmatpush1.msra.mxu0 0.0
    %4870 = vmatprep.subr.mxu0 0.0
    %4871 = vmatpush1.msra.mxu0 0.0
    %4872 = vmatprep.mubr.f32.mxu0 0.0
    %v4873 = vand.u32 %v2513, 4294901760
    %4874 = vmatmul.mubr.f32.gmra.mrb[0].mxu0 %v4873
    %v4875 = vpop.f32.mrb[0].mxu0
    %v4876 = vadd.f32 %v4699, %v4875
    %v4877 = vpop.f32.mrb[0].mxu0
    %4878 = vmatprep.mubr.f32.mxu0 0.0
    %v4879 = vand.u32 %v2514, 4294901760
    %4880 = vmatmul.mubr.f32.gmra.mrb[0].mxu0 %v4879
    %v4881 = vpop.f32.mrb[0].mxu0
    %v4882 = vadd.f32 %v4705, %v4881
    %v4883 = vpop.f32.mrb[0].mxu0
    %4884 = vmatprep.mubr.f32.mxu0 0.0
    %v4885 = vand.u32 %v2515, 4294901760
    %4886 = vmatmul.mubr.f32.gmra.mrb[0].mxu0 %v4885
    %v4887 = vpop.f32.mrb[0].mxu0
    %v4888 = vadd.f32 %v4711, %v4887
    %v4889 = vpop.f32.mrb[0].mxu0
    %4890 = vmatprep.mubr.f32.mxu0 0.0
    %v4891 = vand.u32 %v2516, 4294901760
    %4892 = vmatmul.mubr.f32.gmra.mrb[0].mxu0 %v4891
    %v4893 = vpop.f32.mrb[0].mxu0
    %v4894 = vadd.f32 %v4717, %v4893
    %v4895 = vpop.f32.mrb[0].mxu0
    %4896 = vmatprep.mubr.f32.mxu0 0.0
    %v4897 = vand.u32 %v2517, 4294901760
    %4898 = vmatmul.mubr.f32.gmra.mrb[0].mxu0 %v4897
    %v4899 = vpop.f32.mrb[0].mxu0
    %v4900 = vadd.f32 %v4723, %v4899
    %v4901 = vpop.f32.mrb[0].mxu0
    %4902 = vmatprep.mubr.f32.mxu0 0.0
    %v4903 = vand.u32 %v2518, 4294901760
    %4904 = vmatmul.mubr.f32.gmra.mrb[0].mxu0 %v4903
    %v4905 = vpop.f32.mrb[0].mxu0
    %v4906 = vadd.f32 %v4729, %v4905
    %v4907 = vpop.f32.mrb[0].mxu0
    %4908 = vmatprep.mubr.f32.mxu0 0.0
    %v4909 = vand.u32 %v2519, 4294901760
    %4910 = vmatmul.mubr.f32.gmra.mrb[0].mxu0 %v4909
    %v4911 = vpop.f32.mrb[0].mxu0
    %v4912 = vadd.f32 %v4735, %v4911
    %v4913 = vpop.f32.mrb[0].mxu0
    %4914 = vmatprep.mubr.f32.mxu0 0.0
    %v4915 = vand.u32 %v2520, 4294901760
    %4916 = vmatmul.mubr.f32.gmra.mrb[0].mxu0 %v4915
    %v4917 = vpop.f32.mrb[0].mxu0
    %v4918 = vadd.f32 %v4741, %v4917
    %v4919 = vpop.f32.mrb[0].mxu0
    %4920 = vmatprep.mubr.f32.mxu0 0.0
    %v4921 = vand.u32 %v2521, 4294901760
    %4922 = vmatmul.mubr.f32.gmra.mrb[0].mxu0 %v4921
    %v4923 = vpop.f32.mrb[0].mxu0
    %v4924 = vadd.f32 %v4747, %v4923
    %v4925 = vpop.f32.mrb[0].mxu0
    %4926 = vmatprep.mubr.f32.mxu0 0.0
    %v4927 = vand.u32 %v2522, 4294901760
    %4928 = vmatmul.mubr.f32.gmra.mrb[0].mxu0 %v4927
    %v4929 = vpop.f32.mrb[0].mxu0
    %v4930 = vadd.f32 %v4753, %v4929
    %v4931 = vpop.f32.mrb[0].mxu0
    %4932 = vmatprep.mubr.f32.mxu0 0.0
    %v4933 = vand.u32 %v2523, 4294901760
    %4934 = vmatmul.mubr.f32.gmra.mrb[0].mxu0 %v4933
    %v4935 = vpop.f32.mrb[0].mxu0
    %v4936 = vadd.f32 %v4759, %v4935
    %v4937 = vpop.f32.mrb[0].mxu0
    %4938 = vmatprep.mubr.f32.mxu0 0.0
    %v4939 = vand.u32 %v2524, 4294901760
    %4940 = vmatmul.mubr.f32.gmra.mrb[0].mxu0 %v4939
    %v4941 = vpop.f32.mrb[0].mxu0
    %v4942 = vadd.f32 %v4765, %v4941
    %v4943 = vpop.f32.mrb[0].mxu0
    %4944 = vmatprep.mubr.f32.mxu0 0.0
    %v4945 = vand.u32 %v2525, 4294901760
    %4946 = vmatmul.mubr.f32.gmra.mrb[0].mxu0 %v4945
    %v4947 = vpop.f32.mrb[0].mxu0
    %v4948 = vadd.f32 %v4771, %v4947
    %v4949 = vpop.f32.mrb[0].mxu0
    %4950 = vmatprep.mubr.f32.mxu0 0.0
    %v4951 = vand.u32 %v2526, 4294901760
    %4952 = vmatmul.mubr.f32.gmra.mrb[0].mxu0 %v4951
    %v4953 = vpop.f32.mrb[0].mxu0
    %v4954 = vadd.f32 %v4777, %v4953
    %v4955 = vpop.f32.mrb[0].mxu0
    %4956 = vmatprep.mubr.f32.mxu0 0.0
    %v4957 = vand.u32 %v2527, 4294901760
    %4958 = vmatmul.mubr.f32.gmra.mrb[0].mxu0 %v4957
    %v4959 = vpop.f32.mrb[0].mxu0
    %v4960 = vadd.f32 %v4783, %v4959
    %v4961 = vpop.f32.mrb[0].mxu0
    %4962 = vmatprep.mubr.f32.mxu0 0.0
    %v4963 = vand.u32 %v2528, 4294901760
    %4964 = vmatmul.mubr.f32.gmra.mrb[0].mxu0 %v4963
    %v4965 = vpop.f32.mrb[0].mxu0
    %v4966 = vadd.f32 %v4789, %v4965
    %v4967 = vpop.f32.mrb[0].mxu0
    %4968 = vdwg.mxu0
    %v4969 = vsub.f32 %v4876, %v40
    %v4970 = vsub.f32 %v4882, %v41
    %v4971 = vsub.f32 %v4888, %v42
    %v4972 = vsub.f32 %v4894, %v43
    %v4973 = vsub.f32 %v4900, %v44
    %v4974 = vsub.f32 %v4906, %v45
    %v4975 = vsub.f32 %v4912, %v46
    %v4976 = vsub.f32 %v4918, %v47
    %v4977 = vsub.f32 %v4924, %v48
    %v4978 = vsub.f32 %v4930, %v49
    %v4979 = vsub.f32 %v4936, %v50
    %v4980 = vsub.f32 %v4942, %v51
    %v4981 = vsub.f32 %v4948, %v52
    %v4982 = vsub.f32 %v4954, %v53
    %v4983 = vsub.f32 %v4960, %v54
    %v4984 = vsub.f32 %v4966, %v55
    %v4985 = vand.u32 2147483647, %v4969
    %v4986 = vand.u32 2147483647, %v4970
    %v4987 = vand.u32 2147483647, %v4971
    %v4988 = vand.u32 2147483647, %v4972
    %v4989 = vand.u32 2147483647, %v4973
    %v4990 = vand.u32 2147483647, %v4974
    %v4991 = vand.u32 2147483647, %v4975
    %v4992 = vand.u32 2147483647, %v4976
    %v4993 = vand.u32 2147483647, %v4977
    %v4994 = vand.u32 2147483647, %v4978
    %v4995 = vand.u32 2147483647, %v4979
    %v4996 = vand.u32 2147483647, %v4980
    %v4997 = vand.u32 2147483647, %v4981
    %v4998 = vand.u32 2147483647, %v4982
    %v4999 = vand.u32 2147483647, %v4983
    %v5000 = vand.u32 2147483647, %v4984
    %v5001 = vsub.f32 %v40, %v2420
    %v5002 = vsub.f32 %v41, %v2426
    %v5003 = vsub.f32 %v42, %v2432
    %v5004 = vsub.f32 %v43, %v2438
    %v5005 = vsub.f32 %v44, %v2444
    %v5006 = vsub.f32 %v45, %v2450
    %v5007 = vsub.f32 %v46, %v2456
    %v5008 = vsub.f32 %v47, %v2462
    %v5009 = vsub.f32 %v48, %v2468
    %v5010 = vsub.f32 %v49, %v2474
    %v5011 = vsub.f32 %v50, %v2480
    %v5012 = vsub.f32 %v51, %v2486
    %v5013 = vsub.f32 %v52, %v2492
    %v5014 = vsub.f32 %v53, %v2498
    %v5015 = vsub.f32 %v54, %v2504
    %v5016 = vsub.f32 %v55, %v2510
    %v5017 = vand.u32 2147483647, %v5001
    %v5018 = vand.u32 2147483647, %v5002
    %v5019 = vand.u32 2147483647, %v5003
    %v5020 = vand.u32 2147483647, %v5004
    %v5021 = vand.u32 2147483647, %v5005
    %v5022 = vand.u32 2147483647, %v5006
    %v5023 = vand.u32 2147483647, %v5007
    %v5024 = vand.u32 2147483647, %v5008
    %v5025 = vand.u32 2147483647, %v5009
    %v5026 = vand.u32 2147483647, %v5010
    %v5027 = vand.u32 2147483647, %v5011
    %v5028 = vand.u32 2147483647, %v5012
    %v5029 = vand.u32 2147483647, %v5013
    %v5030 = vand.u32 2147483647, %v5014
    %v5031 = vand.u32 2147483647, %v5015
    %v5032 = vand.u32 2147483647, %v5016
    %v5033 = vsub.f32 %v24, %v40
    %v5034 = vsub.f32 %v25, %v41
    %v5035 = vsub.f32 %v26, %v42
    %v5036 = vsub.f32 %v27, %v43
    %v5037 = vsub.f32 %v28, %v44
    %v5038 = vsub.f32 %v29, %v45
    %v5039 = vsub.f32 %v30, %v46
    %v5040 = vsub.f32 %v31, %v47
    %v5041 = vsub.f32 %v32, %v48
    %v5042 = vsub.f32 %v33, %v49
    %v5043 = vsub.f32 %v34, %v50
    %v5044 = vsub.f32 %v35, %v51
    %v5045 = vsub.f32 %v36, %v52
    %v5046 = vsub.f32 %v37, %v53
    %v5047 = vsub.f32 %v38, %v54
    %v5048 = vsub.f32 %v39, %v55
    %v5049 = vmul.f32 %v5033, %v5033
    %v5050 = vmul.f32 %v5034, %v5034
    %v5051 = vmul.f32 %v5035, %v5035
    %v5052 = vmul.f32 %v5036, %v5036
    %v5053 = vmul.f32 %v5037, %v5037
    %v5054 = vmul.f32 %v5038, %v5038
    %v5055 = vmul.f32 %v5039, %v5039
    %v5056 = vmul.f32 %v5040, %v5040
    %v5057 = vmul.f32 %v5041, %v5041
    %v5058 = vmul.f32 %v5042, %v5042
    %v5059 = vmul.f32 %v5043, %v5043
    %v5060 = vmul.f32 %v5044, %v5044
    %v5061 = vmul.f32 %v5045, %v5045
    %v5062 = vmul.f32 %v5046, %v5046
    %v5063 = vmul.f32 %v5047, %v5047
    %v5064 = vmul.f32 %v5048, %v5048
    %v5065 = vsub.f32 %v24, %v4876
    %v5066 = vsub.f32 %v25, %v4882
    %v5067 = vsub.f32 %v26, %v4888
    %v5068 = vsub.f32 %v27, %v4894
    %v5069 = vsub.f32 %v28, %v4900
    %v5070 = vsub.f32 %v29, %v4906
    %v5071 = vsub.f32 %v30, %v4912
    %v5072 = vsub.f32 %v31, %v4918
    %v5073 = vsub.f32 %v32, %v4924
    %v5074 = vsub.f32 %v33, %v4930
    %v5075 = vsub.f32 %v34, %v4936
    %v5076 = vsub.f32 %v35, %v4942
    %v5077 = vsub.f32 %v36, %v4948
    %v5078 = vsub.f32 %v37, %v4954
    %v5079 = vsub.f32 %v38, %v4960
    %v5080 = vsub.f32 %v39, %v4966
    %v5081 = vsub.f32 %v24, %v2420
    %v5082 = vsub.f32 %v25, %v2426
    %v5083 = vsub.f32 %v26, %v2432
    %v5084 = vsub.f32 %v27, %v2438
    %v5085 = vsub.f32 %v28, %v2444
    %v5086 = vsub.f32 %v29, %v2450
    %v5087 = vsub.f32 %v30, %v2456
    %v5088 = vsub.f32 %v31, %v2462
    %v5089 = vsub.f32 %v32, %v2468
    %v5090 = vsub.f32 %v33, %v2474
    %v5091 = vsub.f32 %v34, %v2480
    %v5092 = vsub.f32 %v35, %v2486
    %v5093 = vsub.f32 %v36, %v2492
    %v5094 = vsub.f32 %v37, %v2498
    %v5095 = vsub.f32 %v38, %v2504
    %v5096 = vsub.f32 %v39, %v2510
    %v5097 = vmul.f32 %v5065, %v5065
    %v5098 = vmul.f32 %v5066, %v5066
    %v5099 = vmul.f32 %v5067, %v5067
    %v5100 = vmul.f32 %v5068, %v5068
    %v5101 = vmul.f32 %v5069, %v5069
    %v5102 = vmul.f32 %v5070, %v5070
    %v5103 = vmul.f32 %v5071, %v5071
    %v5104 = vmul.f32 %v5072, %v5072
    %v5105 = vmul.f32 %v5073, %v5073
    %v5106 = vmul.f32 %v5074, %v5074
    %v5107 = vmul.f32 %v5075, %v5075
    %v5108 = vmul.f32 %v5076, %v5076
    %v5109 = vmul.f32 %v5077, %v5077
    %v5110 = vmul.f32 %v5078, %v5078
    %v5111 = vmul.f32 %v5079, %v5079
    %v5112 = vmul.f32 %v5080, %v5080
    %v5113 = vmul.f32 %v5097, %v4985
    %v5114 = vmul.f32 %v5098, %v4986
    %v5115 = vmul.f32 %v5099, %v4987
    %v5116 = vmul.f32 %v5100, %v4988
    %v5117 = vmul.f32 %v5101, %v4989
    %v5118 = vmul.f32 %v5102, %v4990
    %v5119 = vmul.f32 %v5103, %v4991
    %v5120 = vmul.f32 %v5104, %v4992
    %v5121 = vmul.f32 %v5105, %v4993
    %v5122 = vmul.f32 %v5106, %v4994
    %v5123 = vmul.f32 %v5107, %v4995
    %v5124 = vmul.f32 %v5108, %v4996
    %v5125 = vmul.f32 %v5109, %v4997
    %v5126 = vmul.f32 %v5110, %v4998
    %v5127 = vmul.f32 %v5111, %v4999
    %v5128 = vmul.f32 %v5112, %v5000
    %v5129 = vmul.f32 %v5081, %v5081
    %v5130 = vmul.f32 %v5082, %v5082
    %v5131 = vmul.f32 %v5083, %v5083
    %v5132 = vmul.f32 %v5084, %v5084
    %v5133 = vmul.f32 %v5085, %v5085
    %v5134 = vmul.f32 %v5086, %v5086
    %v5135 = vmul.f32 %v5087, %v5087
    %v5136 = vmul.f32 %v5088, %v5088
    %v5137 = vmul.f32 %v5089, %v5089
    %v5138 = vmul.f32 %v5090, %v5090
    %v5139 = vmul.f32 %v5091, %v5091
    %v5140 = vmul.f32 %v5092, %v5092
    %v5141 = vmul.f32 %v5093, %v5093
    %v5142 = vmul.f32 %v5094, %v5094
    %v5143 = vmul.f32 %v5095, %v5095
    %v5144 = vmul.f32 %v5096, %v5096
    %v5145 = vmul.f32 %v5129, %v5017
    %v5146 = vmul.f32 %v5130, %v5018
    %v5147 = vmul.f32 %v5131, %v5019
    %v5148 = vmul.f32 %v5132, %v5020
    %v5149 = vmul.f32 %v5133, %v5021
    %v5150 = vmul.f32 %v5134, %v5022
    %v5151 = vmul.f32 %v5135, %v5023
    %v5152 = vmul.f32 %v5136, %v5024
    %v5153 = vmul.f32 %v5137, %v5025
    %v5154 = vmul.f32 %v5138, %v5026
    %v5155 = vmul.f32 %v5139, %v5027
    %v5156 = vmul.f32 %v5140, %v5028
    %v5157 = vmul.f32 %v5141, %v5029
    %v5158 = vmul.f32 %v5142, %v5030
    %v5159 = vmul.f32 %v5143, %v5031
    %v5160 = vmul.f32 %v5144, %v5032
    %v5161 = vadd.f32 %v5113, %v5145
    %v5162 = vadd.f32 %v5114, %v5146
    %v5163 = vadd.f32 %v5115, %v5147
    %v5164 = vadd.f32 %v5116, %v5148
    %v5165 = vadd.f32 %v5117, %v5149
    %v5166 = vadd.f32 %v5118, %v5150
    %v5167 = vadd.f32 %v5119, %v5151
    %v5168 = vadd.f32 %v5120, %v5152
    %v5169 = vadd.f32 %v5121, %v5153
    %v5170 = vadd.f32 %v5122, %v5154
    %v5171 = vadd.f32 %v5123, %v5155
    %v5172 = vadd.f32 %v5124, %v5156
    %v5173 = vadd.f32 %v5125, %v5157
    %v5174 = vadd.f32 %v5126, %v5158
    %v5175 = vadd.f32 %v5127, %v5159
    %v5176 = vadd.f32 %v5128, %v5160
    %v5177 = vmul.f32 %v5161, %v5049
    %v5178 = vmul.f32 %v5162, %v5050
    %v5179 = vmul.f32 %v5163, %v5051
    %v5180 = vmul.f32 %v5164, %v5052
    %v5181 = vmul.f32 %v5165, %v5053
    %v5182 = vmul.f32 %v5166, %v5054
    %v5183 = vmul.f32 %v5167, %v5055
    %v5184 = vmul.f32 %v5168, %v5056
    %v5185 = vmul.f32 %v5169, %v5057
    %v5186 = vmul.f32 %v5170, %v5058
    %v5187 = vmul.f32 %v5171, %v5059
    %v5188 = vmul.f32 %v5172, %v5060
    %v5189 = vmul.f32 %v5173, %v5061
    %v5190 = vmul.f32 %v5174, %v5062
    %v5191 = vmul.f32 %v5175, %v5063
    %v5192 = vmul.f32 %v5176, %v5064
    %v5193 = vsel %vm1360, %v5177, 0.0
    %v5194 = vsel %vm1360, %v5178, 0.0
    %v5195 = vadd.f32 %v5193, %v5194
    %v5196 = vsel %vm1360, %v5179, 0.0
    %v5197 = vadd.f32 %v5195, %v5196
    %v5198 = vsel %vm1360, %v5180, 0.0
    %v5199 = vadd.f32 %v5197, %v5198
    %v5200 = vsel %vm1360, %v5181, 0.0
    %v5201 = vadd.f32 %v5199, %v5200
    %v5202 = vsel %vm1360, %v5182, 0.0
    %v5203 = vadd.f32 %v5201, %v5202
    %v5204 = vsel %vm1360, %v5183, 0.0
    %v5205 = vadd.f32 %v5203, %v5204
    %v5206 = vsel %vm1360, %v5184, 0.0
    %v5207 = vadd.f32 %v5205, %v5206
    %v5208 = vsel %vm1360, %v5185, 0.0
    %v5209 = vadd.f32 %v5207, %v5208
    %v5210 = vsel %vm1360, %v5186, 0.0
    %v5211 = vadd.f32 %v5209, %v5210
    %v5212 = vsel %vm1360, %v5187, 0.0
    %v5213 = vadd.f32 %v5211, %v5212
    %v5214 = vsel %vm1360, %v5188, 0.0
    %v5215 = vadd.f32 %v5213, %v5214
    %v5216 = vsel %vm1360, %v5189, 0.0
    %v5217 = vadd.f32 %v5215, %v5216
    %v5218 = vsel %vm1360, %v5190, 0.0
    %v5219 = vadd.f32 %v5217, %v5218
    %v5220 = vsel %vm1360, %v5191, 0.0
    %v5221 = vadd.f32 %v5219, %v5220
    %v5222 = vsel %vm1360, %v5192, 0.0
    %v5223 = vadd.f32 %v5221, %v5222
    %5224 = vadd.xlane.f32.xlu0 %v5223
    %v5225 = vpop.xlane.xlu0 %5224
    %v5226 = vrot.slane %v5225, 4
    %v5227 = vadd.f32 %v5225, %v5226
    %v5228 = vrot.slane %v5227, 2
    %v5229 = vadd.f32 %v5227, %v5228
    %v5230 = vrot.slane %v5229, 1
    %v5231 = vadd.f32 %v5229, %v5230
    %s5232 = vtos %v5231
    %v5233 = vstv %s5232
    %5234 = vst [vmem:[#allocation2] sm:$0x1] %v5233
    // Predicated region
    $region26: #{tpu_custom_call.1} parent=1 // pred_check
      _
    $region27: #{tpu_custom_call.1} parent=1 // pred_check_branch
      %5236 = sbr.rel (0) target = $region29
    $region28: #{tpu_custom_call.1} parent=1 // pred_region
      %s5238 = ssub.s32 16, 16
      %5239 = vsyncadd [#allocation3], %s5238
      %s5241 = sshll.u32 [#allocation2], 4
      %s5242 = int_to_ptr.vmem [resolvable:$true] %s5241
      %5244 = dma.vmem_to_hbm [thread:$0]  %s5242, 16, %s6, [#allocation3]
    $region29: #{tpu_custom_call.1} parent=1 // pred_fallthru
      _
    // Predicated region
    $region30: #{tpu_custom_call.1} parent=1 // pred_check
      _
    $region31: #{tpu_custom_call.1} parent=1 // pred_check_branch
      %5246 = sbr.rel (0) target = $region33
    $region32: #{tpu_custom_call.1} parent=1 // pred_region
      %5247 = dma.done [#allocation3], 16
    $region33: #{tpu_custom_call.1} parent=1 // pred_fallthru
      _
    %5248 = vsyncpa [#allocation3], 1

</llo_original>
